<compile_context>
chip_gen: v7x
topology: tpu7x:2x2x1
jax: 0.10.0
libtpu: 0.0.40
codegen_flags: <defaults>
</compile_context>

<pallas_src>
import functools
import math

import jax
import jax.numpy as jnp
from jax.experimental import pallas as pl
from jax.experimental.pallas import tpu as pltpu

LN_EPS = 1e-5
NEG_INF = -1e30


def _layer_norm(x, gamma, beta):
    # x: (N, D) f32; gamma/beta: (1, D)
    mu = jnp.mean(x, axis=-1, keepdims=True)
    xc = x - mu
    var = jnp.mean(xc * xc, axis=-1, keepdims=True)
    return xc * jax.lax.rsqrt(var + LN_EPS) * gamma + beta


def fused_encoder_kernel(e_ref, c_ref, d_ref, bias_ref,
                         wqkv_ref, bqkv_ref, wo_ref, bo_ref,
                         w1_ref, b1_ref, w2_ref, b2_ref,
                         g1_ref, be1_ref, g2_ref, be2_ref,
                         gf_ref, bf_ref,
                         o_ref,
                         x_buf,
                         *, nhead):
    S, Bp, D = e_ref.shape
    B = 3 * Bp                       # total batch after the fused torch.cat(dim=1)
    N = S * B                        # total rows (= S*B flattened activations)
    NH = nhead
    HD = D // NH
    L = wqkv_ref.shape[0]            # number of encoder layers (static)

    # ---- fused torch.cat(dim=1): interleave the three sources into (N, D) rows.
    #      row r = s*B + (src*Bp + b)  == row-major order of the concatenated (S, B, D).
    for src, ref in enumerate((e_ref, c_ref, d_ref)):
        for s in range(S):
            off = s * B + src * Bp
            x_buf[off:off + Bp, :] = ref[s].astype(jnp.float32)

    x = x_buf[...]                   # (N, D) f32
    bias = bias_ref[...]             # (N, N): 0 where same batch element, -1e30 otherwise

    for l in range(L):               # static unroll over encoder layers
        # ---- fused QKV projection: one wide matmul for all heads and all of Q/K/V.
        #      (Q columns/bias are pre-scaled by 1/sqrt(HD) on the host.)
        qkv = (jnp.dot(x, wqkv_ref[l], preferred_element_type=jnp.float32)
               + bqkv_ref[l])        # (N, 3*D)

        # ---- masked full-row attention scores per head (rank-2 dots only),
        #      softmax batched over all heads at once.
        s_list = []
        for h in range(NH):
            q_h = qkv[:, h * HD:(h + 1) * HD]              # (N, HD)
            k_h = qkv[:, D + h * HD:D + (h + 1) * HD]      # (N, HD)
            s_h = jax.lax.dot_general(                     # q_h @ k_h^T  -> (N, N)
                q_h, k_h, (((1,), (1,)), ((), ())),
                preferred_element_type=jnp.float32)
            s_list.append(s_h + bias)                      # mask out cross-batch pairs
        s_all = jnp.concatenate(s_list, axis=0)            # (NH*N, N), vreg-aligned rows
        m = jnp.max(s_all, axis=-1, keepdims=True)
        p = jnp.exp(s_all - m)
        p = p / jnp.sum(p, axis=-1, keepdims=True)         # exact normalisation (parity)

        # ---- per-head context, lane-concatenated, then a single out-projection matmul.
        ctx = jnp.concatenate(
            [jnp.dot(p[h * N:(h + 1) * N, :],
                     qkv[:, 2 * D + h * HD:2 * D + (h + 1) * HD],
                     preferred_element_type=jnp.float32)
             for h in range(NH)], axis=-1)                 # (N, D)
        attn = jnp.dot(ctx, wo_ref[l], preferred_element_type=jnp.float32) + bo_ref[l]

        # residual + norm1 (post-norm, PyTorch default)
        x = _layer_norm(x + attn, g1_ref[l], be1_ref[l])

        # ---- feed forward (ReLU) over all rows at once
        h1 = jnp.maximum(
            jnp.dot(x, w1_ref[l], preferred_element_type=jnp.float32) + b1_ref[l], 0.0)
        ff = jnp.dot(h1, w2_ref[l], preferred_element_type=jnp.float32) + b2_ref[l]

        # residual + norm2
        x = _layer_norm(x + ff, g2_ref[l], be2_ref[l])

    # final encoder-level LayerNorm (nn.TransformerEncoder norm=)
    x = _layer_norm(x, gf_ref[...], bf_ref[...])
    o_ref[...] = x.astype(o_ref.dtype)


def fused_encoder(entity, category, description, bias, params, *, nhead):
    S, Bp, D = entity.shape
    B = 3 * Bp
    N = S * B
    L, _, F = params["w1"].shape
    NH, HD = nhead, D // nhead

    # Advisory cost hint for the XLA scheduler around this tiny custom call.
    flops = L * (2 * N * D * (3 * D)            # fused QKV projection
                 + NH * 2 * (2 * N * HD * N)    # scores + context
                 + 2 * N * D * D                # out projection
                 + 2 * (2 * N * D * F))         # feed forward
    transcendentals = L * (NH * N * N + 2 * N) + N   # exp + rsqrt

    args = (entity, category, description, bias,
            params["wqkv"], params["bqkv"], params["wo"], params["bo"],
            params["w1"], params["b1"], params["w2"], params["b2"],
            params["g1"], params["be1"], params["g2"], params["be2"],
            params["gf"], params["bf"])
    bytes_accessed = sum(int(a.size) * a.dtype.itemsize for a in args) + N * D * 4

    vmem = pl.BlockSpec(memory_space=pltpu.MemorySpace.VMEM)   # everything resident in VMEM
    kernel = functools.partial(fused_encoder_kernel, nhead=nhead)
    return pl.pallas_call(
        kernel,
        out_shape=jax.ShapeDtypeStruct((N, D), entity.dtype),
        in_specs=[vmem] * len(args),
        out_specs=vmem,
        scratch_shapes=[pltpu.VMEM((N, D), jnp.float32)],
        cost_estimate=pl.CostEstimate(flops=flops,
                                      transcendentals=transcendentals,
                                      bytes_accessed=bytes_accessed),
    )(*args)


@functools.partial(jax.jit, static_argnums=(4,))
def entity_encoder_forward(entity, category, description, params, nhead):
    # PyTorch: x = torch.cat([entity, category, description], dim=1); x = encoder(x)
    S, Bp, D = entity.shape
    B = 3 * Bp
    N = S * B
    # Additive "same batch element" attention mask for (s, b) row order.
    # Built from constants only -> constant-folded under jit (no runtime ops).
    col_b = jnp.arange(N, dtype=jnp.int32) % B
    bias = jnp.where(col_b[:, None] == col_b[None, :], 0.0, NEG_INF).astype(jnp.float32)
    y = fused_encoder(entity, category, description, bias, params, nhead=nhead)
    return y.reshape(S, B, D)        # free row-major reshape back to PyTorch's (S, B, D)


def init_params(key, d_model, nhead, dim_feedforward, num_layer):
    """Random params in PyTorch layout, pre-oriented on the host for the kernel.

    Kernel layouts (all 'x @ W' oriented, stacked over layers):
      wqkv: (L, D, 3D)  (Q columns pre-scaled by 1/sqrt(HD))   bqkv: (L, 1, 3D)
      wo:   (L, D, D)   bo: (L, 1, D)
      w1:   (L, D, F)   b1: (L, 1, F)     w2: (L, F, D)   b2: (L, 1, D)
      per-layer norms: (L, 1, D);  final norm gf/bf: (1, D)
    """
    D, NH, F, L = d_model, nhead, dim_feedforward, num_layer
    HD = D // NH
    scale = 1.0 / math.sqrt(HD)
    names = ("wqkv", "bqkv", "wo", "bo", "w1", "b1", "w2", "b2",
             "g1", "be1", "g2", "be2")
    acc = {k: [] for k in names}
    for _ in range(L):
        key, k0, k1, k2, k3, k4, k5, k6, k7 = jax.random.split(key, 9)
        w_in = 0.05 * jax.random.normal(k0, (3 * D, D), jnp.float32)   # in_proj_weight
        b_in = 0.01 * jax.random.normal(k1, (3 * D,), jnp.float32)     # in_proj_bias
        w_out = 0.05 * jax.random.normal(k2, (D, D), jnp.float32)      # out_proj.weight
        b_out = 0.01 * jax.random.normal(k3, (D,), jnp.float32)
        w1 = 0.05 * jax.random.normal(k4, (F, D), jnp.float32)         # linear1.weight
        b1 = 0.01 * jax.random.normal(k5, (F,), jnp.float32)           # linear1.bias
        w2 = 0.05 * jax.random.normal(k6, (D, F), jnp.float32)         # linear2.weight
        b2 = 0.01 * jax.random.normal(k7, (D,), jnp.float32)           # linear2.bias

        wq = jnp.transpose(w_in[0:D]) * scale        # fold softmax scale into Q
        wk = jnp.transpose(w_in[D:2 * D])
        wv = jnp.transpose(w_in[2 * D:3 * D])
        bq = b_in[0:D] * scale
        bk = b_in[D:2 * D]
        bv = b_in[2 * D:3 * D]
        acc["wqkv"].append(jnp.concatenate([wq, wk, wv], axis=1))      # (D, 3D)
        acc["bqkv"].append(jnp.concatenate([bq, bk, bv]).reshape(1, 3 * D))
        acc["wo"].append(jnp.transpose(w_out))                         # (D, D)
        acc["bo"].append(b_out.reshape(1, D))
        acc["w1"].append(jnp.transpose(w1))                            # (D, F)
        acc["b1"].append(b1.reshape(1, F))
        acc["w2"].append(jnp.transpose(w2))                            # (F, D)
        acc["b2"].append(b2.reshape(1, D))
        acc["g1"].append(jnp.ones((1, D), jnp.float32))
        acc["be1"].append(jnp.zeros((1, D), jnp.float32))
        acc["g2"].append(jnp.ones((1, D), jnp.float32))
        acc["be2"].append(jnp.zeros((1, D), jnp.float32))

    params = {k: jnp.stack(v, axis=0) for k, v in acc.items()}
    params["gf"] = jnp.ones((1, D), jnp.float32)
    params["bf"] = jnp.zeros((1, D), jnp.float32)
    return params


if __name__ == "__main__":
    d_model, nhead, dim_feedforward, num_layer = 32, 4, 64, 2
    S = 8          # sequence length (dim 0 in PyTorch's (S, B, D) convention)
    B_part = 2     # per-input batch; cat along dim=1 -> B_total = 6

    key = jax.random.PRNGKey(0)
    k_e, k_c, k_d, k_p = jax.random.split(key, 4)
    entity = jax.random.normal(k_e, (S, B_part, d_model), jnp.float32)
    category = jax.random.normal(k_c, (S, B_part, d_model), jnp.float32)
    description = jax.random.normal(k_d, (S, B_part, d_model), jnp.float32)

    params = init_params(k_p, d_model, nhead, dim_feedforward, num_layer)

    out = entity_encoder_forward(entity, category, description, params, nhead)
    jax.block_until_ready(out)
    assert out.shape == (S, 3 * B_part, d_model), out.shape
    assert bool(jnp.all(jnp.isfinite(out)))
    print("KERNEL_OK")
</pallas_src>

<mosaic_0001>
module attributes {stable_mosaic.version = 11 : i64} {
  func.func @fused_encoder_kernel(%arg0: memref<8x2x32xf32, #tpu.memory_space<vmem>>, %arg1: memref<8x2x32xf32, #tpu.memory_space<vmem>>, %arg2: memref<8x2x32xf32, #tpu.memory_space<vmem>>, %arg3: memref<48x48xf32, #tpu.memory_space<vmem>>, %arg4: memref<2x32x96xf32, #tpu.memory_space<vmem>>, %arg5: memref<2x1x96xf32, #tpu.memory_space<vmem>>, %arg6: memref<2x32x32xf32, #tpu.memory_space<vmem>>, %arg7: memref<2x1x32xf32, #tpu.memory_space<vmem>>, %arg8: memref<2x32x64xf32, #tpu.memory_space<vmem>>, %arg9: memref<2x1x64xf32, #tpu.memory_space<vmem>>, %arg10: memref<2x64x32xf32, #tpu.memory_space<vmem>>, %arg11: memref<2x1x32xf32, #tpu.memory_space<vmem>>, %arg12: memref<2x1x32xf32, #tpu.memory_space<vmem>>, %arg13: memref<2x1x32xf32, #tpu.memory_space<vmem>>, %arg14: memref<2x1x32xf32, #tpu.memory_space<vmem>>, %arg15: memref<2x1x32xf32, #tpu.memory_space<vmem>>, %arg16: memref<1x32xf32, #tpu.memory_space<vmem>>, %arg17: memref<1x32xf32, #tpu.memory_space<vmem>>, %arg18: memref<48x32xf32, #tpu.memory_space<vmem>>, %arg19: memref<48x32xf32, #tpu.memory_space<vmem>>) attributes {dimension_semantics = [], scalar_prefetch = 0 : i64, scratch_operands = 1 : i64, tpu.core_type = #tpu.core_type<tc>} {
    %c0 = arith.constant 0 : index
    %c0_0 = arith.constant 0 : index
    %c0_1 = arith.constant 0 : index
    %0 = vector.load %arg0[%c0, %c0_0, %c0_1] : memref<8x2x32xf32, #tpu.memory_space<vmem>>, vector<1x2x32xf32>
    %1 = vector.shape_cast %0 : vector<1x2x32xf32> to vector<2x32xf32>
    %c0_2 = arith.constant 0 : index
    %c0_3 = arith.constant 0 : index
    %2 = vector.load %arg19[%c0_2, %c0_3] : memref<48x32xf32, #tpu.memory_space<vmem>>, vector<2x32xf32>
    tpu.vector_store %arg19[%c0_2, %c0_3], %1 {strides = array<i32>} : memref<48x32xf32, #tpu.memory_space<vmem>>, vector<2x32xf32>,
    %c1 = arith.constant 1 : index
    %c0_4 = arith.constant 0 : index
    %c0_5 = arith.constant 0 : index
    %3 = vector.load %arg0[%c1, %c0_4, %c0_5] : memref<8x2x32xf32, #tpu.memory_space<vmem>>, vector<1x2x32xf32>
    %4 = vector.shape_cast %3 : vector<1x2x32xf32> to vector<2x32xf32>
    %c6 = arith.constant 6 : index
    %c0_6 = arith.constant 0 : index
    %5 = vector.load %arg19[%c6, %c0_6] : memref<48x32xf32, #tpu.memory_space<vmem>>, vector<2x32xf32>
    tpu.vector_store %arg19[%c6, %c0_6], %4 {strides = array<i32>} : memref<48x32xf32, #tpu.memory_space<vmem>>, vector<2x32xf32>,
    %c2 = arith.constant 2 : index
    %c0_7 = arith.constant 0 : index
    %c0_8 = arith.constant 0 : index
    %6 = vector.load %arg0[%c2, %c0_7, %c0_8] : memref<8x2x32xf32, #tpu.memory_space<vmem>>, vector<1x2x32xf32>
    %7 = vector.shape_cast %6 : vector<1x2x32xf32> to vector<2x32xf32>
    %c12 = arith.constant 12 : index
    %c0_9 = arith.constant 0 : index
    %8 = vector.load %arg19[%c12, %c0_9] : memref<48x32xf32, #tpu.memory_space<vmem>>, vector<2x32xf32>
    tpu.vector_store %arg19[%c12, %c0_9], %7 {strides = array<i32>} : memref<48x32xf32, #tpu.memory_space<vmem>>, vector<2x32xf32>,
    %c3 = arith.constant 3 : index
    %c0_10 = arith.constant 0 : index
    %c0_11 = arith.constant 0 : index
    %9 = vector.load %arg0[%c3, %c0_10, %c0_11] : memref<8x2x32xf32, #tpu.memory_space<vmem>>, vector<1x2x32xf32>
    %10 = vector.shape_cast %9 : vector<1x2x32xf32> to vector<2x32xf32>
    %c18 = arith.constant 18 : index
    %c0_12 = arith.constant 0 : index
    %11 = vector.load %arg19[%c18, %c0_12] : memref<48x32xf32, #tpu.memory_space<vmem>>, vector<2x32xf32>
    tpu.vector_store %arg19[%c18, %c0_12], %10 {strides = array<i32>} : memref<48x32xf32, #tpu.memory_space<vmem>>, vector<2x32xf32>,
    %c4 = arith.constant 4 : index
    %c0_13 = arith.constant 0 : index
    %c0_14 = arith.constant 0 : index
    %12 = vector.load %arg0[%c4, %c0_13, %c0_14] : memref<8x2x32xf32, #tpu.memory_space<vmem>>, vector<1x2x32xf32>
    %13 = vector.shape_cast %12 : vector<1x2x32xf32> to vector<2x32xf32>
    %c24 = arith.constant 24 : index
    %c0_15 = arith.constant 0 : index
    %14 = vector.load %arg19[%c24, %c0_15] : memref<48x32xf32, #tpu.memory_space<vmem>>, vector<2x32xf32>
    tpu.vector_store %arg19[%c24, %c0_15], %13 {strides = array<i32>} : memref<48x32xf32, #tpu.memory_space<vmem>>, vector<2x32xf32>,
    %c5 = arith.constant 5 : index
    %c0_16 = arith.constant 0 : index
    %c0_17 = arith.constant 0 : index
    %15 = vector.load %arg0[%c5, %c0_16, %c0_17] : memref<8x2x32xf32, #tpu.memory_space<vmem>>, vector<1x2x32xf32>
    %16 = vector.shape_cast %15 : vector<1x2x32xf32> to vector<2x32xf32>
    %c30 = arith.constant 30 : index
    %c0_18 = arith.constant 0 : index
    %17 = vector.load %arg19[%c30, %c0_18] : memref<48x32xf32, #tpu.memory_space<vmem>>, vector<2x32xf32>
    tpu.vector_store %arg19[%c30, %c0_18], %16 {strides = array<i32>} : memref<48x32xf32, #tpu.memory_space<vmem>>, vector<2x32xf32>,
    %c6_19 = arith.constant 6 : index
    %c0_20 = arith.constant 0 : index
    %c0_21 = arith.constant 0 : index
    %18 = vector.load %arg0[%c6_19, %c0_20, %c0_21] : memref<8x2x32xf32, #tpu.memory_space<vmem>>, vector<1x2x32xf32>
    %19 = vector.shape_cast %18 : vector<1x2x32xf32> to vector<2x32xf32>
    %c36 = arith.constant 36 : index
    %c0_22 = arith.constant 0 : index
    %20 = vector.load %arg19[%c36, %c0_22] : memref<48x32xf32, #tpu.memory_space<vmem>>, vector<2x32xf32>
    tpu.vector_store %arg19[%c36, %c0_22], %19 {strides = array<i32>} : memref<48x32xf32, #tpu.memory_space<vmem>>, vector<2x32xf32>,
    %c7 = arith.constant 7 : index
    %c0_23 = arith.constant 0 : index
    %c0_24 = arith.constant 0 : index
    %21 = vector.load %arg0[%c7, %c0_23, %c0_24] : memref<8x2x32xf32, #tpu.memory_space<vmem>>, vector<1x2x32xf32>
    %22 = vector.shape_cast %21 : vector<1x2x32xf32> to vector<2x32xf32>
    %c42 = arith.constant 42 : index
    %c0_25 = arith.constant 0 : index
    %23 = vector.load %arg19[%c42, %c0_25] : memref<48x32xf32, #tpu.memory_space<vmem>>, vector<2x32xf32>
    tpu.vector_store %arg19[%c42, %c0_25], %22 {strides = array<i32>} : memref<48x32xf32, #tpu.memory_space<vmem>>, vector<2x32xf32>,
    %c0_26 = arith.constant 0 : index
    %c0_27 = arith.constant 0 : index
    %c0_28 = arith.constant 0 : index
    %24 = vector.load %arg1[%c0_26, %c0_27, %c0_28] : memref<8x2x32xf32, #tpu.memory_space<vmem>>, vector<1x2x32xf32>
    %25 = vector.shape_cast %24 : vector<1x2x32xf32> to vector<2x32xf32>
    %c2_29 = arith.constant 2 : index
    %c0_30 = arith.constant 0 : index
    %26 = vector.load %arg19[%c2_29, %c0_30] : memref<48x32xf32, #tpu.memory_space<vmem>>, vector<2x32xf32>
    tpu.vector_store %arg19[%c2_29, %c0_30], %25 {strides = array<i32>} : memref<48x32xf32, #tpu.memory_space<vmem>>, vector<2x32xf32>,
    %c1_31 = arith.constant 1 : index
    %c0_32 = arith.constant 0 : index
    %c0_33 = arith.constant 0 : index
    %27 = vector.load %arg1[%c1_31, %c0_32, %c0_33] : memref<8x2x32xf32, #tpu.memory_space<vmem>>, vector<1x2x32xf32>
    %28 = vector.shape_cast %27 : vector<1x2x32xf32> to vector<2x32xf32>
    %c8 = arith.constant 8 : index
    %c0_34 = arith.constant 0 : index
    %29 = vector.load %arg19[%c8, %c0_34] : memref<48x32xf32, #tpu.memory_space<vmem>>, vector<2x32xf32>
    tpu.vector_store %arg19[%c8, %c0_34], %28 {strides = array<i32>} : memref<48x32xf32, #tpu.memory_space<vmem>>, vector<2x32xf32>,
    %c2_35 = arith.constant 2 : index
    %c0_36 = arith.constant 0 : index
    %c0_37 = arith.constant 0 : index
    %30 = vector.load %arg1[%c2_35, %c0_36, %c0_37] : memref<8x2x32xf32, #tpu.memory_space<vmem>>, vector<1x2x32xf32>
    %31 = vector.shape_cast %30 : vector<1x2x32xf32> to vector<2x32xf32>
    %c14 = arith.constant 14 : index
    %c0_38 = arith.constant 0 : index
    %32 = vector.load %arg19[%c14, %c0_38] : memref<48x32xf32, #tpu.memory_space<vmem>>, vector<2x32xf32>
    tpu.vector_store %arg19[%c14, %c0_38], %31 {strides = array<i32>} : memref<48x32xf32, #tpu.memory_space<vmem>>, vector<2x32xf32>,
    %c3_39 = arith.constant 3 : index
    %c0_40 = arith.constant 0 : index
    %c0_41 = arith.constant 0 : index
    %33 = vector.load %arg1[%c3_39, %c0_40, %c0_41] : memref<8x2x32xf32, #tpu.memory_space<vmem>>, vector<1x2x32xf32>
    %34 = vector.shape_cast %33 : vector<1x2x32xf32> to vector<2x32xf32>
    %c20 = arith.constant 20 : index
    %c0_42 = arith.constant 0 : index
    %35 = vector.load %arg19[%c20, %c0_42] : memref<48x32xf32, #tpu.memory_space<vmem>>, vector<2x32xf32>
    tpu.vector_store %arg19[%c20, %c0_42], %34 {strides = array<i32>} : memref<48x32xf32, #tpu.memory_space<vmem>>, vector<2x32xf32>,
    %c4_43 = arith.constant 4 : index
    %c0_44 = arith.constant 0 : index
    %c0_45 = arith.constant 0 : index
    %36 = vector.load %arg1[%c4_43, %c0_44, %c0_45] : memref<8x2x32xf32, #tpu.memory_space<vmem>>, vector<1x2x32xf32>
    %37 = vector.shape_cast %36 : vector<1x2x32xf32> to vector<2x32xf32>
    %c26 = arith.constant 26 : index
    %c0_46 = arith.constant 0 : index
    %38 = vector.load %arg19[%c26, %c0_46] : memref<48x32xf32, #tpu.memory_space<vmem>>, vector<2x32xf32>
    tpu.vector_store %arg19[%c26, %c0_46], %37 {strides = array<i32>} : memref<48x32xf32, #tpu.memory_space<vmem>>, vector<2x32xf32>,
    %c5_47 = arith.constant 5 : index
    %c0_48 = arith.constant 0 : index
    %c0_49 = arith.constant 0 : index
    %39 = vector.load %arg1[%c5_47, %c0_48, %c0_49] : memref<8x2x32xf32, #tpu.memory_space<vmem>>, vector<1x2x32xf32>
    %40 = vector.shape_cast %39 : vector<1x2x32xf32> to vector<2x32xf32>
    %c32 = arith.constant 32 : index
    %c0_50 = arith.constant 0 : index
    %41 = vector.load %arg19[%c32, %c0_50] : memref<48x32xf32, #tpu.memory_space<vmem>>, vector<2x32xf32>
    tpu.vector_store %arg19[%c32, %c0_50], %40 {strides = array<i32>} : memref<48x32xf32, #tpu.memory_space<vmem>>, vector<2x32xf32>,
    %c6_51 = arith.constant 6 : index
    %c0_52 = arith.constant 0 : index
    %c0_53 = arith.constant 0 : index
    %42 = vector.load %arg1[%c6_51, %c0_52, %c0_53] : memref<8x2x32xf32, #tpu.memory_space<vmem>>, vector<1x2x32xf32>
    %43 = vector.shape_cast %42 : vector<1x2x32xf32> to vector<2x32xf32>
    %c38 = arith.constant 38 : index
    %c0_54 = arith.constant 0 : index
    %44 = vector.load %arg19[%c38, %c0_54] : memref<48x32xf32, #tpu.memory_space<vmem>>, vector<2x32xf32>
    tpu.vector_store %arg19[%c38, %c0_54], %43 {strides = array<i32>} : memref<48x32xf32, #tpu.memory_space<vmem>>, vector<2x32xf32>,
    %c7_55 = arith.constant 7 : index
    %c0_56 = arith.constant 0 : index
    %c0_57 = arith.constant 0 : index
    %45 = vector.load %arg1[%c7_55, %c0_56, %c0_57] : memref<8x2x32xf32, #tpu.memory_space<vmem>>, vector<1x2x32xf32>
    %46 = vector.shape_cast %45 : vector<1x2x32xf32> to vector<2x32xf32>
    %c44 = arith.constant 44 : index
    %c0_58 = arith.constant 0 : index
    %47 = vector.load %arg19[%c44, %c0_58] : memref<48x32xf32, #tpu.memory_space<vmem>>, vector<2x32xf32>
    tpu.vector_store %arg19[%c44, %c0_58], %46 {strides = array<i32>} : memref<48x32xf32, #tpu.memory_space<vmem>>, vector<2x32xf32>,
    %c0_59 = arith.constant 0 : index
    %c0_60 = arith.constant 0 : index
    %c0_61 = arith.constant 0 : index
    %48 = vector.load %arg2[%c0_59, %c0_60, %c0_61] : memref<8x2x32xf32, #tpu.memory_space<vmem>>, vector<1x2x32xf32>
    %49 = vector.shape_cast %48 : vector<1x2x32xf32> to vector<2x32xf32>
    %c4_62 = arith.constant 4 : index
    %c0_63 = arith.constant 0 : index
    %50 = vector.load %arg19[%c4_62, %c0_63] : memref<48x32xf32, #tpu.memory_space<vmem>>, vector<2x32xf32>
    tpu.vector_store %arg19[%c4_62, %c0_63], %49 {strides = array<i32>} : memref<48x32xf32, #tpu.memory_space<vmem>>, vector<2x32xf32>,
    %c1_64 = arith.constant 1 : index
    %c0_65 = arith.constant 0 : index
    %c0_66 = arith.constant 0 : index
    %51 = vector.load %arg2[%c1_64, %c0_65, %c0_66] : memref<8x2x32xf32, #tpu.memory_space<vmem>>, vector<1x2x32xf32>
    %52 = vector.shape_cast %51 : vector<1x2x32xf32> to vector<2x32xf32>
    %c10 = arith.constant 10 : index
    %c0_67 = arith.constant 0 : index
    %53 = vector.load %arg19[%c10, %c0_67] : memref<48x32xf32, #tpu.memory_space<vmem>>, vector<2x32xf32>
    tpu.vector_store %arg19[%c10, %c0_67], %52 {strides = array<i32>} : memref<48x32xf32, #tpu.memory_space<vmem>>, vector<2x32xf32>,
    %c2_68 = arith.constant 2 : index
    %c0_69 = arith.constant 0 : index
    %c0_70 = arith.constant 0 : index
    %54 = vector.load %arg2[%c2_68, %c0_69, %c0_70] : memref<8x2x32xf32, #tpu.memory_space<vmem>>, vector<1x2x32xf32>
    %55 = vector.shape_cast %54 : vector<1x2x32xf32> to vector<2x32xf32>
    %c16 = arith.constant 16 : index
    %c0_71 = arith.constant 0 : index
    %56 = vector.load %arg19[%c16, %c0_71] : memref<48x32xf32, #tpu.memory_space<vmem>>, vector<2x32xf32>
    tpu.vector_store %arg19[%c16, %c0_71], %55 {strides = array<i32>} : memref<48x32xf32, #tpu.memory_space<vmem>>, vector<2x32xf32>,
    %c3_72 = arith.constant 3 : index
    %c0_73 = arith.constant 0 : index
    %c0_74 = arith.constant 0 : index
    %57 = vector.load %arg2[%c3_72, %c0_73, %c0_74] : memref<8x2x32xf32, #tpu.memory_space<vmem>>, vector<1x2x32xf32>
    %58 = vector.shape_cast %57 : vector<1x2x32xf32> to vector<2x32xf32>
    %c22 = arith.constant 22 : index
    %c0_75 = arith.constant 0 : index
    %59 = vector.load %arg19[%c22, %c0_75] : memref<48x32xf32, #tpu.memory_space<vmem>>, vector<2x32xf32>
    tpu.vector_store %arg19[%c22, %c0_75], %58 {strides = array<i32>} : memref<48x32xf32, #tpu.memory_space<vmem>>, vector<2x32xf32>,
    %c4_76 = arith.constant 4 : index
    %c0_77 = arith.constant 0 : index
    %c0_78 = arith.constant 0 : index
    %60 = vector.load %arg2[%c4_76, %c0_77, %c0_78] : memref<8x2x32xf32, #tpu.memory_space<vmem>>, vector<1x2x32xf32>
    %61 = vector.shape_cast %60 : vector<1x2x32xf32> to vector<2x32xf32>
    %c28 = arith.constant 28 : index
    %c0_79 = arith.constant 0 : index
    %62 = vector.load %arg19[%c28, %c0_79] : memref<48x32xf32, #tpu.memory_space<vmem>>, vector<2x32xf32>
    tpu.vector_store %arg19[%c28, %c0_79], %61 {strides = array<i32>} : memref<48x32xf32, #tpu.memory_space<vmem>>, vector<2x32xf32>,
    %c5_80 = arith.constant 5 : index
    %c0_81 = arith.constant 0 : index
    %c0_82 = arith.constant 0 : index
    %63 = vector.load %arg2[%c5_80, %c0_81, %c0_82] : memref<8x2x32xf32, #tpu.memory_space<vmem>>, vector<1x2x32xf32>
    %64 = vector.shape_cast %63 : vector<1x2x32xf32> to vector<2x32xf32>
    %c34 = arith.constant 34 : index
    %c0_83 = arith.constant 0 : index
    %65 = vector.load %arg19[%c34, %c0_83] : memref<48x32xf32, #tpu.memory_space<vmem>>, vector<2x32xf32>
    tpu.vector_store %arg19[%c34, %c0_83], %64 {strides = array<i32>} : memref<48x32xf32, #tpu.memory_space<vmem>>, vector<2x32xf32>,
    %c6_84 = arith.constant 6 : index
    %c0_85 = arith.constant 0 : index
    %c0_86 = arith.constant 0 : index
    %66 = vector.load %arg2[%c6_84, %c0_85, %c0_86] : memref<8x2x32xf32, #tpu.memory_space<vmem>>, vector<1x2x32xf32>
    %67 = vector.shape_cast %66 : vector<1x2x32xf32> to vector<2x32xf32>
    %c40 = arith.constant 40 : index
    %c0_87 = arith.constant 0 : index
    %68 = vector.load %arg19[%c40, %c0_87] : memref<48x32xf32, #tpu.memory_space<vmem>>, vector<2x32xf32>
    tpu.vector_store %arg19[%c40, %c0_87], %67 {strides = array<i32>} : memref<48x32xf32, #tpu.memory_space<vmem>>, vector<2x32xf32>,
    %c7_88 = arith.constant 7 : index
    %c0_89 = arith.constant 0 : index
    %c0_90 = arith.constant 0 : index
    %69 = vector.load %arg2[%c7_88, %c0_89, %c0_90] : memref<8x2x32xf32, #tpu.memory_space<vmem>>, vector<1x2x32xf32>
    %70 = vector.shape_cast %69 : vector<1x2x32xf32> to vector<2x32xf32>
    %c46 = arith.constant 46 : index
    %c0_91 = arith.constant 0 : index
    %71 = vector.load %arg19[%c46, %c0_91] : memref<48x32xf32, #tpu.memory_space<vmem>>, vector<2x32xf32>
    tpu.vector_store %arg19[%c46, %c0_91], %70 {strides = array<i32>} : memref<48x32xf32, #tpu.memory_space<vmem>>, vector<2x32xf32>,
    %c0_92 = arith.constant 0 : index
    %c0_93 = arith.constant 0 : index
    %72 = vector.load %arg19[%c0_92, %c0_93] : memref<48x32xf32, #tpu.memory_space<vmem>>, vector<48x32xf32>
    %c0_94 = arith.constant 0 : index
    %c0_95 = arith.constant 0 : index
    %73 = vector.load %arg3[%c0_94, %c0_95] : memref<48x48xf32, #tpu.memory_space<vmem>>, vector<48x48xf32>
    %c0_96 = arith.constant 0 : index
    %c0_97 = arith.constant 0 : index
    %c0_98 = arith.constant 0 : index
    %74 = vector.load %arg4[%c0_96, %c0_97, %c0_98] : memref<2x32x96xf32, #tpu.memory_space<vmem>>, vector<1x32x96xf32>
    %75 = vector.shape_cast %74 : vector<1x32x96xf32> to vector<32x96xf32>
    %cst = arith.constant dense<0.000000e+00> : vector<48x96xf32>
    %76 = tpu.matmul %72, %75, %cst {dimension_numbers = #tpu.dot_dimension_numbers<[1], [0], [0], [1], [0, 0, 1, 1], [], []>} : vector<48x32xf32>, vector<32x96xf32>, vector<48x96xf32> -> vector<48x96xf32>
    %c0_99 = arith.constant 0 : index
    %c0_100 = arith.constant 0 : index
    %c0_101 = arith.constant 0 : index
    %77 = vector.load %arg5[%c0_99, %c0_100, %c0_101] : memref<2x1x96xf32, #tpu.memory_space<vmem>>, vector<1x1x96xf32>
    %78 = vector.shape_cast %77 : vector<1x1x96xf32> to vector<1x96xf32>
    %79 = vector.broadcast %78 : vector<1x96xf32> to vector<48x96xf32>
    %80 = arith.addf %76, %79 : vector<48x96xf32>
    %81 = vector.extract_strided_slice %80 {offsets = [0, 0], sizes = [48, 8], strides = [1, 1]} : vector<48x96xf32> to vector<48x8xf32>
    %82 = vector.extract_strided_slice %80 {offsets = [0, 32], sizes = [48, 8], strides = [1, 1]} : vector<48x96xf32> to vector<48x8xf32>
    %cst_102 = arith.constant dense<0.000000e+00> : vector<48x48xf32>
    %83 = tpu.matmul %81, %82, %cst_102 {dimension_numbers = #tpu.dot_dimension_numbers<[1], [1], [0], [0], [0, 0, 1, 0], [], []>} : vector<48x8xf32>, vector<48x8xf32>, vector<48x48xf32> -> vector<48x48xf32>
    %84 = arith.addf %83, %73 : vector<48x48xf32>
    %85 = vector.extract_strided_slice %80 {offsets = [0, 8], sizes = [48, 8], strides = [1, 1]} : vector<48x96xf32> to vector<48x8xf32>
    %86 = vector.extract_strided_slice %80 {offsets = [0, 40], sizes = [48, 8], strides = [1, 1]} : vector<48x96xf32> to vector<48x8xf32>
    %cst_103 = arith.constant dense<0.000000e+00> : vector<48x48xf32>
    %87 = tpu.matmul %85, %86, %cst_103 {dimension_numbers = #tpu.dot_dimension_numbers<[1], [1], [0], [0], [0, 0, 1, 0], [], []>} : vector<48x8xf32>, vector<48x8xf32>, vector<48x48xf32> -> vector<48x48xf32>
    %88 = arith.addf %87, %73 : vector<48x48xf32>
    %89 = vector.extract_strided_slice %80 {offsets = [0, 16], sizes = [48, 8], strides = [1, 1]} : vector<48x96xf32> to vector<48x8xf32>
    %90 = vector.extract_strided_slice %80 {offsets = [0, 48], sizes = [48, 8], strides = [1, 1]} : vector<48x96xf32> to vector<48x8xf32>
    %cst_104 = arith.constant dense<0.000000e+00> : vector<48x48xf32>
    %91 = tpu.matmul %89, %90, %cst_104 {dimension_numbers = #tpu.dot_dimension_numbers<[1], [1], [0], [0], [0, 0, 1, 0], [], []>} : vector<48x8xf32>, vector<48x8xf32>, vector<48x48xf32> -> vector<48x48xf32>
    %92 = arith.addf %91, %73 : vector<48x48xf32>
    %93 = vector.extract_strided_slice %80 {offsets = [0, 24], sizes = [48, 8], strides = [1, 1]} : vector<48x96xf32> to vector<48x8xf32>
    %94 = vector.extract_strided_slice %80 {offsets = [0, 56], sizes = [48, 8], strides = [1, 1]} : vector<48x96xf32> to vector<48x8xf32>
    %cst_105 = arith.constant dense<0.000000e+00> : vector<48x48xf32>
    %95 = tpu.matmul %93, %94, %cst_105 {dimension_numbers = #tpu.dot_dimension_numbers<[1], [1], [0], [0], [0, 0, 1, 0], [], []>} : vector<48x8xf32>, vector<48x8xf32>, vector<48x48xf32> -> vector<48x48xf32>
    %96 = arith.addf %95, %73 : vector<48x48xf32>
    %97 = tpu.concatenate %84, %88, %92, %96 in 0 : vector<48x48xf32>, vector<48x48xf32>, vector<48x48xf32>, vector<48x48xf32> -> vector<192x48xf32>
    %cst_106 = arith.constant dense<0xFF800000> : vector<192xf32>
    %98 = vector.multi_reduction <maximumf>, %97, %cst_106 [1] : vector<192x48xf32> to vector<192xf32>
    %99 = vector.shape_cast %98 : vector<192xf32> to vector<192x1xf32>
    %100 = vector.broadcast %99 : vector<192x1xf32> to vector<192x48xf32>
    %101 = arith.subf %97, %100 : vector<192x48xf32>
    %102 = math.exp %101 : vector<192x48xf32>
    %cst_107 = arith.constant dense<0.000000e+00> : vector<192xf32>
    %103 = vector.multi_reduction <add>, %102, %cst_107 [1] : vector<192x48xf32> to vector<192xf32>
    %104 = vector.shape_cast %103 : vector<192xf32> to vector<192x1xf32>
    %105 = vector.broadcast %104 : vector<192x1xf32> to vector<192x48xf32>
    %106 = arith.divf %102, %105 : vector<192x48xf32>
    %107 = vector.extract_strided_slice %106 {offsets = [0, 0], sizes = [48, 48], strides = [1, 1]} : vector<192x48xf32> to vector<48x48xf32>
    %108 = vector.extract_strided_slice %80 {offsets = [0, 64], sizes = [48, 8], strides = [1, 1]} : vector<48x96xf32> to vector<48x8xf32>
    %cst_108 = arith.constant dense<0.000000e+00> : vector<48x8xf32>
    %109 = tpu.matmul %107, %108, %cst_108 {dimension_numbers = #tpu.dot_dimension_numbers<[1], [0], [0], [1], [0, 0, 1, 1], [], []>} : vector<48x48xf32>, vector<48x8xf32>, vector<48x8xf32> -> vector<48x8xf32>
    %110 = vector.extract_strided_slice %106 {offsets = [48, 0], sizes = [48, 48], strides = [1, 1]} : vector<192x48xf32> to vector<48x48xf32>
    %111 = vector.extract_strided_slice %80 {offsets = [0, 72], sizes = [48, 8], strides = [1, 1]} : vector<48x96xf32> to vector<48x8xf32>
    %cst_109 = arith.constant dense<0.000000e+00> : vector<48x8xf32>
    %112 = tpu.matmul %110, %111, %cst_109 {dimension_numbers = #tpu.dot_dimension_numbers<[1], [0], [0], [1], [0, 0, 1, 1], [], []>} : vector<48x48xf32>, vector<48x8xf32>, vector<48x8xf32> -> vector<48x8xf32>
    %113 = vector.extract_strided_slice %106 {offsets = [96, 0], sizes = [48, 48], strides = [1, 1]} : vector<192x48xf32> to vector<48x48xf32>
    %114 = vector.extract_strided_slice %80 {offsets = [0, 80], sizes = [48, 8], strides = [1, 1]} : vector<48x96xf32> to vector<48x8xf32>
    %cst_110 = arith.constant dense<0.000000e+00> : vector<48x8xf32>
    %115 = tpu.matmul %113, %114, %cst_110 {dimension_numbers = #tpu.dot_dimension_numbers<[1], [0], [0], [1], [0, 0, 1, 1], [], []>} : vector<48x48xf32>, vector<48x8xf32>, vector<48x8xf32> -> vector<48x8xf32>
    %116 = vector.extract_strided_slice %106 {offsets = [144, 0], sizes = [48, 48], strides = [1, 1]} : vector<192x48xf32> to vector<48x48xf32>
    %117 = vector.extract_strided_slice %80 {offsets = [0, 88], sizes = [48, 8], strides = [1, 1]} : vector<48x96xf32> to vector<48x8xf32>
    %cst_111 = arith.constant dense<0.000000e+00> : vector<48x8xf32>
    %118 = tpu.matmul %116, %117, %cst_111 {dimension_numbers = #tpu.dot_dimension_numbers<[1], [0], [0], [1], [0, 0, 1, 1], [], []>} : vector<48x48xf32>, vector<48x8xf32>, vector<48x8xf32> -> vector<48x8xf32>
    %119 = tpu.concatenate %109, %112, %115, %118 in 1 : vector<48x8xf32>, vector<48x8xf32>, vector<48x8xf32>, vector<48x8xf32> -> vector<48x32xf32>
    %c0_112 = arith.constant 0 : index
    %c0_113 = arith.constant 0 : index
    %c0_114 = arith.constant 0 : index
    %120 = vector.load %arg6[%c0_112, %c0_113, %c0_114] : memref<2x32x32xf32, #tpu.memory_space<vmem>>, vector<1x32x32xf32>
    %121 = vector.shape_cast %120 : vector<1x32x32xf32> to vector<32x32xf32>
    %cst_115 = arith.constant dense<0.000000e+00> : vector<48x32xf32>
    %122 = tpu.matmul %119, %121, %cst_115 {dimension_numbers = #tpu.dot_dimension_numbers<[1], [0], [0], [1], [0, 0, 1, 1], [], []>} : vector<48x32xf32>, vector<32x32xf32>, vector<48x32xf32> -> vector<48x32xf32>
    %c0_116 = arith.constant 0 : index
    %c0_117 = arith.constant 0 : index
    %c0_118 = arith.constant 0 : index
    %123 = vector.load %arg7[%c0_116, %c0_117, %c0_118] : memref<2x1x32xf32, #tpu.memory_space<vmem>>, vector<1x1x32xf32>
    %124 = vector.shape_cast %123 : vector<1x1x32xf32> to vector<1x32xf32>
    %125 = vector.broadcast %124 : vector<1x32xf32> to vector<48x32xf32>
    %126 = arith.addf %122, %125 : vector<48x32xf32>
    %127 = arith.addf %72, %126 : vector<48x32xf32>
    %c0_119 = arith.constant 0 : index
    %c0_120 = arith.constant 0 : index
    %c0_121 = arith.constant 0 : index
    %128 = vector.load %arg12[%c0_119, %c0_120, %c0_121] : memref<2x1x32xf32, #tpu.memory_space<vmem>>, vector<1x1x32xf32>
    %129 = vector.shape_cast %128 : vector<1x1x32xf32> to vector<1x32xf32>
    %c0_122 = arith.constant 0 : index
    %c0_123 = arith.constant 0 : index
    %c0_124 = arith.constant 0 : index
    %130 = vector.load %arg13[%c0_122, %c0_123, %c0_124] : memref<2x1x32xf32, #tpu.memory_space<vmem>>, vector<1x1x32xf32>
    %131 = vector.shape_cast %130 : vector<1x1x32xf32> to vector<1x32xf32>
    %cst_125 = arith.constant dense<0.000000e+00> : vector<48xf32>
    %132 = vector.multi_reduction <add>, %127, %cst_125 [1] : vector<48x32xf32> to vector<48xf32>
    %133 = vector.shape_cast %132 : vector<48xf32> to vector<48x1xf32>
    %cst_126 = arith.constant 3.200000e+01 : f32
    %134 = vector.broadcast %cst_126 : f32 to vector<48x1xf32>
    %135 = arith.divf %133, %134 : vector<48x1xf32>
    %136 = vector.broadcast %135 : vector<48x1xf32> to vector<48x32xf32>
    %137 = arith.subf %127, %136 : vector<48x32xf32>
    %138 = arith.mulf %137, %137 : vector<48x32xf32>
    %cst_127 = arith.constant dense<0.000000e+00> : vector<48xf32>
    %139 = vector.multi_reduction <add>, %138, %cst_127 [1] : vector<48x32xf32> to vector<48xf32>
    %140 = vector.shape_cast %139 : vector<48xf32> to vector<48x1xf32>
    %cst_128 = arith.constant 3.200000e+01 : f32
    %141 = vector.broadcast %cst_128 : f32 to vector<48x1xf32>
    %142 = arith.divf %140, %141 : vector<48x1xf32>
    %cst_129 = arith.constant 9.99999974E-6 : f32
    %143 = vector.broadcast %cst_129 : f32 to vector<48x1xf32>
    %144 = arith.addf %142, %143 : vector<48x1xf32>
    %145 = math.rsqrt %144 : vector<48x1xf32>
    %146 = vector.broadcast %145 : vector<48x1xf32> to vector<48x32xf32>
    %147 = arith.mulf %137, %146 : vector<48x32xf32>
    %148 = vector.broadcast %129 : vector<1x32xf32> to vector<48x32xf32>
    %149 = arith.mulf %147, %148 : vector<48x32xf32>
    %150 = vector.broadcast %131 : vector<1x32xf32> to vector<48x32xf32>
    %151 = arith.addf %149, %150 : vector<48x32xf32>
    %c0_130 = arith.constant 0 : index
    %c0_131 = arith.constant 0 : index
    %c0_132 = arith.constant 0 : index
    %152 = vector.load %arg8[%c0_130, %c0_131, %c0_132] : memref<2x32x64xf32, #tpu.memory_space<vmem>>, vector<1x32x64xf32>
    %153 = vector.shape_cast %152 : vector<1x32x64xf32> to vector<32x64xf32>
    %cst_133 = arith.constant dense<0.000000e+00> : vector<48x64xf32>
    %154 = tpu.matmul %151, %153, %cst_133 {dimension_numbers = #tpu.dot_dimension_numbers<[1], [0], [0], [1], [0, 0, 1, 1], [], []>} : vector<48x32xf32>, vector<32x64xf32>, vector<48x64xf32> -> vector<48x64xf32>
    %c0_134 = arith.constant 0 : index
    %c0_135 = arith.constant 0 : index
    %c0_136 = arith.constant 0 : index
    %155 = vector.load %arg9[%c0_134, %c0_135, %c0_136] : memref<2x1x64xf32, #tpu.memory_space<vmem>>, vector<1x1x64xf32>
    %156 = vector.shape_cast %155 : vector<1x1x64xf32> to vector<1x64xf32>
    %157 = vector.broadcast %156 : vector<1x64xf32> to vector<48x64xf32>
    %158 = arith.addf %154, %157 : vector<48x64xf32>
    %cst_137 = arith.constant 0.000000e+00 : f32
    %159 = vector.broadcast %cst_137 : f32 to vector<48x64xf32>
    %160 = arith.maximumf %158, %159 : vector<48x64xf32>
    %c0_138 = arith.constant 0 : index
    %c0_139 = arith.constant 0 : index
    %c0_140 = arith.constant 0 : index
    %161 = vector.load %arg10[%c0_138, %c0_139, %c0_140] : memref<2x64x32xf32, #tpu.memory_space<vmem>>, vector<1x64x32xf32>
    %162 = vector.shape_cast %161 : vector<1x64x32xf32> to vector<64x32xf32>
    %cst_141 = arith.constant dense<0.000000e+00> : vector<48x32xf32>
    %163 = tpu.matmul %160, %162, %cst_141 {dimension_numbers = #tpu.dot_dimension_numbers<[1], [0], [0], [1], [0, 0, 1, 1], [], []>} : vector<48x64xf32>, vector<64x32xf32>, vector<48x32xf32> -> vector<48x32xf32>
    %c0_142 = arith.constant 0 : index
    %c0_143 = arith.constant 0 : index
    %c0_144 = arith.constant 0 : index
    %164 = vector.load %arg11[%c0_142, %c0_143, %c0_144] : memref<2x1x32xf32, #tpu.memory_space<vmem>>, vector<1x1x32xf32>
    %165 = vector.shape_cast %164 : vector<1x1x32xf32> to vector<1x32xf32>
    %166 = vector.broadcast %165 : vector<1x32xf32> to vector<48x32xf32>
    %167 = arith.addf %163, %166 : vector<48x32xf32>
    %168 = arith.addf %151, %167 : vector<48x32xf32>
    %c0_145 = arith.constant 0 : index
    %c0_146 = arith.constant 0 : index
    %c0_147 = arith.constant 0 : index
    %169 = vector.load %arg14[%c0_145, %c0_146, %c0_147] : memref<2x1x32xf32, #tpu.memory_space<vmem>>, vector<1x1x32xf32>
    %170 = vector.shape_cast %169 : vector<1x1x32xf32> to vector<1x32xf32>
    %c0_148 = arith.constant 0 : index
    %c0_149 = arith.constant 0 : index
    %c0_150 = arith.constant 0 : index
    %171 = vector.load %arg15[%c0_148, %c0_149, %c0_150] : memref<2x1x32xf32, #tpu.memory_space<vmem>>, vector<1x1x32xf32>
    %172 = vector.shape_cast %171 : vector<1x1x32xf32> to vector<1x32xf32>
    %cst_151 = arith.constant dense<0.000000e+00> : vector<48xf32>
    %173 = vector.multi_reduction <add>, %168, %cst_151 [1] : vector<48x32xf32> to vector<48xf32>
    %174 = vector.shape_cast %173 : vector<48xf32> to vector<48x1xf32>
    %cst_152 = arith.constant 3.200000e+01 : f32
    %175 = vector.broadcast %cst_152 : f32 to vector<48x1xf32>
    %176 = arith.divf %174, %175 : vector<48x1xf32>
    %177 = vector.broadcast %176 : vector<48x1xf32> to vector<48x32xf32>
    %178 = arith.subf %168, %177 : vector<48x32xf32>
    %179 = arith.mulf %178, %178 : vector<48x32xf32>
    %cst_153 = arith.constant dense<0.000000e+00> : vector<48xf32>
    %180 = vector.multi_reduction <add>, %179, %cst_153 [1] : vector<48x32xf32> to vector<48xf32>
    %181 = vector.shape_cast %180 : vector<48xf32> to vector<48x1xf32>
    %cst_154 = arith.constant 3.200000e+01 : f32
    %182 = vector.broadcast %cst_154 : f32 to vector<48x1xf32>
    %183 = arith.divf %181, %182 : vector<48x1xf32>
    %cst_155 = arith.constant 9.99999974E-6 : f32
    %184 = vector.broadcast %cst_155 : f32 to vector<48x1xf32>
    %185 = arith.addf %183, %184 : vector<48x1xf32>
    %186 = math.rsqrt %185 : vector<48x1xf32>
    %187 = vector.broadcast %186 : vector<48x1xf32> to vector<48x32xf32>
    %188 = arith.mulf %178, %187 : vector<48x32xf32>
    %189 = vector.broadcast %170 : vector<1x32xf32> to vector<48x32xf32>
    %190 = arith.mulf %188, %189 : vector<48x32xf32>
    %191 = vector.broadcast %172 : vector<1x32xf32> to vector<48x32xf32>
    %192 = arith.addf %190, %191 : vector<48x32xf32>
    %c1_156 = arith.constant 1 : index
    %c0_157 = arith.constant 0 : index
    %c0_158 = arith.constant 0 : index
    %193 = vector.load %arg4[%c1_156, %c0_157, %c0_158] : memref<2x32x96xf32, #tpu.memory_space<vmem>>, vector<1x32x96xf32>
    %194 = vector.shape_cast %193 : vector<1x32x96xf32> to vector<32x96xf32>
    %cst_159 = arith.constant dense<0.000000e+00> : vector<48x96xf32>
    %195 = tpu.matmul %192, %194, %cst_159 {dimension_numbers = #tpu.dot_dimension_numbers<[1], [0], [0], [1], [0, 0, 1, 1], [], []>} : vector<48x32xf32>, vector<32x96xf32>, vector<48x96xf32> -> vector<48x96xf32>
    %c1_160 = arith.constant 1 : index
    %c0_161 = arith.constant 0 : index
    %c0_162 = arith.constant 0 : index
    %196 = vector.load %arg5[%c1_160, %c0_161, %c0_162] : memref<2x1x96xf32, #tpu.memory_space<vmem>>, vector<1x1x96xf32>
    %197 = vector.shape_cast %196 : vector<1x1x96xf32> to vector<1x96xf32>
    %198 = vector.broadcast %197 : vector<1x96xf32> to vector<48x96xf32>
    %199 = arith.addf %195, %198 : vector<48x96xf32>
    %200 = vector.extract_strided_slice %199 {offsets = [0, 0], sizes = [48, 8], strides = [1, 1]} : vector<48x96xf32> to vector<48x8xf32>
    %201 = vector.extract_strided_slice %199 {offsets = [0, 32], sizes = [48, 8], strides = [1, 1]} : vector<48x96xf32> to vector<48x8xf32>
    %cst_163 = arith.constant dense<0.000000e+00> : vector<48x48xf32>
    %202 = tpu.matmul %200, %201, %cst_163 {dimension_numbers = #tpu.dot_dimension_numbers<[1], [1], [0], [0], [0, 0, 1, 0], [], []>} : vector<48x8xf32>, vector<48x8xf32>, vector<48x48xf32> -> vector<48x48xf32>
    %203 = arith.addf %202, %73 : vector<48x48xf32>
    %204 = vector.extract_strided_slice %199 {offsets = [0, 8], sizes = [48, 8], strides = [1, 1]} : vector<48x96xf32> to vector<48x8xf32>
    %205 = vector.extract_strided_slice %199 {offsets = [0, 40], sizes = [48, 8], strides = [1, 1]} : vector<48x96xf32> to vector<48x8xf32>
    %cst_164 = arith.constant dense<0.000000e+00> : vector<48x48xf32>
    %206 = tpu.matmul %204, %205, %cst_164 {dimension_numbers = #tpu.dot_dimension_numbers<[1], [1], [0], [0], [0, 0, 1, 0], [], []>} : vector<48x8xf32>, vector<48x8xf32>, vector<48x48xf32> -> vector<48x48xf32>
    %207 = arith.addf %206, %73 : vector<48x48xf32>
    %208 = vector.extract_strided_slice %199 {offsets = [0, 16], sizes = [48, 8], strides = [1, 1]} : vector<48x96xf32> to vector<48x8xf32>
    %209 = vector.extract_strided_slice %199 {offsets = [0, 48], sizes = [48, 8], strides = [1, 1]} : vector<48x96xf32> to vector<48x8xf32>
    %cst_165 = arith.constant dense<0.000000e+00> : vector<48x48xf32>
    %210 = tpu.matmul %208, %209, %cst_165 {dimension_numbers = #tpu.dot_dimension_numbers<[1], [1], [0], [0], [0, 0, 1, 0], [], []>} : vector<48x8xf32>, vector<48x8xf32>, vector<48x48xf32> -> vector<48x48xf32>
    %211 = arith.addf %210, %73 : vector<48x48xf32>
    %212 = vector.extract_strided_slice %199 {offsets = [0, 24], sizes = [48, 8], strides = [1, 1]} : vector<48x96xf32> to vector<48x8xf32>
    %213 = vector.extract_strided_slice %199 {offsets = [0, 56], sizes = [48, 8], strides = [1, 1]} : vector<48x96xf32> to vector<48x8xf32>
    %cst_166 = arith.constant dense<0.000000e+00> : vector<48x48xf32>
    %214 = tpu.matmul %212, %213, %cst_166 {dimension_numbers = #tpu.dot_dimension_numbers<[1], [1], [0], [0], [0, 0, 1, 0], [], []>} : vector<48x8xf32>, vector<48x8xf32>, vector<48x48xf32> -> vector<48x48xf32>
    %215 = arith.addf %214, %73 : vector<48x48xf32>
    %216 = tpu.concatenate %203, %207, %211, %215 in 0 : vector<48x48xf32>, vector<48x48xf32>, vector<48x48xf32>, vector<48x48xf32> -> vector<192x48xf32>
    %cst_167 = arith.constant dense<0xFF800000> : vector<192xf32>
    %217 = vector.multi_reduction <maximumf>, %216, %cst_167 [1] : vector<192x48xf32> to vector<192xf32>
    %218 = vector.shape_cast %217 : vector<192xf32> to vector<192x1xf32>
    %219 = vector.broadcast %218 : vector<192x1xf32> to vector<192x48xf32>
    %220 = arith.subf %216, %219 : vector<192x48xf32>
    %221 = math.exp %220 : vector<192x48xf32>
    %cst_168 = arith.constant dense<0.000000e+00> : vector<192xf32>
    %222 = vector.multi_reduction <add>, %221, %cst_168 [1] : vector<192x48xf32> to vector<192xf32>
    %223 = vector.shape_cast %222 : vector<192xf32> to vector<192x1xf32>
    %224 = vector.broadcast %223 : vector<192x1xf32> to vector<192x48xf32>
    %225 = arith.divf %221, %224 : vector<192x48xf32>
    %226 = vector.extract_strided_slice %225 {offsets = [0, 0], sizes = [48, 48], strides = [1, 1]} : vector<192x48xf32> to vector<48x48xf32>
    %227 = vector.extract_strided_slice %199 {offsets = [0, 64], sizes = [48, 8], strides = [1, 1]} : vector<48x96xf32> to vector<48x8xf32>
    %cst_169 = arith.constant dense<0.000000e+00> : vector<48x8xf32>
    %228 = tpu.matmul %226, %227, %cst_169 {dimension_numbers = #tpu.dot_dimension_numbers<[1], [0], [0], [1], [0, 0, 1, 1], [], []>} : vector<48x48xf32>, vector<48x8xf32>, vector<48x8xf32> -> vector<48x8xf32>
    %229 = vector.extract_strided_slice %225 {offsets = [48, 0], sizes = [48, 48], strides = [1, 1]} : vector<192x48xf32> to vector<48x48xf32>
    %230 = vector.extract_strided_slice %199 {offsets = [0, 72], sizes = [48, 8], strides = [1, 1]} : vector<48x96xf32> to vector<48x8xf32>
    %cst_170 = arith.constant dense<0.000000e+00> : vector<48x8xf32>
    %231 = tpu.matmul %229, %230, %cst_170 {dimension_numbers = #tpu.dot_dimension_numbers<[1], [0], [0], [1], [0, 0, 1, 1], [], []>} : vector<48x48xf32>, vector<48x8xf32>, vector<48x8xf32> -> vector<48x8xf32>
    %232 = vector.extract_strided_slice %225 {offsets = [96, 0], sizes = [48, 48], strides = [1, 1]} : vector<192x48xf32> to vector<48x48xf32>
    %233 = vector.extract_strided_slice %199 {offsets = [0, 80], sizes = [48, 8], strides = [1, 1]} : vector<48x96xf32> to vector<48x8xf32>
    %cst_171 = arith.constant dense<0.000000e+00> : vector<48x8xf32>
    %234 = tpu.matmul %232, %233, %cst_171 {dimension_numbers = #tpu.dot_dimension_numbers<[1], [0], [0], [1], [0, 0, 1, 1], [], []>} : vector<48x48xf32>, vector<48x8xf32>, vector<48x8xf32> -> vector<48x8xf32>
    %235 = vector.extract_strided_slice %225 {offsets = [144, 0], sizes = [48, 48], strides = [1, 1]} : vector<192x48xf32> to vector<48x48xf32>
    %236 = vector.extract_strided_slice %199 {offsets = [0, 88], sizes = [48, 8], strides = [1, 1]} : vector<48x96xf32> to vector<48x8xf32>
    %cst_172 = arith.constant dense<0.000000e+00> : vector<48x8xf32>
    %237 = tpu.matmul %235, %236, %cst_172 {dimension_numbers = #tpu.dot_dimension_numbers<[1], [0], [0], [1], [0, 0, 1, 1], [], []>} : vector<48x48xf32>, vector<48x8xf32>, vector<48x8xf32> -> vector<48x8xf32>
    %238 = tpu.concatenate %228, %231, %234, %237 in 1 : vector<48x8xf32>, vector<48x8xf32>, vector<48x8xf32>, vector<48x8xf32> -> vector<48x32xf32>
    %c1_173 = arith.constant 1 : index
    %c0_174 = arith.constant 0 : index
    %c0_175 = arith.constant 0 : index
    %239 = vector.load %arg6[%c1_173, %c0_174, %c0_175] : memref<2x32x32xf32, #tpu.memory_space<vmem>>, vector<1x32x32xf32>
    %240 = vector.shape_cast %239 : vector<1x32x32xf32> to vector<32x32xf32>
    %cst_176 = arith.constant dense<0.000000e+00> : vector<48x32xf32>
    %241 = tpu.matmul %238, %240, %cst_176 {dimension_numbers = #tpu.dot_dimension_numbers<[1], [0], [0], [1], [0, 0, 1, 1], [], []>} : vector<48x32xf32>, vector<32x32xf32>, vector<48x32xf32> -> vector<48x32xf32>
    %c1_177 = arith.constant 1 : index
    %c0_178 = arith.constant 0 : index
    %c0_179 = arith.constant 0 : index
    %242 = vector.load %arg7[%c1_177, %c0_178, %c0_179] : memref<2x1x32xf32, #tpu.memory_space<vmem>>, vector<1x1x32xf32>
    %243 = vector.shape_cast %242 : vector<1x1x32xf32> to vector<1x32xf32>
    %244 = vector.broadcast %243 : vector<1x32xf32> to vector<48x32xf32>
    %245 = arith.addf %241, %244 : vector<48x32xf32>
    %246 = arith.addf %192, %245 : vector<48x32xf32>
    %c1_180 = arith.constant 1 : index
    %c0_181 = arith.constant 0 : index
    %c0_182 = arith.constant 0 : index
    %247 = vector.load %arg12[%c1_180, %c0_181, %c0_182] : memref<2x1x32xf32, #tpu.memory_space<vmem>>, vector<1x1x32xf32>
    %248 = vector.shape_cast %247 : vector<1x1x32xf32> to vector<1x32xf32>
    %c1_183 = arith.constant 1 : index
    %c0_184 = arith.constant 0 : index
    %c0_185 = arith.constant 0 : index
    %249 = vector.load %arg13[%c1_183, %c0_184, %c0_185] : memref<2x1x32xf32, #tpu.memory_space<vmem>>, vector<1x1x32xf32>
    %250 = vector.shape_cast %249 : vector<1x1x32xf32> to vector<1x32xf32>
    %cst_186 = arith.constant dense<0.000000e+00> : vector<48xf32>
    %251 = vector.multi_reduction <add>, %246, %cst_186 [1] : vector<48x32xf32> to vector<48xf32>
    %252 = vector.shape_cast %251 : vector<48xf32> to vector<48x1xf32>
    %cst_187 = arith.constant 3.200000e+01 : f32
    %253 = vector.broadcast %cst_187 : f32 to vector<48x1xf32>
    %254 = arith.divf %252, %253 : vector<48x1xf32>
    %255 = vector.broadcast %254 : vector<48x1xf32> to vector<48x32xf32>
    %256 = arith.subf %246, %255 : vector<48x32xf32>
    %257 = arith.mulf %256, %256 : vector<48x32xf32>
    %cst_188 = arith.constant dense<0.000000e+00> : vector<48xf32>
    %258 = vector.multi_reduction <add>, %257, %cst_188 [1] : vector<48x32xf32> to vector<48xf32>
    %259 = vector.shape_cast %258 : vector<48xf32> to vector<48x1xf32>
    %cst_189 = arith.constant 3.200000e+01 : f32
    %260 = vector.broadcast %cst_189 : f32 to vector<48x1xf32>
    %261 = arith.divf %259, %260 : vector<48x1xf32>
    %cst_190 = arith.constant 9.99999974E-6 : f32
    %262 = vector.broadcast %cst_190 : f32 to vector<48x1xf32>
    %263 = arith.addf %261, %262 : vector<48x1xf32>
    %264 = math.rsqrt %263 : vector<48x1xf32>
    %265 = vector.broadcast %264 : vector<48x1xf32> to vector<48x32xf32>
    %266 = arith.mulf %256, %265 : vector<48x32xf32>
    %267 = vector.broadcast %248 : vector<1x32xf32> to vector<48x32xf32>
    %268 = arith.mulf %266, %267 : vector<48x32xf32>
    %269 = vector.broadcast %250 : vector<1x32xf32> to vector<48x32xf32>
    %270 = arith.addf %268, %269 : vector<48x32xf32>
    %c1_191 = arith.constant 1 : index
    %c0_192 = arith.constant 0 : index
    %c0_193 = arith.constant 0 : index
    %271 = vector.load %arg8[%c1_191, %c0_192, %c0_193] : memref<2x32x64xf32, #tpu.memory_space<vmem>>, vector<1x32x64xf32>
    %272 = vector.shape_cast %271 : vector<1x32x64xf32> to vector<32x64xf32>
    %cst_194 = arith.constant dense<0.000000e+00> : vector<48x64xf32>
    %273 = tpu.matmul %270, %272, %cst_194 {dimension_numbers = #tpu.dot_dimension_numbers<[1], [0], [0], [1], [0, 0, 1, 1], [], []>} : vector<48x32xf32>, vector<32x64xf32>, vector<48x64xf32> -> vector<48x64xf32>
    %c1_195 = arith.constant 1 : index
    %c0_196 = arith.constant 0 : index
    %c0_197 = arith.constant 0 : index
    %274 = vector.load %arg9[%c1_195, %c0_196, %c0_197] : memref<2x1x64xf32, #tpu.memory_space<vmem>>, vector<1x1x64xf32>
    %275 = vector.shape_cast %274 : vector<1x1x64xf32> to vector<1x64xf32>
    %276 = vector.broadcast %275 : vector<1x64xf32> to vector<48x64xf32>
    %277 = arith.addf %273, %276 : vector<48x64xf32>
    %cst_198 = arith.constant 0.000000e+00 : f32
    %278 = vector.broadcast %cst_198 : f32 to vector<48x64xf32>
    %279 = arith.maximumf %277, %278 : vector<48x64xf32>
    %c1_199 = arith.constant 1 : index
    %c0_200 = arith.constant 0 : index
    %c0_201 = arith.constant 0 : index
    %280 = vector.load %arg10[%c1_199, %c0_200, %c0_201] : memref<2x64x32xf32, #tpu.memory_space<vmem>>, vector<1x64x32xf32>
    %281 = vector.shape_cast %280 : vector<1x64x32xf32> to vector<64x32xf32>
    %cst_202 = arith.constant dense<0.000000e+00> : vector<48x32xf32>
    %282 = tpu.matmul %279, %281, %cst_202 {dimension_numbers = #tpu.dot_dimension_numbers<[1], [0], [0], [1], [0, 0, 1, 1], [], []>} : vector<48x64xf32>, vector<64x32xf32>, vector<48x32xf32> -> vector<48x32xf32>
    %c1_203 = arith.constant 1 : index
    %c0_204 = arith.constant 0 : index
    %c0_205 = arith.constant 0 : index
    %283 = vector.load %arg11[%c1_203, %c0_204, %c0_205] : memref<2x1x32xf32, #tpu.memory_space<vmem>>, vector<1x1x32xf32>
    %284 = vector.shape_cast %283 : vector<1x1x32xf32> to vector<1x32xf32>
    %285 = vector.broadcast %284 : vector<1x32xf32> to vector<48x32xf32>
    %286 = arith.addf %282, %285 : vector<48x32xf32>
    %287 = arith.addf %270, %286 : vector<48x32xf32>
    %c1_206 = arith.constant 1 : index
    %c0_207 = arith.constant 0 : index
    %c0_208 = arith.constant 0 : index
    %288 = vector.load %arg14[%c1_206, %c0_207, %c0_208] : memref<2x1x32xf32, #tpu.memory_space<vmem>>, vector<1x1x32xf32>
    %289 = vector.shape_cast %288 : vector<1x1x32xf32> to vector<1x32xf32>
    %c1_209 = arith.constant 1 : index
    %c0_210 = arith.constant 0 : index
    %c0_211 = arith.constant 0 : index
    %290 = vector.load %arg15[%c1_209, %c0_210, %c0_211] : memref<2x1x32xf32, #tpu.memory_space<vmem>>, vector<1x1x32xf32>
    %291 = vector.shape_cast %290 : vector<1x1x32xf32> to vector<1x32xf32>
    %cst_212 = arith.constant dense<0.000000e+00> : vector<48xf32>
    %292 = vector.multi_reduction <add>, %287, %cst_212 [1] : vector<48x32xf32> to vector<48xf32>
    %293 = vector.shape_cast %292 : vector<48xf32> to vector<48x1xf32>
    %cst_213 = arith.constant 3.200000e+01 : f32
    %294 = vector.broadcast %cst_213 : f32 to vector<48x1xf32>
    %295 = arith.divf %293, %294 : vector<48x1xf32>
    %296 = vector.broadcast %295 : vector<48x1xf32> to vector<48x32xf32>
    %297 = arith.subf %287, %296 : vector<48x32xf32>
    %298 = arith.mulf %297, %297 : vector<48x32xf32>
    %cst_214 = arith.constant dense<0.000000e+00> : vector<48xf32>
    %299 = vector.multi_reduction <add>, %298, %cst_214 [1] : vector<48x32xf32> to vector<48xf32>
    %300 = vector.shape_cast %299 : vector<48xf32> to vector<48x1xf32>
    %cst_215 = arith.constant 3.200000e+01 : f32
    %301 = vector.broadcast %cst_215 : f32 to vector<48x1xf32>
    %302 = arith.divf %300, %301 : vector<48x1xf32>
    %cst_216 = arith.constant 9.99999974E-6 : f32
    %303 = vector.broadcast %cst_216 : f32 to vector<48x1xf32>
    %304 = arith.addf %302, %303 : vector<48x1xf32>
    %305 = math.rsqrt %304 : vector<48x1xf32>
    %306 = vector.broadcast %305 : vector<48x1xf32> to vector<48x32xf32>
    %307 = arith.mulf %297, %306 : vector<48x32xf32>
    %308 = vector.broadcast %289 : vector<1x32xf32> to vector<48x32xf32>
    %309 = arith.mulf %307, %308 : vector<48x32xf32>
    %310 = vector.broadcast %291 : vector<1x32xf32> to vector<48x32xf32>
    %311 = arith.addf %309, %310 : vector<48x32xf32>
    %c0_217 = arith.constant 0 : index
    %c0_218 = arith.constant 0 : index
    %312 = vector.load %arg16[%c0_217, %c0_218] : memref<1x32xf32, #tpu.memory_space<vmem>>, vector<1x32xf32>
    %c0_219 = arith.constant 0 : index
    %c0_220 = arith.constant 0 : index
    %313 = vector.load %arg17[%c0_219, %c0_220] : memref<1x32xf32, #tpu.memory_space<vmem>>, vector<1x32xf32>
    %cst_221 = arith.constant dense<0.000000e+00> : vector<48xf32>
    %314 = vector.multi_reduction <add>, %311, %cst_221 [1] : vector<48x32xf32> to vector<48xf32>
    %315 = vector.shape_cast %314 : vector<48xf32> to vector<48x1xf32>
    %cst_222 = arith.constant 3.200000e+01 : f32
    %316 = vector.broadcast %cst_222 : f32 to vector<48x1xf32>
    %317 = arith.divf %315, %316 : vector<48x1xf32>
    %318 = vector.broadcast %317 : vector<48x1xf32> to vector<48x32xf32>
    %319 = arith.subf %311, %318 : vector<48x32xf32>
    %320 = arith.mulf %319, %319 : vector<48x32xf32>
    %cst_223 = arith.constant dense<0.000000e+00> : vector<48xf32>
    %321 = vector.multi_reduction <add>, %320, %cst_223 [1] : vector<48x32xf32> to vector<48xf32>
    %322 = vector.shape_cast %321 : vector<48xf32> to vector<48x1xf32>
    %cst_224 = arith.constant 3.200000e+01 : f32
    %323 = vector.broadcast %cst_224 : f32 to vector<48x1xf32>
    %324 = arith.divf %322, %323 : vector<48x1xf32>
    %cst_225 = arith.constant 9.99999974E-6 : f32
    %325 = vector.broadcast %cst_225 : f32 to vector<48x1xf32>
    %326 = arith.addf %324, %325 : vector<48x1xf32>
    %327 = math.rsqrt %326 : vector<48x1xf32>
    %328 = vector.broadcast %327 : vector<48x1xf32> to vector<48x32xf32>
    %329 = arith.mulf %319, %328 : vector<48x32xf32>
    %330 = vector.broadcast %312 : vector<1x32xf32> to vector<48x32xf32>
    %331 = arith.mulf %329, %330 : vector<48x32xf32>
    %332 = vector.broadcast %313 : vector<1x32xf32> to vector<48x32xf32>
    %333 = arith.addf %331, %332 : vector<48x32xf32>
    %c0_226 = arith.constant 0 : index
    %c0_227 = arith.constant 0 : index
    %334 = vector.load %arg18[%c0_226, %c0_227] : memref<48x32xf32, #tpu.memory_space<vmem>>, vector<48x32xf32>
    tpu.vector_store %arg18[%c0_226, %c0_227], %333 {strides = array<i32>} : memref<48x32xf32, #tpu.memory_space<vmem>>, vector<48x32xf32>,
    return
  }
}

</mosaic_0001>

<llo_original>
// kernel: entity_encoder_forward.1
$region0: #{entity_encoder_forward.1}
  #allocation0 [shape = 'u32[]', space=smem, size = 0x4, offset = 0x4, fixed_abs, tag = 'smem constant byte address 0x4 - core index']
  #allocation1 [shape = 'u32[144,128]{1,0:T(1,128)}', space=vmem, size = 0x12000, scoped, tag = 'internal scratch']
  #allocation2 [shape = 'f32[48,32]{1,0:T(8,128)}', space=vmem, size = 0x6000, scoped, tag = 'scratch operand']
  %s0 = inlined_call_operand.vmem [shape: f32[8,2,32], index: 0, kind: input, shape index: {}]
  %s1 = inlined_call_operand.vmem [shape: f32[8,2,32], index: 1, kind: input, shape index: {}]
  %s2 = inlined_call_operand.hbm [shape: f32[8,2,32], index: 2, kind: input, shape index: {}]
  %s3 = inlined_call_operand.vmem [shape: f32[48,48], index: 3, kind: input, shape index: {}]
  %s4 = inlined_call_operand.vmem [shape: f32[2,32,96], index: 4, kind: input, shape index: {}]
  %s5 = inlined_call_operand.vmem [shape: f32[2,1,96], index: 5, kind: input, shape index: {}]
  %s6 = inlined_call_operand.vmem [shape: f32[2,32,32], index: 6, kind: input, shape index: {}]
  %s7 = inlined_call_operand.vmem [shape: f32[2,1,32], index: 7, kind: input, shape index: {}]
  %s8 = inlined_call_operand.vmem [shape: f32[2,32,64], index: 8, kind: input, shape index: {}]
  %s9 = inlined_call_operand.vmem [shape: f32[2,1,64], index: 9, kind: input, shape index: {}]
  %s10 = inlined_call_operand.vmem [shape: f32[2,64,32], index: 10, kind: input, shape index: {}]
  %s11 = inlined_call_operand.vmem [shape: f32[2,1,32], index: 11, kind: input, shape index: {}]
  %s12 = inlined_call_operand.vmem [shape: f32[2,1,32], index: 12, kind: input, shape index: {}]
  %s13 = inlined_call_operand.hbm [shape: f32[2,1,32], index: 13, kind: input, shape index: {}]
  %s14 = inlined_call_operand.hbm [shape: f32[2,1,32], index: 14, kind: input, shape index: {}]
  %s15 = inlined_call_operand.hbm [shape: f32[2,1,32], index: 15, kind: input, shape index: {}]
  %s16 = inlined_call_operand.hbm [shape: f32[1,32], index: 16, kind: input, shape index: {}]
  %s17 = inlined_call_operand.hbm [shape: f32[1,32], index: 17, kind: input, shape index: {}]
  %s18 = inlined_call_operand.vmem [shape: f32[48,32], index: 18, kind: output, shape index: {}]
  %s19 = sld [smem:[#allocation0]]
  $region106: #{entity_encoder_forward.1} parent=0
    _
  %s21 = ssub.s32 1, %s19
  %s22 = scalar_select 0, %s21, %s19
  $region1: #{entity_encoder_forward.1} parent=0
    #allocation3 [shape = 'u8[8192]{0}', space=vmem, size = 0x2000, scoped, tag = 'input window, operand 2, single buffered']
    #allocation4 [shape = 's32[1]{0}', space=sflag, size = 0x4, scoped, tag = 'scoped memory for entity_encoder_forward.1']
    #allocation5 [shape = 'u8[1024]{0}', space=vmem, size = 0x400, scoped, tag = 'input window, operand 13, single buffered']
    #allocation6 [shape = 's32[1]{0}', space=sflag, size = 0x4, scoped, tag = 'scoped memory for entity_encoder_forward.1']
    #allocation7 [shape = 'u8[1024]{0}', space=vmem, size = 0x400, scoped, tag = 'input window, operand 14, single buffered']
    #allocation8 [shape = 'u8[1024]{0}', space=vmem, size = 0x400, scoped, tag = 'input window, operand 15, single buffered']
    #allocation9 [shape = 's32[1]{0}', space=sflag, size = 0x4, scoped, tag = 'scoped memory for entity_encoder_forward.1']
    #allocation10 [shape = 'u8[512]{0}', space=vmem, size = 0x400, scoped, tag = 'input window, operand 16, single buffered']
    #allocation11 [shape = 'u8[512]{0}', space=vmem, size = 0x400, scoped, tag = 'input window, operand 17, single buffered']
    #allocation12 [shape = 's32[1]{0}', space=sflag, size = 0x4, scoped, tag = 'scoped memory for entity_encoder_forward.1']
    %23 = vsyncpa [#allocation4], 0
    %24 = vsyncpa [#allocation6], 0
    %25 = vsyncpa [#allocation9], 0
    %26 = vsyncpa [#allocation12], 0
    // Predicated region
    $region2: #{entity_encoder_forward.1} parent=1 // pred_check
      _
    $region3: #{entity_encoder_forward.1} parent=1 // pred_check_branch
      %28 = sbr.rel (0) target = $region5
    $region4: #{entity_encoder_forward.1} parent=1 // pred_region
      _
    $region5: #{entity_encoder_forward.1} parent=1 // pred_fallthru
      _
    // Predicated region
    $region6: #{entity_encoder_forward.1} parent=1 // pred_check
      _
    $region7: #{entity_encoder_forward.1} parent=1 // pred_check_branch
      %30 = sbr.rel (0) target = $region9
    $region8: #{entity_encoder_forward.1} parent=1 // pred_region
      _
    $region9: #{entity_encoder_forward.1} parent=1 // pred_fallthru
      _
    // Predicated region
    $region10: #{entity_encoder_forward.1} parent=1 // pred_check
      _
    $region11: #{entity_encoder_forward.1} parent=1 // pred_check_branch
      %32 = sbr.rel (0) target = $region13
    $region12: #{entity_encoder_forward.1} parent=1 // pred_region
      %s34 = ssub.s32 256, 256
      %35 = vsyncadd [#allocation4], %s34
      %s36 = sshll.u32 [#allocation3], 4
      %s37 = int_to_ptr.vmem [resolvable:$true] %s36
      %42 = dma.hbm_to_vmem [thread:$0]  %s2, 256, %s37, [#allocation4], 32, 32, 2
    $region13: #{entity_encoder_forward.1} parent=1 // pred_fallthru
      _
    // Predicated region
    $region14: #{entity_encoder_forward.1} parent=1 // pred_check
      _
    $region15: #{entity_encoder_forward.1} parent=1 // pred_check_branch
      %44 = sbr.rel (0) target = $region17
    $region16: #{entity_encoder_forward.1} parent=1 // pred_region
      _
    $region17: #{entity_encoder_forward.1} parent=1 // pred_fallthru
      _
    // Predicated region
    $region18: #{entity_encoder_forward.1} parent=1 // pred_check
      _
    $region19: #{entity_encoder_forward.1} parent=1 // pred_check_branch
      %46 = sbr.rel (0) target = $region21
    $region20: #{entity_encoder_forward.1} parent=1 // pred_region
      _
    $region21: #{entity_encoder_forward.1} parent=1 // pred_fallthru
      _
    // Predicated region
    $region22: #{entity_encoder_forward.1} parent=1 // pred_check
      _
    $region23: #{entity_encoder_forward.1} parent=1 // pred_check_branch
      %48 = sbr.rel (0) target = $region25
    $region24: #{entity_encoder_forward.1} parent=1 // pred_region
      _
    $region25: #{entity_encoder_forward.1} parent=1 // pred_fallthru
      _
    // Predicated region
    $region26: #{entity_encoder_forward.1} parent=1 // pred_check
      _
    $region27: #{entity_encoder_forward.1} parent=1 // pred_check_branch
      %50 = sbr.rel (0) target = $region29
    $region28: #{entity_encoder_forward.1} parent=1 // pred_region
      _
    $region29: #{entity_encoder_forward.1} parent=1 // pred_fallthru
      _
    // Predicated region
    $region30: #{entity_encoder_forward.1} parent=1 // pred_check
      _
    $region31: #{entity_encoder_forward.1} parent=1 // pred_check_branch
      %52 = sbr.rel (0) target = $region33
    $region32: #{entity_encoder_forward.1} parent=1 // pred_region
      _
    $region33: #{entity_encoder_forward.1} parent=1 // pred_fallthru
      _
    // Predicated region
    $region34: #{entity_encoder_forward.1} parent=1 // pred_check
      _
    $region35: #{entity_encoder_forward.1} parent=1 // pred_check_branch
      %54 = sbr.rel (0) target = $region37
    $region36: #{entity_encoder_forward.1} parent=1 // pred_region
      _
    $region37: #{entity_encoder_forward.1} parent=1 // pred_fallthru
      _
    // Predicated region
    $region38: #{entity_encoder_forward.1} parent=1 // pred_check
      _
    $region39: #{entity_encoder_forward.1} parent=1 // pred_check_branch
      %56 = sbr.rel (0) target = $region41
    $region40: #{entity_encoder_forward.1} parent=1 // pred_region
      _
    $region41: #{entity_encoder_forward.1} parent=1 // pred_fallthru
      _
    // Predicated region
    $region42: #{entity_encoder_forward.1} parent=1 // pred_check
      _
    $region43: #{entity_encoder_forward.1} parent=1 // pred_check_branch
      %58 = sbr.rel (0) target = $region45
    $region44: #{entity_encoder_forward.1} parent=1 // pred_region
      _
    $region45: #{entity_encoder_forward.1} parent=1 // pred_fallthru
      _
    // Predicated region
    $region46: #{entity_encoder_forward.1} parent=1 // pred_check
      _
    $region47: #{entity_encoder_forward.1} parent=1 // pred_check_branch
      %60 = sbr.rel (0) target = $region49
    $region48: #{entity_encoder_forward.1} parent=1 // pred_region
      _
    $region49: #{entity_encoder_forward.1} parent=1 // pred_fallthru
      _
    // Predicated region
    $region50: #{entity_encoder_forward.1} parent=1 // pred_check
      _
    $region51: #{entity_encoder_forward.1} parent=1 // pred_check_branch
      %62 = sbr.rel (0) target = $region53
    $region52: #{entity_encoder_forward.1} parent=1 // pred_region
      _
    $region53: #{entity_encoder_forward.1} parent=1 // pred_fallthru
      _
    // Predicated region
    $region54: #{entity_encoder_forward.1} parent=1 // pred_check
      _
    $region55: #{entity_encoder_forward.1} parent=1 // pred_check_branch
      %64 = sbr.rel (0) target = $region57
    $region56: #{entity_encoder_forward.1} parent=1 // pred_region
      %s66 = ssub.s32 32, 32
      %67 = vsyncadd [#allocation6], %s66
      %s68 = sshll.u32 [#allocation5], 4
      %s69 = int_to_ptr.vmem [resolvable:$true] %s68
      %74 = dma.hbm_to_vmem [thread:$0]  %s13, 32, %s69, [#allocation6], 16, 16, 1
    $region57: #{entity_encoder_forward.1} parent=1 // pred_fallthru
      _
    // Predicated region
    $region58: #{entity_encoder_forward.1} parent=1 // pred_check
      _
    $region59: #{entity_encoder_forward.1} parent=1 // pred_check_branch
      %76 = sbr.rel (0) target = $region61
    $region60: #{entity_encoder_forward.1} parent=1 // pred_region
      %s78 = ssub.s32 32, 32
      %79 = vsyncadd [#allocation6], %s78
      %s80 = sshll.u32 [#allocation7], 4
      %s81 = int_to_ptr.vmem [resolvable:$true] %s80
      %86 = dma.hbm_to_vmem [thread:$0]  %s14, 32, %s81, [#allocation6], 16, 16, 1
    $region61: #{entity_encoder_forward.1} parent=1 // pred_fallthru
      _
    // Predicated region
    $region62: #{entity_encoder_forward.1} parent=1 // pred_check
      _
    $region63: #{entity_encoder_forward.1} parent=1 // pred_check_branch
      %88 = sbr.rel (0) target = $region65
    $region64: #{entity_encoder_forward.1} parent=1 // pred_region
      %s90 = ssub.s32 32, 32
      %91 = vsyncadd [#allocation9], %s90
      %s92 = sshll.u32 [#allocation8], 4
      %s93 = int_to_ptr.vmem [resolvable:$true] %s92
      %98 = dma.hbm_to_vmem [thread:$0]  %s15, 32, %s93, [#allocation9], 16, 16, 1
    $region65: #{entity_encoder_forward.1} parent=1 // pred_fallthru
      _
    // Predicated region
    $region66: #{entity_encoder_forward.1} parent=1 // pred_check
      _
    $region67: #{entity_encoder_forward.1} parent=1 // pred_check_branch
      %100 = sbr.rel (0) target = $region69
    $region68: #{entity_encoder_forward.1} parent=1 // pred_region
      %s102 = ssub.s32 16, 16
      %103 = vsyncadd [#allocation9], %s102
      %s105 = sshll.u32 [#allocation10], 4
      %s106 = int_to_ptr.vmem [resolvable:$true] %s105
      %108 = dma.hbm_to_vmem [thread:$0]  %s16, 16, %s106, [#allocation9]
    $region69: #{entity_encoder_forward.1} parent=1 // pred_fallthru
      _
    // Predicated region
    $region70: #{entity_encoder_forward.1} parent=1 // pred_check
      _
    $region71: #{entity_encoder_forward.1} parent=1 // pred_check_branch
      %110 = sbr.rel (0) target = $region73
    $region72: #{entity_encoder_forward.1} parent=1 // pred_region
      %s112 = ssub.s32 16, 16
      %113 = vsyncadd [#allocation12], %s112
      %s115 = sshll.u32 [#allocation11], 4
      %s116 = int_to_ptr.vmem [resolvable:$true] %s115
      %118 = dma.hbm_to_vmem [thread:$0]  %s17, 16, %s116, [#allocation12]
    $region73: #{entity_encoder_forward.1} parent=1 // pred_fallthru
      _
    // Predicated region
    $region74: #{entity_encoder_forward.1} parent=1 // pred_check
      _
    $region75: #{entity_encoder_forward.1} parent=1 // pred_check_branch
      %120 = sbr.rel (0) target = $region77
    $region76: #{entity_encoder_forward.1} parent=1 // pred_region
      %121 = dma.done [#allocation4], 256
    $region77: #{entity_encoder_forward.1} parent=1 // pred_fallthru
      _
    // Predicated region
    $region78: #{entity_encoder_forward.1} parent=1 // pred_check
      _
    $region79: #{entity_encoder_forward.1} parent=1 // pred_check_branch
      %123 = sbr.rel (0) target = $region81
    $region80: #{entity_encoder_forward.1} parent=1 // pred_region
      %124 = dma.done [#allocation6], 32
    $region81: #{entity_encoder_forward.1} parent=1 // pred_fallthru
      _
    // Predicated region
    $region82: #{entity_encoder_forward.1} parent=1 // pred_check
      _
    $region83: #{entity_encoder_forward.1} parent=1 // pred_check_branch
      %126 = sbr.rel (0) target = $region85
    $region84: #{entity_encoder_forward.1} parent=1 // pred_region
      %127 = dma.done [#allocation6], 32
    $region85: #{entity_encoder_forward.1} parent=1 // pred_fallthru
      _
    // Predicated region
    $region86: #{entity_encoder_forward.1} parent=1 // pred_check
      _
    $region87: #{entity_encoder_forward.1} parent=1 // pred_check_branch
      %129 = sbr.rel (0) target = $region89
    $region88: #{entity_encoder_forward.1} parent=1 // pred_region
      %130 = dma.done [#allocation9], 32
    $region89: #{entity_encoder_forward.1} parent=1 // pred_fallthru
      _
    // Predicated region
    $region90: #{entity_encoder_forward.1} parent=1 // pred_check
      _
    $region91: #{entity_encoder_forward.1} parent=1 // pred_check_branch
      %132 = sbr.rel (0) target = $region93
    $region92: #{entity_encoder_forward.1} parent=1 // pred_region
      %133 = dma.done [#allocation9], 16
    $region93: #{entity_encoder_forward.1} parent=1 // pred_fallthru
      _
    // Predicated region
    $region94: #{entity_encoder_forward.1} parent=1 // pred_check
      _
    $region95: #{entity_encoder_forward.1} parent=1 // pred_check_branch
      %135 = sbr.rel (0) target = $region97
    $region96: #{entity_encoder_forward.1} parent=1 // pred_region
      %136 = dma.done [#allocation12], 16
    $region97: #{entity_encoder_forward.1} parent=1 // pred_fallthru
      _
    %v137 = vld [vmem:[%s0] sm:$0x3]
    %vm138 = vcmask 254976
    %139 = vst.msk [vmem:[#allocation2] sm:$0x3] %vm138, %v137
    %s140 = scalar_lea.vmem %s0, 2
    %v141 = vld [vmem:[%s140] sm:$0x3]
    %142 = vst.msk [vmem:[#allocation2 + $0x6] sm:$0x3] %vm138, %v141
    %s143 = scalar_lea.vmem %s0, 4
    %v144 = vld [vmem:[%s143] sm:$0x3]
    %145 = vst.msk [vmem:[#allocation2 + $0xc] sm:$0x3] %vm138, %v144
    %s146 = scalar_lea.vmem %s0, 6
    %v147 = vld [vmem:[%s146] sm:$0x3]
    %148 = vst.msk [vmem:[#allocation2 + $0x12] sm:$0x3] %vm138, %v147
    %s149 = scalar_lea.vmem %s0, 8
    %v150 = vld [vmem:[%s149] sm:$0x3]
    %151 = vst.msk [vmem:[#allocation2 + $0x18] sm:$0x3] %vm138, %v150
    %s152 = scalar_lea.vmem %s0, 10
    %v153 = vld [vmem:[%s152] sm:$0x3]
    %154 = vst.msk [vmem:[#allocation2 + $0x1e] sm:$0x3] %vm138, %v153
    %s155 = scalar_lea.vmem %s0, 12
    %v156 = vld [vmem:[%s155] sm:$0x3]
    %157 = vst.msk [vmem:[#allocation2 + $0x24] sm:$0x3] %vm138, %v156
    %s158 = scalar_lea.vmem %s0, 14
    %v159 = vld [vmem:[%s158] sm:$0x3]
    %160 = vst.msk [vmem:[#allocation2 + $0x2a] sm:$0x3] %vm138, %v159
    %v161 = vld [vmem:[%s1] sm:$0x3]
    %162 = vst.msk [vmem:[#allocation2 + $0x2] sm:$0x3] %vm138, %v161
    %s163 = scalar_lea.vmem %s1, 2
    %v164 = vld [vmem:[%s163] sm:$0x3]
    %165 = vst.msk [vmem:[#allocation2 + $0x8] sm:$0x3] %vm138, %v164
    %s166 = scalar_lea.vmem %s1, 4
    %v167 = vld [vmem:[%s166] sm:$0x3]
    %168 = vst.msk [vmem:[#allocation2 + $0xe] sm:$0x3] %vm138, %v167
    %s169 = scalar_lea.vmem %s1, 6
    %v170 = vld [vmem:[%s169] sm:$0x3]
    %171 = vst.msk [vmem:[#allocation2 + $0x14] sm:$0x3] %vm138, %v170
    %s172 = scalar_lea.vmem %s1, 8
    %v173 = vld [vmem:[%s172] sm:$0x3]
    %174 = vst.msk [vmem:[#allocation2 + $0x1a] sm:$0x3] %vm138, %v173
    %s175 = scalar_lea.vmem %s1, 10
    %v176 = vld [vmem:[%s175] sm:$0x3]
    %177 = vst.msk [vmem:[#allocation2 + $0x20] sm:$0x3] %vm138, %v176
    %s178 = scalar_lea.vmem %s1, 12
    %v179 = vld [vmem:[%s178] sm:$0x3]
    %180 = vst.msk [vmem:[#allocation2 + $0x26] sm:$0x3] %vm138, %v179
    %s181 = scalar_lea.vmem %s1, 14
    %v182 = vld [vmem:[%s181] sm:$0x3]
    %183 = vst.msk [vmem:[#allocation2 + $0x2c] sm:$0x3] %vm138, %v182
    %v184 = vld [vmem:[#allocation3] sm:$0x3]
    %185 = vst.msk [vmem:[#allocation2 + $0x4] sm:$0x3] %vm138, %v184
    %s186 = scalar_lea.vmem [#allocation3], 2
    %v187 = vld [vmem:[%s186] sm:$0x3]
    %188 = vst.msk [vmem:[#allocation2 + $0xa] sm:$0x3] %vm138, %v187
    %s189 = scalar_lea.vmem [#allocation3], 4
    %v190 = vld [vmem:[%s189] sm:$0x3]
    %191 = vst.msk [vmem:[#allocation2 + $0x10] sm:$0x3] %vm138, %v190
    %s192 = scalar_lea.vmem [#allocation3], 6
    %v193 = vld [vmem:[%s192] sm:$0x3]
    %194 = vst.msk [vmem:[#allocation2 + $0x16] sm:$0x3] %vm138, %v193
    %s195 = scalar_lea.vmem [#allocation3], 8
    %v196 = vld [vmem:[%s195] sm:$0x3]
    %197 = vst.msk [vmem:[#allocation2 + $0x1c] sm:$0x3] %vm138, %v196
    %s198 = scalar_lea.vmem [#allocation3], 10
    %v199 = vld [vmem:[%s198] sm:$0x3]
    %200 = vst.msk [vmem:[#allocation2 + $0x22] sm:$0x3] %vm138, %v199
    %s201 = scalar_lea.vmem [#allocation3], 12
    %v202 = vld [vmem:[%s201] sm:$0x3]
    %203 = vst.msk [vmem:[#allocation2 + $0x28] sm:$0x3] %vm138, %v202
    %s204 = scalar_lea.vmem [#allocation3], 14
    %v205 = vld [vmem:[%s204] sm:$0x3]
    %206 = vst.msk [vmem:[#allocation2 + $0x2e] sm:$0x3] %vm138, %v205
    %v207 = vld [vmem:[#allocation2] sm:$0xff]
    %v208 = vld [vmem:[#allocation2 + $0x8] sm:$0xff]
    %v209 = vld [vmem:[#allocation2 + $0x10] sm:$0xff]
    %v210 = vld [vmem:[#allocation2 + $0x18] sm:$0xff]
    %v211 = vld [vmem:[#allocation2 + $0x20] sm:$0xff]
    %v212 = vld [vmem:[#allocation2 + $0x28] sm:$0xff]
    %v213 = vld [vmem:[%s3] sm:$0xff]
    %v214 = vld [vmem:[%s3 + $0x8] sm:$0xff]
    %v215 = vld [vmem:[%s3 + $0x10] sm:$0xff]
    %v216 = vld [vmem:[%s3 + $0x18] sm:$0xff]
    %v217 = vld [vmem:[%s3 + $0x20] sm:$0xff]
    %v218 = vld [vmem:[%s3 + $0x28] sm:$0xff]
    %v219 = vld [vmem:[%s4] sm:$0xff]
    %v220 = vld [vmem:[%s4 + $0x8] sm:$0xff]
    %v221 = vld [vmem:[%s4 + $0x10] sm:$0xff]
    %v222 = vld [vmem:[%s4 + $0x18] sm:$0xff]
    %v223 = vld [vmem:[%s5] sm:$0x1]
    %v225 = vlaneseq
    %v226 = vshrl.u32 %v225, 7
    %v227 = vsub.s32 0, %v226
    %v228 = vrot.slane %v223, %v227
    %vm230 = vcmask 261120
    %v232 = vsel %vm230, %v207, 0
    %v235 = vsel %vm230, %v208, 0
    %v238 = vsel %vm230, %v209, 0
    %v241 = vsel %vm230, %v210, 0
    %v244 = vsel %vm230, %v211, 0
    %v247 = vsel %vm230, %v212, 0
    %249 = vmatprep.subr.mxu0 0.0
    %250 = vmatpush1.msra.mxu0 %v219
    %251 = vmatprep.subr.mxu0 0.0
    %252 = vmatpush1.msra.mxu0 %v220
    %253 = vmatprep.subr.mxu0 0.0
    %254 = vmatpush1.msra.mxu0 %v221
    %255 = vmatprep.subr.mxu0 0.0
    %256 = vmatpush1.msra.mxu0 %v222
    %257 = vmatprep.subr.mxu0 0.0
    %258 = vmatpush1.msra.mxu0 0.0
    %259 = vmatprep.subr.mxu0 0.0
    %260 = vmatpush1.msra.mxu0 0.0
    %261 = vmatprep.subr.mxu0 0.0
    %262 = vmatpush1.msra.mxu0 0.0
    %263 = vmatprep.subr.mxu0 0.0
    %264 = vmatpush1.msra.mxu0 0.0
    %265 = vmatprep.subr.mxu0 0.0
    %266 = vmatpush1.msra.mxu0 0.0
    %267 = vmatprep.subr.mxu0 0.0
    %268 = vmatpush1.msra.mxu0 0.0
    %269 = vmatprep.subr.mxu0 0.0
    %270 = vmatpush1.msra.mxu0 0.0
    %271 = vmatprep.subr.mxu0 0.0
    %272 = vmatpush1.msra.mxu0 0.0
    %273 = vmatprep.subr.mxu0 0.0
    %274 = vmatpush1.msra.mxu0 0.0
    %275 = vmatprep.subr.mxu0 0.0
    %276 = vmatpush1.msra.mxu0 0.0
    %277 = vmatprep.subr.mxu0 0.0
    %278 = vmatpush1.msra.mxu0 0.0
    %279 = vmatprep.subr.mxu0 0.0
    %280 = vmatpush1.msra.mxu0 0.0
    %281 = vmatprep.subr.mxu0 0.0
    %282 = vmatpush1.msra.mxu0 0.0
    %283 = vmatprep.subr.mxu0 0.0
    %284 = vmatpush1.msra.mxu0 0.0
    %285 = vmatprep.subr.mxu0 0.0
    %286 = vmatpush1.msra.mxu0 0.0
    %287 = vmatprep.subr.mxu0 0.0
    %288 = vmatpush1.msra.mxu0 0.0
    %289 = vmatprep.subr.mxu0 0.0
    %290 = vmatpush1.msra.mxu0 0.0
    %291 = vmatprep.subr.mxu0 0.0
    %292 = vmatpush1.msra.mxu0 0.0
    %293 = vmatprep.subr.mxu0 0.0
    %294 = vmatpush1.msra.mxu0 0.0
    %295 = vmatprep.subr.mxu0 0.0
    %296 = vmatpush1.msra.mxu0 0.0
    %297 = vmatprep.subr.mxu0 0.0
    %298 = vmatpush1.msra.mxu0 0.0
    %299 = vmatprep.subr.mxu0 0.0
    %300 = vmatpush1.msra.mxu0 0.0
    %301 = vmatprep.subr.mxu0 0.0
    %302 = vmatpush1.msra.mxu0 0.0
    %303 = vmatprep.subr.mxu0 0.0
    %304 = vmatpush1.msra.mxu0 0.0
    %305 = vmatprep.subr.mxu0 0.0
    %306 = vmatpush1.msra.mxu0 0.0
    %307 = vmatprep.subr.mxu0 0.0
    %308 = vmatpush1.msra.mxu0 0.0
    %309 = vmatprep.subr.mxu0 0.0
    %310 = vmatpush1.msra.mxu0 0.0
    %311 = vmatprep.subr.mxu0 0.0
    %312 = vmatpush1.msra.mxu0 0.0
    %313 = vmatprep.mubr.f32.mxu0 0.0
    %314 = vmatmul.mubr.f32.gmra.mrb[0].mxu0 %v232
    %v315 = vpop.f32.mrb[0].mxu0
    %v316 = vadd.f32 %v228, %v315
    %v317 = vpop.f32.mrb[0].mxu0
    %318 = vmatprep.mubr.f32.mxu0 0.0
    %319 = vmatmul.mubr.f32.gmra.mrb[0].mxu0 %v235
    %v320 = vpop.f32.mrb[0].mxu0
    %v321 = vadd.f32 %v228, %v320
    %v322 = vpop.f32.mrb[0].mxu0
    %323 = vmatprep.mubr.f32.mxu0 0.0
    %324 = vmatmul.mubr.f32.gmra.mrb[0].mxu0 %v238
    %v325 = vpop.f32.mrb[0].mxu0
    %v326 = vadd.f32 %v228, %v325
    %v327 = vpop.f32.mrb[0].mxu0
    %328 = vmatprep.mubr.f32.mxu0 0.0
    %329 = vmatmul.mubr.f32.gmra.mrb[0].mxu0 %v241
    %v330 = vpop.f32.mrb[0].mxu0
    %v331 = vadd.f32 %v228, %v330
    %v332 = vpop.f32.mrb[0].mxu0
    %333 = vmatprep.mubr.f32.mxu0 0.0
    %334 = vmatmul.mubr.f32.gmra.mrb[0].mxu0 %v244
    %v335 = vpop.f32.mrb[0].mxu0
    %v336 = vadd.f32 %v228, %v335
    %v337 = vpop.f32.mrb[0].mxu0
    %338 = vmatprep.mubr.f32.mxu0 0.0
    %339 = vmatmul.mubr.f32.gmra.mrb[0].mxu0 %v247
    %v340 = vpop.f32.mrb[0].mxu0
    %v341 = vadd.f32 %v228, %v340
    %v342 = vpop.f32.mrb[0].mxu0
    %343 = vdwg.mxu0
    %350 = vrot.lane.b32.xlu0 %v316, 96
    %v351 = vpop.permute.xlu0 %350
    %352 = vrot.lane.b32.xlu0 %v321, 96
    %v353 = vpop.permute.xlu0 %352
    %354 = vrot.lane.b32.xlu0 %v326, 96
    %v355 = vpop.permute.xlu0 %354
    %356 = vrot.lane.b32.xlu0 %v331, 96
    %v357 = vpop.permute.xlu0 %356
    %358 = vrot.lane.b32.xlu0 %v336, 96
    %v359 = vpop.permute.xlu0 %358
    %360 = vrot.lane.b32.xlu0 %v341, 96
    %v361 = vpop.permute.xlu0 %360
    %vm362 = vcmask 64512
    %v363 = vsel %vm362, %v316, 0
    %v365 = vsel %vm362, %v321, 0
    %v367 = vsel %vm362, %v326, 0
    %v369 = vsel %vm362, %v331, 0
    %v371 = vsel %vm362, %v336, 0
    %v373 = vsel %vm362, %v341, 0
    %v375 = vsel %vm362, %v351, 0
    %v377 = vsel %vm362, %v353, 0
    %v379 = vsel %vm362, %v355, 0
    %v381 = vsel %vm362, %v357, 0
    %v383 = vsel %vm362, %v359, 0
    %v385 = vsel %vm362, %v361, 0
    %387 = vmatprep.subr.mxu0 0.0
    %388 = vmatpush1.xpose.msra.mxu0 %v375
    %389 = vmatprep.subr.mxu0 0.0
    %390 = vmatpush1.xpose.msra.mxu0 %v377
    %391 = vmatprep.subr.mxu0 0.0
    %392 = vmatpush1.xpose.msra.mxu0 %v379
    %393 = vmatprep.subr.mxu0 0.0
    %394 = vmatpush1.xpose.msra.mxu0 %v381
    %395 = vmatprep.subr.mxu0 0.0
    %396 = vmatpush1.xpose.msra.mxu0 %v383
    %397 = vmatprep.subr.mxu0 0.0
    %398 = vmatpush1.xpose.msra.mxu0 %v385
    %399 = vmatprep.subr.mxu0 0.0
    %400 = vmatpush1.xpose.msra.mxu0 0.0
    %401 = vmatprep.subr.mxu0 0.0
    %402 = vmatpush1.xpose.msra.mxu0 0.0
    %403 = vmatprep.subr.mxu0 0.0
    %404 = vmatpush1.xpose.msra.mxu0 0.0
    %405 = vmatprep.subr.mxu0 0.0
    %406 = vmatpush1.xpose.msra.mxu0 0.0
    %407 = vmatprep.subr.mxu0 0.0
    %408 = vmatpush1.xpose.msra.mxu0 0.0
    %409 = vmatprep.subr.mxu0 0.0
    %410 = vmatpush1.xpose.msra.mxu0 0.0
    %411 = vmatprep.subr.mxu0 0.0
    %412 = vmatpush1.xpose.msra.mxu0 0.0
    %413 = vmatprep.subr.mxu0 0.0
    %414 = vmatpush1.xpose.msra.mxu0 0.0
    %415 = vmatprep.subr.mxu0 0.0
    %416 = vmatpush1.xpose.msra.mxu0 0.0
    %417 = vmatprep.subr.mxu0 0.0
    %418 = vmatpush1.xpose.msra.mxu0 0.0
    %419 = vmatprep.subr.mxu0 0.0
    %420 = vmatpush1.xpose.msra.mxu0 0.0
    %421 = vmatprep.subr.mxu0 0.0
    %422 = vmatpush1.xpose.msra.mxu0 0.0
    %423 = vmatprep.subr.mxu0 0.0
    %424 = vmatpush1.xpose.msra.mxu0 0.0
    %425 = vmatprep.subr.mxu0 0.0
    %426 = vmatpush1.xpose.msra.mxu0 0.0
    %427 = vmatprep.subr.mxu0 0.0
    %428 = vmatpush1.xpose.msra.mxu0 0.0
    %429 = vmatprep.subr.mxu0 0.0
    %430 = vmatpush1.xpose.msra.mxu0 0.0
    %431 = vmatprep.subr.mxu0 0.0
    %432 = vmatpush1.xpose.msra.mxu0 0.0
    %433 = vmatprep.subr.mxu0 0.0
    %434 = vmatpush1.xpose.msra.mxu0 0.0
    %435 = vmatprep.subr.mxu0 0.0
    %436 = vmatpush1.xpose.msra.mxu0 0.0
    %437 = vmatprep.subr.mxu0 0.0
    %438 = vmatpush1.xpose.msra.mxu0 0.0
    %439 = vmatprep.subr.mxu0 0.0
    %440 = vmatpush1.xpose.msra.mxu0 0.0
    %441 = vmatprep.subr.mxu0 0.0
    %442 = vmatpush1.xpose.msra.mxu0 0.0
    %443 = vmatprep.subr.mxu0 0.0
    %444 = vmatpush1.xpose.msra.mxu0 0.0
    %445 = vmatprep.subr.mxu0 0.0
    %446 = vmatpush1.xpose.msra.mxu0 0.0
    %447 = vmatprep.subr.mxu0 0.0
    %448 = vmatpush1.xpose.msra.mxu0 0.0
    %449 = vmatprep.subr.mxu0 0.0
    %450 = vmatpush1.xpose.msra.mxu0 0.0
    %451 = vmatprep.mubr.f32.mxu0 0.0
    %452 = vmatmul.mubr.f32.gmra.mrb[0].mxu0 %v363
    %v453 = vpop.f32.mrb[0].mxu0
    %v454 = vadd.f32 %v213, %v453
    %v455 = vpop.f32.mrb[0].mxu0
    %456 = vmatprep.mubr.f32.mxu0 0.0
    %457 = vmatmul.mubr.f32.gmra.mrb[0].mxu0 %v365
    %v458 = vpop.f32.mrb[0].mxu0
    %v459 = vadd.f32 %v214, %v458
    %v460 = vpop.f32.mrb[0].mxu0
    %461 = vmatprep.mubr.f32.mxu0 0.0
    %462 = vmatmul.mubr.f32.gmra.mrb[0].mxu0 %v367
    %v463 = vpop.f32.mrb[0].mxu0
    %v464 = vadd.f32 %v215, %v463
    %v465 = vpop.f32.mrb[0].mxu0
    %466 = vmatprep.mubr.f32.mxu0 0.0
    %467 = vmatmul.mubr.f32.gmra.mrb[0].mxu0 %v369
    %v468 = vpop.f32.mrb[0].mxu0
    %v469 = vadd.f32 %v216, %v468
    %v470 = vpop.f32.mrb[0].mxu0
    %471 = vmatprep.mubr.f32.mxu0 0.0
    %472 = vmatmul.mubr.f32.gmra.mrb[0].mxu0 %v371
    %v473 = vpop.f32.mrb[0].mxu0
    %v474 = vadd.f32 %v217, %v473
    %v475 = vpop.f32.mrb[0].mxu0
    %476 = vmatprep.mubr.f32.mxu0 0.0
    %477 = vmatmul.mubr.f32.gmra.mrb[0].mxu0 %v373
    %v478 = vpop.f32.mrb[0].mxu0
    %v479 = vadd.f32 %v218, %v478
    %v480 = vpop.f32.mrb[0].mxu0
    %481 = vdwg.mxu0
    %482 = vrot.lane.b32.xlu0 %v316, 120
    %v483 = vpop.permute.xlu0 %482
    %484 = vrot.lane.b32.xlu0 %v321, 120
    %v485 = vpop.permute.xlu0 %484
    %486 = vrot.lane.b32.xlu0 %v326, 120
    %v487 = vpop.permute.xlu0 %486
    %488 = vrot.lane.b32.xlu0 %v331, 120
    %v489 = vpop.permute.xlu0 %488
    %490 = vrot.lane.b32.xlu0 %v336, 120
    %v491 = vpop.permute.xlu0 %490
    %492 = vrot.lane.b32.xlu0 %v341, 120
    %v493 = vpop.permute.xlu0 %492
    %494 = vrot.lane.b32.xlu0 %v316, 88
    %v495 = vpop.permute.xlu0 %494
    %496 = vrot.lane.b32.xlu0 %v321, 88
    %v497 = vpop.permute.xlu0 %496
    %498 = vrot.lane.b32.xlu0 %v326, 88
    %v499 = vpop.permute.xlu0 %498
    %500 = vrot.lane.b32.xlu0 %v331, 88
    %v501 = vpop.permute.xlu0 %500
    %502 = vrot.lane.b32.xlu0 %v336, 88
    %v503 = vpop.permute.xlu0 %502
    %504 = vrot.lane.b32.xlu0 %v341, 88
    %v505 = vpop.permute.xlu0 %504
    %v506 = vsel %vm362, %v483, 0
    %v508 = vsel %vm362, %v485, 0
    %v510 = vsel %vm362, %v487, 0
    %v512 = vsel %vm362, %v489, 0
    %v514 = vsel %vm362, %v491, 0
    %v516 = vsel %vm362, %v493, 0
    %v518 = vsel %vm362, %v495, 0
    %v520 = vsel %vm362, %v497, 0
    %v522 = vsel %vm362, %v499, 0
    %v524 = vsel %vm362, %v501, 0
    %v526 = vsel %vm362, %v503, 0
    %v528 = vsel %vm362, %v505, 0
    %530 = vmatprep.subr.mxu0 0.0
    %531 = vmatpush1.xpose.msra.mxu0 %v518
    %532 = vmatprep.subr.mxu0 0.0
    %533 = vmatpush1.xpose.msra.mxu0 %v520
    %534 = vmatprep.subr.mxu0 0.0
    %535 = vmatpush1.xpose.msra.mxu0 %v522
    %536 = vmatprep.subr.mxu0 0.0
    %537 = vmatpush1.xpose.msra.mxu0 %v524
    %538 = vmatprep.subr.mxu0 0.0
    %539 = vmatpush1.xpose.msra.mxu0 %v526
    %540 = vmatprep.subr.mxu0 0.0
    %541 = vmatpush1.xpose.msra.mxu0 %v528
    %542 = vmatprep.subr.mxu0 0.0
    %543 = vmatpush1.xpose.msra.mxu0 0.0
    %544 = vmatprep.subr.mxu0 0.0
    %545 = vmatpush1.xpose.msra.mxu0 0.0
    %546 = vmatprep.subr.mxu0 0.0
    %547 = vmatpush1.xpose.msra.mxu0 0.0
    %548 = vmatprep.subr.mxu0 0.0
    %549 = vmatpush1.xpose.msra.mxu0 0.0
    %550 = vmatprep.subr.mxu0 0.0
    %551 = vmatpush1.xpose.msra.mxu0 0.0
    %552 = vmatprep.subr.mxu0 0.0
    %553 = vmatpush1.xpose.msra.mxu0 0.0
    %554 = vmatprep.subr.mxu0 0.0
    %555 = vmatpush1.xpose.msra.mxu0 0.0
    %556 = vmatprep.subr.mxu0 0.0
    %557 = vmatpush1.xpose.msra.mxu0 0.0
    %558 = vmatprep.subr.mxu0 0.0
    %559 = vmatpush1.xpose.msra.mxu0 0.0
    %560 = vmatprep.subr.mxu0 0.0
    %561 = vmatpush1.xpose.msra.mxu0 0.0
    %562 = vmatprep.subr.mxu0 0.0
    %563 = vmatpush1.xpose.msra.mxu0 0.0
    %564 = vmatprep.subr.mxu0 0.0
    %565 = vmatpush1.xpose.msra.mxu0 0.0
    %566 = vmatprep.subr.mxu0 0.0
    %567 = vmatpush1.xpose.msra.mxu0 0.0
    %568 = vmatprep.subr.mxu0 0.0
    %569 = vmatpush1.xpose.msra.mxu0 0.0
    %570 = vmatprep.subr.mxu0 0.0
    %571 = vmatpush1.xpose.msra.mxu0 0.0
    %572 = vmatprep.subr.mxu0 0.0
    %573 = vmatpush1.xpose.msra.mxu0 0.0
    %574 = vmatprep.subr.mxu0 0.0
    %575 = vmatpush1.xpose.msra.mxu0 0.0
    %576 = vmatprep.subr.mxu0 0.0
    %577 = vmatpush1.xpose.msra.mxu0 0.0
    %578 = vmatprep.subr.mxu0 0.0
    %579 = vmatpush1.xpose.msra.mxu0 0.0
    %580 = vmatprep.subr.mxu0 0.0
    %581 = vmatpush1.xpose.msra.mxu0 0.0
    %582 = vmatprep.subr.mxu0 0.0
    %583 = vmatpush1.xpose.msra.mxu0 0.0
    %584 = vmatprep.subr.mxu0 0.0
    %585 = vmatpush1.xpose.msra.mxu0 0.0
    %586 = vmatprep.subr.mxu0 0.0
    %587 = vmatpush1.xpose.msra.mxu0 0.0
    %588 = vmatprep.subr.mxu0 0.0
    %589 = vmatpush1.xpose.msra.mxu0 0.0
    %590 = vmatprep.subr.mxu0 0.0
    %591 = vmatpush1.xpose.msra.mxu0 0.0
    %592 = vmatprep.subr.mxu0 0.0
    %593 = vmatpush1.xpose.msra.mxu0 0.0
    %594 = vmatprep.mubr.f32.mxu0 0.0
    %595 = vmatmul.mubr.f32.gmra.mrb[0].mxu0 %v506
    %v596 = vpop.f32.mrb[0].mxu0
    %v597 = vadd.f32 %v213, %v596
    %v598 = vpop.f32.mrb[0].mxu0
    %599 = vmatprep.mubr.f32.mxu0 0.0
    %600 = vmatmul.mubr.f32.gmra.mrb[0].mxu0 %v508
    %v601 = vpop.f32.mrb[0].mxu0
    %v602 = vadd.f32 %v214, %v601
    %v603 = vpop.f32.mrb[0].mxu0
    %604 = vmatprep.mubr.f32.mxu0 0.0
    %605 = vmatmul.mubr.f32.gmra.mrb[0].mxu0 %v510
    %v606 = vpop.f32.mrb[0].mxu0
    %v607 = vadd.f32 %v215, %v606
    %v608 = vpop.f32.mrb[0].mxu0
    %609 = vmatprep.mubr.f32.mxu0 0.0
    %610 = vmatmul.mubr.f32.gmra.mrb[0].mxu0 %v512
    %v611 = vpop.f32.mrb[0].mxu0
    %v612 = vadd.f32 %v216, %v611
    %v613 = vpop.f32.mrb[0].mxu0
    %614 = vmatprep.mubr.f32.mxu0 0.0
    %615 = vmatmul.mubr.f32.gmra.mrb[0].mxu0 %v514
    %v616 = vpop.f32.mrb[0].mxu0
    %v617 = vadd.f32 %v217, %v616
    %v618 = vpop.f32.mrb[0].mxu0
    %619 = vmatprep.mubr.f32.mxu0 0.0
    %620 = vmatmul.mubr.f32.gmra.mrb[0].mxu0 %v516
    %v621 = vpop.f32.mrb[0].mxu0
    %v622 = vadd.f32 %v218, %v621
    %v623 = vpop.f32.mrb[0].mxu0
    %624 = vdwg.mxu0
    %625 = vrot.lane.b32.xlu0 %v316, 112
    %v626 = vpop.permute.xlu0 %625
    %627 = vrot.lane.b32.xlu0 %v321, 112
    %v628 = vpop.permute.xlu0 %627
    %629 = vrot.lane.b32.xlu0 %v326, 112
    %v630 = vpop.permute.xlu0 %629
    %631 = vrot.lane.b32.xlu0 %v331, 112
    %v632 = vpop.permute.xlu0 %631
    %633 = vrot.lane.b32.xlu0 %v336, 112
    %v634 = vpop.permute.xlu0 %633
    %635 = vrot.lane.b32.xlu0 %v341, 112
    %v636 = vpop.permute.xlu0 %635
    %637 = vrot.lane.b32.xlu0 %v316, 80
    %v638 = vpop.permute.xlu0 %637
    %639 = vrot.lane.b32.xlu0 %v321, 80
    %v640 = vpop.permute.xlu0 %639
    %641 = vrot.lane.b32.xlu0 %v326, 80
    %v642 = vpop.permute.xlu0 %641
    %643 = vrot.lane.b32.xlu0 %v331, 80
    %v644 = vpop.permute.xlu0 %643
    %645 = vrot.lane.b32.xlu0 %v336, 80
    %v646 = vpop.permute.xlu0 %645
    %647 = vrot.lane.b32.xlu0 %v341, 80
    %v648 = vpop.permute.xlu0 %647
    %v649 = vsel %vm362, %v626, 0
    %v651 = vsel %vm362, %v628, 0
    %v653 = vsel %vm362, %v630, 0
    %v655 = vsel %vm362, %v632, 0
    %v657 = vsel %vm362, %v634, 0
    %v659 = vsel %vm362, %v636, 0
    %v661 = vsel %vm362, %v638, 0
    %v663 = vsel %vm362, %v640, 0
    %v665 = vsel %vm362, %v642, 0
    %v667 = vsel %vm362, %v644, 0
    %v669 = vsel %vm362, %v646, 0
    %v671 = vsel %vm362, %v648, 0
    %673 = vmatprep.subr.mxu0 0.0
    %674 = vmatpush1.xpose.msra.mxu0 %v661
    %675 = vmatprep.subr.mxu0 0.0
    %676 = vmatpush1.xpose.msra.mxu0 %v663
    %677 = vmatprep.subr.mxu0 0.0
    %678 = vmatpush1.xpose.msra.mxu0 %v665
    %679 = vmatprep.subr.mxu0 0.0
    %680 = vmatpush1.xpose.msra.mxu0 %v667
    %681 = vmatprep.subr.mxu0 0.0
    %682 = vmatpush1.xpose.msra.mxu0 %v669
    %683 = vmatprep.subr.mxu0 0.0
    %684 = vmatpush1.xpose.msra.mxu0 %v671
    %685 = vmatprep.subr.mxu0 0.0
    %686 = vmatpush1.xpose.msra.mxu0 0.0
    %687 = vmatprep.subr.mxu0 0.0
    %688 = vmatpush1.xpose.msra.mxu0 0.0
    %689 = vmatprep.subr.mxu0 0.0
    %690 = vmatpush1.xpose.msra.mxu0 0.0
    %691 = vmatprep.subr.mxu0 0.0
    %692 = vmatpush1.xpose.msra.mxu0 0.0
    %693 = vmatprep.subr.mxu0 0.0
    %694 = vmatpush1.xpose.msra.mxu0 0.0
    %695 = vmatprep.subr.mxu0 0.0
    %696 = vmatpush1.xpose.msra.mxu0 0.0
    %697 = vmatprep.subr.mxu0 0.0
    %698 = vmatpush1.xpose.msra.mxu0 0.0
    %699 = vmatprep.subr.mxu0 0.0
    %700 = vmatpush1.xpose.msra.mxu0 0.0
    %701 = vmatprep.subr.mxu0 0.0
    %702 = vmatpush1.xpose.msra.mxu0 0.0
    %703 = vmatprep.subr.mxu0 0.0
    %704 = vmatpush1.xpose.msra.mxu0 0.0
    %705 = vmatprep.subr.mxu0 0.0
    %706 = vmatpush1.xpose.msra.mxu0 0.0
    %707 = vmatprep.subr.mxu0 0.0
    %708 = vmatpush1.xpose.msra.mxu0 0.0
    %709 = vmatprep.subr.mxu0 0.0
    %710 = vmatpush1.xpose.msra.mxu0 0.0
    %711 = vmatprep.subr.mxu0 0.0
    %712 = vmatpush1.xpose.msra.mxu0 0.0
    %713 = vmatprep.subr.mxu0 0.0
    %714 = vmatpush1.xpose.msra.mxu0 0.0
    %715 = vmatprep.subr.mxu0 0.0
    %716 = vmatpush1.xpose.msra.mxu0 0.0
    %717 = vmatprep.subr.mxu0 0.0
    %718 = vmatpush1.xpose.msra.mxu0 0.0
    %719 = vmatprep.subr.mxu0 0.0
    %720 = vmatpush1.xpose.msra.mxu0 0.0
    %721 = vmatprep.subr.mxu0 0.0
    %722 = vmatpush1.xpose.msra.mxu0 0.0
    %723 = vmatprep.subr.mxu0 0.0
    %724 = vmatpush1.xpose.msra.mxu0 0.0
    %725 = vmatprep.subr.mxu0 0.0
    %726 = vmatpush1.xpose.msra.mxu0 0.0
    %727 = vmatprep.subr.mxu0 0.0
    %728 = vmatpush1.xpose.msra.mxu0 0.0
    %729 = vmatprep.subr.mxu0 0.0
    %730 = vmatpush1.xpose.msra.mxu0 0.0
    %731 = vmatprep.subr.mxu0 0.0
    %732 = vmatpush1.xpose.msra.mxu0 0.0
    %733 = vmatprep.subr.mxu0 0.0
    %734 = vmatpush1.xpose.msra.mxu0 0.0
    %735 = vmatprep.subr.mxu0 0.0
    %736 = vmatpush1.xpose.msra.mxu0 0.0
    %737 = vmatprep.mubr.f32.mxu0 0.0
    %738 = vmatmul.mubr.f32.gmra.mrb[0].mxu0 %v649
    %v739 = vpop.f32.mrb[0].mxu0
    %v740 = vadd.f32 %v213, %v739
    %v741 = vpop.f32.mrb[0].mxu0
    %742 = vmatprep.mubr.f32.mxu0 0.0
    %743 = vmatmul.mubr.f32.gmra.mrb[0].mxu0 %v651
    %v744 = vpop.f32.mrb[0].mxu0
    %v745 = vadd.f32 %v214, %v744
    %v746 = vpop.f32.mrb[0].mxu0
    %747 = vmatprep.mubr.f32.mxu0 0.0
    %748 = vmatmul.mubr.f32.gmra.mrb[0].mxu0 %v653
    %v749 = vpop.f32.mrb[0].mxu0
    %v750 = vadd.f32 %v215, %v749
    %v751 = vpop.f32.mrb[0].mxu0
    %752 = vmatprep.mubr.f32.mxu0 0.0
    %753 = vmatmul.mubr.f32.gmra.mrb[0].mxu0 %v655
    %v754 = vpop.f32.mrb[0].mxu0
    %v755 = vadd.f32 %v216, %v754
    %v756 = vpop.f32.mrb[0].mxu0
    %757 = vmatprep.mubr.f32.mxu0 0.0
    %758 = vmatmul.mubr.f32.gmra.mrb[0].mxu0 %v657
    %v759 = vpop.f32.mrb[0].mxu0
    %v760 = vadd.f32 %v217, %v759
    %v761 = vpop.f32.mrb[0].mxu0
    %762 = vmatprep.mubr.f32.mxu0 0.0
    %763 = vmatmul.mubr.f32.gmra.mrb[0].mxu0 %v659
    %v764 = vpop.f32.mrb[0].mxu0
    %v765 = vadd.f32 %v218, %v764
    %v766 = vpop.f32.mrb[0].mxu0
    %767 = vdwg.mxu0
    %768 = vrot.lane.b32.xlu0 %v316, 104
    %v769 = vpop.permute.xlu0 %768
    %770 = vrot.lane.b32.xlu0 %v321, 104
    %v771 = vpop.permute.xlu0 %770
    %772 = vrot.lane.b32.xlu0 %v326, 104
    %v773 = vpop.permute.xlu0 %772
    %774 = vrot.lane.b32.xlu0 %v331, 104
    %v775 = vpop.permute.xlu0 %774
    %776 = vrot.lane.b32.xlu0 %v336, 104
    %v777 = vpop.permute.xlu0 %776
    %778 = vrot.lane.b32.xlu0 %v341, 104
    %v779 = vpop.permute.xlu0 %778
    %780 = vrot.lane.b32.xlu0 %v316, 72
    %v781 = vpop.permute.xlu0 %780
    %782 = vrot.lane.b32.xlu0 %v321, 72
    %v783 = vpop.permute.xlu0 %782
    %784 = vrot.lane.b32.xlu0 %v326, 72
    %v785 = vpop.permute.xlu0 %784
    %786 = vrot.lane.b32.xlu0 %v331, 72
    %v787 = vpop.permute.xlu0 %786
    %788 = vrot.lane.b32.xlu0 %v336, 72
    %v789 = vpop.permute.xlu0 %788
    %790 = vrot.lane.b32.xlu0 %v341, 72
    %v791 = vpop.permute.xlu0 %790
    %v792 = vsel %vm362, %v769, 0
    %v794 = vsel %vm362, %v771, 0
    %v796 = vsel %vm362, %v773, 0
    %v798 = vsel %vm362, %v775, 0
    %v800 = vsel %vm362, %v777, 0
    %v802 = vsel %vm362, %v779, 0
    %v804 = vsel %vm362, %v781, 0
    %v806 = vsel %vm362, %v783, 0
    %v808 = vsel %vm362, %v785, 0
    %v810 = vsel %vm362, %v787, 0
    %v812 = vsel %vm362, %v789, 0
    %v814 = vsel %vm362, %v791, 0
    %816 = vmatprep.subr.mxu0 0.0
    %817 = vmatpush1.xpose.msra.mxu0 %v804
    %818 = vmatprep.subr.mxu0 0.0
    %819 = vmatpush1.xpose.msra.mxu0 %v806
    %820 = vmatprep.subr.mxu0 0.0
    %821 = vmatpush1.xpose.msra.mxu0 %v808
    %822 = vmatprep.subr.mxu0 0.0
    %823 = vmatpush1.xpose.msra.mxu0 %v810
    %824 = vmatprep.subr.mxu0 0.0
    %825 = vmatpush1.xpose.msra.mxu0 %v812
    %826 = vmatprep.subr.mxu0 0.0
    %827 = vmatpush1.xpose.msra.mxu0 %v814
    %828 = vmatprep.subr.mxu0 0.0
    %829 = vmatpush1.xpose.msra.mxu0 0.0
    %830 = vmatprep.subr.mxu0 0.0
    %831 = vmatpush1.xpose.msra.mxu0 0.0
    %832 = vmatprep.subr.mxu0 0.0
    %833 = vmatpush1.xpose.msra.mxu0 0.0
    %834 = vmatprep.subr.mxu0 0.0
    %835 = vmatpush1.xpose.msra.mxu0 0.0
    %836 = vmatprep.subr.mxu0 0.0
    %837 = vmatpush1.xpose.msra.mxu0 0.0
    %838 = vmatprep.subr.mxu0 0.0
    %839 = vmatpush1.xpose.msra.mxu0 0.0
    %840 = vmatprep.subr.mxu0 0.0
    %841 = vmatpush1.xpose.msra.mxu0 0.0
    %842 = vmatprep.subr.mxu0 0.0
    %843 = vmatpush1.xpose.msra.mxu0 0.0
    %844 = vmatprep.subr.mxu0 0.0
    %845 = vmatpush1.xpose.msra.mxu0 0.0
    %846 = vmatprep.subr.mxu0 0.0
    %847 = vmatpush1.xpose.msra.mxu0 0.0
    %848 = vmatprep.subr.mxu0 0.0
    %849 = vmatpush1.xpose.msra.mxu0 0.0
    %850 = vmatprep.subr.mxu0 0.0
    %851 = vmatpush1.xpose.msra.mxu0 0.0
    %852 = vmatprep.subr.mxu0 0.0
    %853 = vmatpush1.xpose.msra.mxu0 0.0
    %854 = vmatprep.subr.mxu0 0.0
    %855 = vmatpush1.xpose.msra.mxu0 0.0
    %856 = vmatprep.subr.mxu0 0.0
    %857 = vmatpush1.xpose.msra.mxu0 0.0
    %858 = vmatprep.subr.mxu0 0.0
    %859 = vmatpush1.xpose.msra.mxu0 0.0
    %860 = vmatprep.subr.mxu0 0.0
    %861 = vmatpush1.xpose.msra.mxu0 0.0
    %862 = vmatprep.subr.mxu0 0.0
    %863 = vmatpush1.xpose.msra.mxu0 0.0
    %864 = vmatprep.subr.mxu0 0.0
    %865 = vmatpush1.xpose.msra.mxu0 0.0
    %866 = vmatprep.subr.mxu0 0.0
    %867 = vmatpush1.xpose.msra.mxu0 0.0
    %868 = vmatprep.subr.mxu0 0.0
    %869 = vmatpush1.xpose.msra.mxu0 0.0
    %870 = vmatprep.subr.mxu0 0.0
    %871 = vmatpush1.xpose.msra.mxu0 0.0
    %872 = vmatprep.subr.mxu0 0.0
    %873 = vmatpush1.xpose.msra.mxu0 0.0
    %874 = vmatprep.subr.mxu0 0.0
    %875 = vmatpush1.xpose.msra.mxu0 0.0
    %876 = vmatprep.subr.mxu0 0.0
    %877 = vmatpush1.xpose.msra.mxu0 0.0
    %878 = vmatprep.subr.mxu0 0.0
    %879 = vmatpush1.xpose.msra.mxu0 0.0
    %880 = vmatprep.mubr.f32.mxu0 0.0
    %881 = vmatmul.mubr.f32.gmra.mrb[0].mxu0 %v792
    %v882 = vpop.f32.mrb[0].mxu0
    %v883 = vadd.f32 %v213, %v882
    %v884 = vpop.f32.mrb[0].mxu0
    %885 = vmatprep.mubr.f32.mxu0 0.0
    %886 = vmatmul.mubr.f32.gmra.mrb[0].mxu0 %v794
    %v887 = vpop.f32.mrb[0].mxu0
    %v888 = vadd.f32 %v214, %v887
    %v889 = vpop.f32.mrb[0].mxu0
    %890 = vmatprep.mubr.f32.mxu0 0.0
    %891 = vmatmul.mubr.f32.gmra.mrb[0].mxu0 %v796
    %v892 = vpop.f32.mrb[0].mxu0
    %v893 = vadd.f32 %v215, %v892
    %v894 = vpop.f32.mrb[0].mxu0
    %895 = vmatprep.mubr.f32.mxu0 0.0
    %896 = vmatmul.mubr.f32.gmra.mrb[0].mxu0 %v798
    %v897 = vpop.f32.mrb[0].mxu0
    %v898 = vadd.f32 %v216, %v897
    %v899 = vpop.f32.mrb[0].mxu0
    %900 = vmatprep.mubr.f32.mxu0 0.0
    %901 = vmatmul.mubr.f32.gmra.mrb[0].mxu0 %v800
    %v902 = vpop.f32.mrb[0].mxu0
    %v903 = vadd.f32 %v217, %v902
    %v904 = vpop.f32.mrb[0].mxu0
    %905 = vmatprep.mubr.f32.mxu0 0.0
    %906 = vmatmul.mubr.f32.gmra.mrb[0].mxu0 %v802
    %v907 = vpop.f32.mrb[0].mxu0
    %v908 = vadd.f32 %v218, %v907
    %v909 = vpop.f32.mrb[0].mxu0
    %910 = vdwg.mxu0
    %vm911 = vcmask 392192
    %v912 = vsel %vm911, %v454, -inf
    %913 = vmax.xlane.f32.xlu0 %v912
    %v914 = vpop.xlane.xlu0 %913
    %v915 = vsel %vm911, %v459, -inf
    %916 = vmax.xlane.f32.xlu0 %v915
    %v917 = vpop.xlane.xlu0 %916
    %v918 = vsel %vm911, %v464, -inf
    %919 = vmax.xlane.f32.xlu0 %v918
    %v920 = vpop.xlane.xlu0 %919
    %v921 = vsel %vm911, %v469, -inf
    %922 = vmax.xlane.f32.xlu0 %v921
    %v923 = vpop.xlane.xlu0 %922
    %v924 = vsel %vm911, %v474, -inf
    %925 = vmax.xlane.f32.xlu0 %v924
    %v926 = vpop.xlane.xlu0 %925
    %v927 = vsel %vm911, %v479, -inf
    %928 = vmax.xlane.f32.xlu0 %v927
    %v929 = vpop.xlane.xlu0 %928
    %v930 = vsel %vm911, %v597, -inf
    %931 = vmax.xlane.f32.xlu0 %v930
    %v932 = vpop.xlane.xlu0 %931
    %v933 = vsel %vm911, %v602, -inf
    %934 = vmax.xlane.f32.xlu0 %v933
    %v935 = vpop.xlane.xlu0 %934
    %v936 = vsel %vm911, %v607, -inf
    %937 = vmax.xlane.f32.xlu0 %v936
    %v938 = vpop.xlane.xlu0 %937
    %v939 = vsel %vm911, %v612, -inf
    %940 = vmax.xlane.f32.xlu0 %v939
    %v941 = vpop.xlane.xlu0 %940
    %v942 = vsel %vm911, %v617, -inf
    %943 = vmax.xlane.f32.xlu0 %v942
    %v944 = vpop.xlane.xlu0 %943
    %v945 = vsel %vm911, %v622, -inf
    %946 = vmax.xlane.f32.xlu0 %v945
    %v947 = vpop.xlane.xlu0 %946
    %v948 = vsel %vm911, %v740, -inf
    %949 = vmax.xlane.f32.xlu0 %v948
    %v950 = vpop.xlane.xlu0 %949
    %v951 = vsel %vm911, %v745, -inf
    %952 = vmax.xlane.f32.xlu0 %v951
    %v953 = vpop.xlane.xlu0 %952
    %v954 = vsel %vm911, %v750, -inf
    %955 = vmax.xlane.f32.xlu0 %v954
    %v956 = vpop.xlane.xlu0 %955
    %v957 = vsel %vm911, %v755, -inf
    %958 = vmax.xlane.f32.xlu0 %v957
    %v959 = vpop.xlane.xlu0 %958
    %v960 = vsel %vm911, %v760, -inf
    %961 = vmax.xlane.f32.xlu0 %v960
    %v962 = vpop.xlane.xlu0 %961
    %v963 = vsel %vm911, %v765, -inf
    %964 = vmax.xlane.f32.xlu0 %v963
    %v965 = vpop.xlane.xlu0 %964
    %v966 = vsel %vm911, %v883, -inf
    %967 = vmax.xlane.f32.xlu0 %v966
    %v968 = vpop.xlane.xlu0 %967
    %v969 = vsel %vm911, %v888, -inf
    %970 = vmax.xlane.f32.xlu0 %v969
    %v971 = vpop.xlane.xlu0 %970
    %v972 = vsel %vm911, %v893, -inf
    %973 = vmax.xlane.f32.xlu0 %v972
    %v974 = vpop.xlane.xlu0 %973
    %v975 = vsel %vm911, %v898, -inf
    %976 = vmax.xlane.f32.xlu0 %v975
    %v977 = vpop.xlane.xlu0 %976
    %v978 = vsel %vm911, %v903, -inf
    %979 = vmax.xlane.f32.xlu0 %v978
    %v980 = vpop.xlane.xlu0 %979
    %v981 = vsel %vm911, %v908, -inf
    %982 = vmax.xlane.f32.xlu0 %v981
    %v983 = vpop.xlane.xlu0 %982
    %v984 = vsub.f32 %v454, %v914
    %v985 = vsub.f32 %v459, %v917
    %v986 = vsub.f32 %v464, %v920
    %v987 = vsub.f32 %v469, %v923
    %v988 = vsub.f32 %v474, %v926
    %v989 = vsub.f32 %v479, %v929
    %v990 = vsub.f32 %v597, %v932
    %v991 = vsub.f32 %v602, %v935
    %v992 = vsub.f32 %v607, %v938
    %v993 = vsub.f32 %v612, %v941
    %v994 = vsub.f32 %v617, %v944
    %v995 = vsub.f32 %v622, %v947
    %v996 = vsub.f32 %v740, %v950
    %v997 = vsub.f32 %v745, %v953
    %v998 = vsub.f32 %v750, %v956
    %v999 = vsub.f32 %v755, %v959
    %v1000 = vsub.f32 %v760, %v962
    %v1001 = vsub.f32 %v765, %v965
    %v1002 = vsub.f32 %v883, %v968
    %v1003 = vsub.f32 %v888, %v971
    %v1004 = vsub.f32 %v893, %v974
    %v1005 = vsub.f32 %v898, %v977
    %v1006 = vsub.f32 %v903, %v980
    %v1007 = vsub.f32 %v908, %v983
    %v1008 = vmul.f32 %v984, 1.442695
    %v1009 = vpow.pop %v1008
    %v1010 = vmul.f32 %v985, 1.442695
    %v1011 = vpow.pop %v1010
    %v1012 = vmul.f32 %v986, 1.442695
    %v1013 = vpow.pop %v1012
    %v1014 = vmul.f32 %v987, 1.442695
    %v1015 = vpow.pop %v1014
    %v1016 = vmul.f32 %v988, 1.442695
    %v1017 = vpow.pop %v1016
    %v1018 = vmul.f32 %v989, 1.442695
    %v1019 = vpow.pop %v1018
    %v1020 = vmul.f32 %v990, 1.442695
    %v1021 = vpow.pop %v1020
    %v1022 = vmul.f32 %v991, 1.442695
    %v1023 = vpow.pop %v1022
    %v1024 = vmul.f32 %v992, 1.442695
    %v1025 = vpow.pop %v1024
    %v1026 = vmul.f32 %v993, 1.442695
    %v1027 = vpow.pop %v1026
    %v1028 = vmul.f32 %v994, 1.442695
    %v1029 = vpow.pop %v1028
    %v1030 = vmul.f32 %v995, 1.442695
    %v1031 = vpow.pop %v1030
    %v1032 = vmul.f32 %v996, 1.442695
    %v1033 = vpow.pop %v1032
    %v1034 = vmul.f32 %v997, 1.442695
    %v1035 = vpow.pop %v1034
    %v1036 = vmul.f32 %v998, 1.442695
    %v1037 = vpow.pop %v1036
    %v1038 = vmul.f32 %v999, 1.442695
    %v1039 = vpow.pop %v1038
    %v1040 = vmul.f32 %v1000, 1.442695
    %v1041 = vpow.pop %v1040
    %v1042 = vmul.f32 %v1001, 1.442695
    %v1043 = vpow.pop %v1042
    %v1044 = vmul.f32 %v1002, 1.442695
    %v1045 = vpow.pop %v1044
    %v1046 = vmul.f32 %v1003, 1.442695
    %v1047 = vpow.pop %v1046
    %v1048 = vmul.f32 %v1004, 1.442695
    %v1049 = vpow.pop %v1048
    %v1050 = vmul.f32 %v1005, 1.442695
    %v1051 = vpow.pop %v1050
    %v1052 = vmul.f32 %v1006, 1.442695
    %v1053 = vpow.pop %v1052
    %v1054 = vmul.f32 %v1007, 1.442695
    %v1055 = vpow.pop %v1054
    %v1056 = vsel %vm911, %v1009, 0.0
    %1057 = vadd.xlane.f32.xlu0 %v1056
    %v1058 = vpop.xlane.xlu0 %1057
    %v1059 = vsel %vm911, %v1011, 0.0
    %1060 = vadd.xlane.f32.xlu0 %v1059
    %v1061 = vpop.xlane.xlu0 %1060
    %v1062 = vsel %vm911, %v1013, 0.0
    %1063 = vadd.xlane.f32.xlu0 %v1062
    %v1064 = vpop.xlane.xlu0 %1063
    %v1065 = vsel %vm911, %v1015, 0.0
    %1066 = vadd.xlane.f32.xlu0 %v1065
    %v1067 = vpop.xlane.xlu0 %1066
    %v1068 = vsel %vm911, %v1017, 0.0
    %1069 = vadd.xlane.f32.xlu0 %v1068
    %v1070 = vpop.xlane.xlu0 %1069
    %v1071 = vsel %vm911, %v1019, 0.0
    %1072 = vadd.xlane.f32.xlu0 %v1071
    %v1073 = vpop.xlane.xlu0 %1072
    %v1074 = vsel %vm911, %v1021, 0.0
    %1075 = vadd.xlane.f32.xlu0 %v1074
    %v1076 = vpop.xlane.xlu0 %1075
    %v1077 = vsel %vm911, %v1023, 0.0
    %1078 = vadd.xlane.f32.xlu0 %v1077
    %v1079 = vpop.xlane.xlu0 %1078
    %v1080 = vsel %vm911, %v1025, 0.0
    %1081 = vadd.xlane.f32.xlu0 %v1080
    %v1082 = vpop.xlane.xlu0 %1081
    %v1083 = vsel %vm911, %v1027, 0.0
    %1084 = vadd.xlane.f32.xlu0 %v1083
    %v1085 = vpop.xlane.xlu0 %1084
    %v1086 = vsel %vm911, %v1029, 0.0
    %1087 = vadd.xlane.f32.xlu0 %v1086
    %v1088 = vpop.xlane.xlu0 %1087
    %v1089 = vsel %vm911, %v1031, 0.0
    %1090 = vadd.xlane.f32.xlu0 %v1089
    %v1091 = vpop.xlane.xlu0 %1090
    %v1092 = vsel %vm911, %v1033, 0.0
    %1093 = vadd.xlane.f32.xlu0 %v1092
    %v1094 = vpop.xlane.xlu0 %1093
    %v1095 = vsel %vm911, %v1035, 0.0
    %1096 = vadd.xlane.f32.xlu0 %v1095
    %v1097 = vpop.xlane.xlu0 %1096
    %v1098 = vsel %vm911, %v1037, 0.0
    %1099 = vadd.xlane.f32.xlu0 %v1098
    %v1100 = vpop.xlane.xlu0 %1099
    %v1101 = vsel %vm911, %v1039, 0.0
    %1102 = vadd.xlane.f32.xlu0 %v1101
    %v1103 = vpop.xlane.xlu0 %1102
    %v1104 = vsel %vm911, %v1041, 0.0
    %1105 = vadd.xlane.f32.xlu0 %v1104
    %v1106 = vpop.xlane.xlu0 %1105
    %v1107 = vsel %vm911, %v1043, 0.0
    %1108 = vadd.xlane.f32.xlu0 %v1107
    %v1109 = vpop.xlane.xlu0 %1108
    %v1110 = vsel %vm911, %v1045, 0.0
    %1111 = vadd.xlane.f32.xlu0 %v1110
    %v1112 = vpop.xlane.xlu0 %1111
    %v1113 = vsel %vm911, %v1047, 0.0
    %1114 = vadd.xlane.f32.xlu0 %v1113
    %v1115 = vpop.xlane.xlu0 %1114
    %v1116 = vsel %vm911, %v1049, 0.0
    %1117 = vadd.xlane.f32.xlu0 %v1116
    %v1118 = vpop.xlane.xlu0 %1117
    %v1119 = vsel %vm911, %v1051, 0.0
    %1120 = vadd.xlane.f32.xlu0 %v1119
    %v1121 = vpop.xlane.xlu0 %1120
    %v1122 = vsel %vm911, %v1053, 0.0
    %1123 = vadd.xlane.f32.xlu0 %v1122
    %v1124 = vpop.xlane.xlu0 %1123
    %v1125 = vsel %vm911, %v1055, 0.0
    %1126 = vadd.xlane.f32.xlu0 %v1125
    %v1127 = vpop.xlane.xlu0 %1126
    %v1128 = vrcp.pop %v1058
    %v1129 = vmul.f32 %v1009, %v1128
    %v1130 = vrcp.pop %v1061
    %v1131 = vmul.f32 %v1011, %v1130
    %v1132 = vrcp.pop %v1064
    %v1133 = vmul.f32 %v1013, %v1132
    %v1134 = vrcp.pop %v1067
    %v1135 = vmul.f32 %v1015, %v1134
    %v1136 = vrcp.pop %v1070
    %v1137 = vmul.f32 %v1017, %v1136
    %v1138 = vrcp.pop %v1073
    %v1139 = vmul.f32 %v1019, %v1138
    %v1140 = vrcp.pop %v1076
    %v1141 = vmul.f32 %v1021, %v1140
    %v1142 = vrcp.pop %v1079
    %v1143 = vmul.f32 %v1023, %v1142
    %v1144 = vrcp.pop %v1082
    %v1145 = vmul.f32 %v1025, %v1144
    %v1146 = vrcp.pop %v1085
    %v1147 = vmul.f32 %v1027, %v1146
    %v1148 = vrcp.pop %v1088
    %v1149 = vmul.f32 %v1029, %v1148
    %v1150 = vrcp.pop %v1091
    %v1151 = vmul.f32 %v1031, %v1150
    %v1152 = vrcp.pop %v1094
    %v1153 = vmul.f32 %v1033, %v1152
    %v1154 = vrcp.pop %v1097
    %v1155 = vmul.f32 %v1035, %v1154
    %v1156 = vrcp.pop %v1100
    %v1157 = vmul.f32 %v1037, %v1156
    %v1158 = vrcp.pop %v1103
    %v1159 = vmul.f32 %v1039, %v1158
    %v1160 = vrcp.pop %v1106
    %v1161 = vmul.f32 %v1041, %v1160
    %v1162 = vrcp.pop %v1109
    %v1163 = vmul.f32 %v1043, %v1162
    %v1164 = vrcp.pop %v1112
    %v1165 = vmul.f32 %v1045, %v1164
    %v1166 = vrcp.pop %v1115
    %v1167 = vmul.f32 %v1047, %v1166
    %v1168 = vrcp.pop %v1118
    %v1169 = vmul.f32 %v1049, %v1168
    %v1170 = vrcp.pop %v1121
    %v1171 = vmul.f32 %v1051, %v1170
    %v1172 = vrcp.pop %v1124
    %v1173 = vmul.f32 %v1053, %v1172
    %v1174 = vrcp.pop %v1127
    %v1175 = vmul.f32 %v1055, %v1174
    %1176 = vrot.lane.b32.xlu0 %v316, 64
    %v1177 = vpop.permute.xlu0 %1176
    %1178 = vrot.lane.b32.xlu0 %v321, 64
    %v1179 = vpop.permute.xlu0 %1178
    %1180 = vrot.lane.b32.xlu0 %v326, 64
    %v1181 = vpop.permute.xlu0 %1180
    %1182 = vrot.lane.b32.xlu0 %v331, 64
    %v1183 = vpop.permute.xlu0 %1182
    %1184 = vrot.lane.b32.xlu0 %v336, 64
    %v1185 = vpop.permute.xlu0 %1184
    %1186 = vrot.lane.b32.xlu0 %v341, 64
    %v1187 = vpop.permute.xlu0 %1186
    %v1195 = vsel %vm911, %v1129, 0
    %v1198 = vsel %vm911, %v1131, 0
    %v1201 = vsel %vm911, %v1133, 0
    %v1204 = vsel %vm911, %v1135, 0
    %v1207 = vsel %vm911, %v1137, 0
    %v1210 = vsel %vm911, %v1139, 0
    %1212 = vmatprep.subr.mxu0 0.0
    %1213 = vmatpush1.msra.mxu0 %v1177
    %1214 = vmatprep.subr.mxu0 0.0
    %1215 = vmatpush1.msra.mxu0 %v1179
    %1216 = vmatprep.subr.mxu0 0.0
    %1217 = vmatpush1.msra.mxu0 %v1181
    %1218 = vmatprep.subr.mxu0 0.0
    %1219 = vmatpush1.msra.mxu0 %v1183
    %1220 = vmatprep.subr.mxu0 0.0
    %1221 = vmatpush1.msra.mxu0 %v1185
    %1222 = vmatprep.subr.mxu0 0.0
    %1223 = vmatpush1.msra.mxu0 %v1187
    %1224 = vmatprep.subr.mxu0 0.0
    %1225 = vmatpush1.msra.mxu0 0.0
    %1226 = vmatprep.subr.mxu0 0.0
    %1227 = vmatpush1.msra.mxu0 0.0
    %1228 = vmatprep.subr.mxu0 0.0
    %1229 = vmatpush1.msra.mxu0 0.0
    %1230 = vmatprep.subr.mxu0 0.0
    %1231 = vmatpush1.msra.mxu0 0.0
    %1232 = vmatprep.subr.mxu0 0.0
    %1233 = vmatpush1.msra.mxu0 0.0
    %1234 = vmatprep.subr.mxu0 0.0
    %1235 = vmatpush1.msra.mxu0 0.0
    %1236 = vmatprep.subr.mxu0 0.0
    %1237 = vmatpush1.msra.mxu0 0.0
    %1238 = vmatprep.subr.mxu0 0.0
    %1239 = vmatpush1.msra.mxu0 0.0
    %1240 = vmatprep.subr.mxu0 0.0
    %1241 = vmatpush1.msra.mxu0 0.0
    %1242 = vmatprep.subr.mxu0 0.0
    %1243 = vmatpush1.msra.mxu0 0.0
    %1244 = vmatprep.subr.mxu0 0.0
    %1245 = vmatpush1.msra.mxu0 0.0
    %1246 = vmatprep.subr.mxu0 0.0
    %1247 = vmatpush1.msra.mxu0 0.0
    %1248 = vmatprep.subr.mxu0 0.0
    %1249 = vmatpush1.msra.mxu0 0.0
    %1250 = vmatprep.subr.mxu0 0.0
    %1251 = vmatpush1.msra.mxu0 0.0
    %1252 = vmatprep.subr.mxu0 0.0
    %1253 = vmatpush1.msra.mxu0 0.0
    %1254 = vmatprep.subr.mxu0 0.0
    %1255 = vmatpush1.msra.mxu0 0.0
    %1256 = vmatprep.subr.mxu0 0.0
    %1257 = vmatpush1.msra.mxu0 0.0
    %1258 = vmatprep.subr.mxu0 0.0
    %1259 = vmatpush1.msra.mxu0 0.0
    %1260 = vmatprep.subr.mxu0 0.0
    %1261 = vmatpush1.msra.mxu0 0.0
    %1262 = vmatprep.subr.mxu0 0.0
    %1263 = vmatpush1.msra.mxu0 0.0
    %1264 = vmatprep.subr.mxu0 0.0
    %1265 = vmatpush1.msra.mxu0 0.0
    %1266 = vmatprep.subr.mxu0 0.0
    %1267 = vmatpush1.msra.mxu0 0.0
    %1268 = vmatprep.subr.mxu0 0.0
    %1269 = vmatpush1.msra.mxu0 0.0
    %1270 = vmatprep.subr.mxu0 0.0
    %1271 = vmatpush1.msra.mxu0 0.0
    %1272 = vmatprep.subr.mxu0 0.0
    %1273 = vmatpush1.msra.mxu0 0.0
    %1274 = vmatprep.subr.mxu0 0.0
    %1275 = vmatpush1.msra.mxu0 0.0
    %1276 = vmatprep.mubr.f32.mxu0 0.0
    %1277 = vmatmul.mubr.f32.gmra.mrb[0].mxu0 %v1195
    %v1278 = vpop.f32.mrb[0].mxu0
    %v1279 = vadd.f32 0.0, %v1278
    %v1280 = vpop.f32.mrb[0].mxu0
    %1281 = vmatprep.mubr.f32.mxu0 0.0
    %1282 = vmatmul.mubr.f32.gmra.mrb[0].mxu0 %v1198
    %v1283 = vpop.f32.mrb[0].mxu0
    %v1284 = vadd.f32 0.0, %v1283
    %v1285 = vpop.f32.mrb[0].mxu0
    %1286 = vmatprep.mubr.f32.mxu0 0.0
    %1287 = vmatmul.mubr.f32.gmra.mrb[0].mxu0 %v1201
    %v1288 = vpop.f32.mrb[0].mxu0
    %v1289 = vadd.f32 0.0, %v1288
    %v1290 = vpop.f32.mrb[0].mxu0
    %1291 = vmatprep.mubr.f32.mxu0 0.0
    %1292 = vmatmul.mubr.f32.gmra.mrb[0].mxu0 %v1204
    %v1293 = vpop.f32.mrb[0].mxu0
    %v1294 = vadd.f32 0.0, %v1293
    %v1295 = vpop.f32.mrb[0].mxu0
    %1296 = vmatprep.mubr.f32.mxu0 0.0
    %1297 = vmatmul.mubr.f32.gmra.mrb[0].mxu0 %v1207
    %v1298 = vpop.f32.mrb[0].mxu0
    %v1299 = vadd.f32 0.0, %v1298
    %v1300 = vpop.f32.mrb[0].mxu0
    %1301 = vmatprep.mubr.f32.mxu0 0.0
    %1302 = vmatmul.mubr.f32.gmra.mrb[0].mxu0 %v1210
    %v1303 = vpop.f32.mrb[0].mxu0
    %v1304 = vadd.f32 0.0, %v1303
    %v1305 = vpop.f32.mrb[0].mxu0
    %1306 = vdwg.mxu0
    %1307 = vrot.lane.b32.xlu0 %v316, 56
    %v1308 = vpop.permute.xlu0 %1307
    %1309 = vrot.lane.b32.xlu0 %v321, 56
    %v1310 = vpop.permute.xlu0 %1309
    %1311 = vrot.lane.b32.xlu0 %v326, 56
    %v1312 = vpop.permute.xlu0 %1311
    %1313 = vrot.lane.b32.xlu0 %v331, 56
    %v1314 = vpop.permute.xlu0 %1313
    %1315 = vrot.lane.b32.xlu0 %v336, 56
    %v1316 = vpop.permute.xlu0 %1315
    %1317 = vrot.lane.b32.xlu0 %v341, 56
    %v1318 = vpop.permute.xlu0 %1317
    %v1326 = vsel %vm911, %v1141, 0
    %v1329 = vsel %vm911, %v1143, 0
    %v1332 = vsel %vm911, %v1145, 0
    %v1335 = vsel %vm911, %v1147, 0
    %v1338 = vsel %vm911, %v1149, 0
    %v1341 = vsel %vm911, %v1151, 0
    %1343 = vmatprep.subr.mxu0 0.0
    %1344 = vmatpush1.msra.mxu0 %v1308
    %1345 = vmatprep.subr.mxu0 0.0
    %1346 = vmatpush1.msra.mxu0 %v1310
    %1347 = vmatprep.subr.mxu0 0.0
    %1348 = vmatpush1.msra.mxu0 %v1312
    %1349 = vmatprep.subr.mxu0 0.0
    %1350 = vmatpush1.msra.mxu0 %v1314
    %1351 = vmatprep.subr.mxu0 0.0
    %1352 = vmatpush1.msra.mxu0 %v1316
    %1353 = vmatprep.subr.mxu0 0.0
    %1354 = vmatpush1.msra.mxu0 %v1318
    %1355 = vmatprep.subr.mxu0 0.0
    %1356 = vmatpush1.msra.mxu0 0.0
    %1357 = vmatprep.subr.mxu0 0.0
    %1358 = vmatpush1.msra.mxu0 0.0
    %1359 = vmatprep.subr.mxu0 0.0
    %1360 = vmatpush1.msra.mxu0 0.0
    %1361 = vmatprep.subr.mxu0 0.0
    %1362 = vmatpush1.msra.mxu0 0.0
    %1363 = vmatprep.subr.mxu0 0.0
    %1364 = vmatpush1.msra.mxu0 0.0
    %1365 = vmatprep.subr.mxu0 0.0
    %1366 = vmatpush1.msra.mxu0 0.0
    %1367 = vmatprep.subr.mxu0 0.0
    %1368 = vmatpush1.msra.mxu0 0.0
    %1369 = vmatprep.subr.mxu0 0.0
    %1370 = vmatpush1.msra.mxu0 0.0
    %1371 = vmatprep.subr.mxu0 0.0
    %1372 = vmatpush1.msra.mxu0 0.0
    %1373 = vmatprep.subr.mxu0 0.0
    %1374 = vmatpush1.msra.mxu0 0.0
    %1375 = vmatprep.subr.mxu0 0.0
    %1376 = vmatpush1.msra.mxu0 0.0
    %1377 = vmatprep.subr.mxu0 0.0
    %1378 = vmatpush1.msra.mxu0 0.0
    %1379 = vmatprep.subr.mxu0 0.0
    %1380 = vmatpush1.msra.mxu0 0.0
    %1381 = vmatprep.subr.mxu0 0.0
    %1382 = vmatpush1.msra.mxu0 0.0
    %1383 = vmatprep.subr.mxu0 0.0
    %1384 = vmatpush1.msra.mxu0 0.0
    %1385 = vmatprep.subr.mxu0 0.0
    %1386 = vmatpush1.msra.mxu0 0.0
    %1387 = vmatprep.subr.mxu0 0.0
    %1388 = vmatpush1.msra.mxu0 0.0
    %1389 = vmatprep.subr.mxu0 0.0
    %1390 = vmatpush1.msra.mxu0 0.0
    %1391 = vmatprep.subr.mxu0 0.0
    %1392 = vmatpush1.msra.mxu0 0.0
    %1393 = vmatprep.subr.mxu0 0.0
    %1394 = vmatpush1.msra.mxu0 0.0
    %1395 = vmatprep.subr.mxu0 0.0
    %1396 = vmatpush1.msra.mxu0 0.0
    %1397 = vmatprep.subr.mxu0 0.0
    %1398 = vmatpush1.msra.mxu0 0.0
    %1399 = vmatprep.subr.mxu0 0.0
    %1400 = vmatpush1.msra.mxu0 0.0
    %1401 = vmatprep.subr.mxu0 0.0
    %1402 = vmatpush1.msra.mxu0 0.0
    %1403 = vmatprep.subr.mxu0 0.0
    %1404 = vmatpush1.msra.mxu0 0.0
    %1405 = vmatprep.subr.mxu0 0.0
    %1406 = vmatpush1.msra.mxu0 0.0
    %1407 = vmatprep.mubr.f32.mxu0 0.0
    %1408 = vmatmul.mubr.f32.gmra.mrb[0].mxu0 %v1326
    %v1409 = vpop.f32.mrb[0].mxu0
    %v1410 = vadd.f32 0.0, %v1409
    %v1411 = vpop.f32.mrb[0].mxu0
    %1412 = vmatprep.mubr.f32.mxu0 0.0
    %1413 = vmatmul.mubr.f32.gmra.mrb[0].mxu0 %v1329
    %v1414 = vpop.f32.mrb[0].mxu0
    %v1415 = vadd.f32 0.0, %v1414
    %v1416 = vpop.f32.mrb[0].mxu0
    %1417 = vmatprep.mubr.f32.mxu0 0.0
    %1418 = vmatmul.mubr.f32.gmra.mrb[0].mxu0 %v1332
    %v1419 = vpop.f32.mrb[0].mxu0
    %v1420 = vadd.f32 0.0, %v1419
    %v1421 = vpop.f32.mrb[0].mxu0
    %1422 = vmatprep.mubr.f32.mxu0 0.0
    %1423 = vmatmul.mubr.f32.gmra.mrb[0].mxu0 %v1335
    %v1424 = vpop.f32.mrb[0].mxu0
    %v1425 = vadd.f32 0.0, %v1424
    %v1426 = vpop.f32.mrb[0].mxu0
    %1427 = vmatprep.mubr.f32.mxu0 0.0
    %1428 = vmatmul.mubr.f32.gmra.mrb[0].mxu0 %v1338
    %v1429 = vpop.f32.mrb[0].mxu0
    %v1430 = vadd.f32 0.0, %v1429
    %v1431 = vpop.f32.mrb[0].mxu0
    %1432 = vmatprep.mubr.f32.mxu0 0.0
    %1433 = vmatmul.mubr.f32.gmra.mrb[0].mxu0 %v1341
    %v1434 = vpop.f32.mrb[0].mxu0
    %v1435 = vadd.f32 0.0, %v1434
    %v1436 = vpop.f32.mrb[0].mxu0
    %1437 = vdwg.mxu0
    %1438 = vrot.lane.b32.xlu0 %v316, 48
    %v1439 = vpop.permute.xlu0 %1438
    %1440 = vrot.lane.b32.xlu0 %v321, 48
    %v1441 = vpop.permute.xlu0 %1440
    %1442 = vrot.lane.b32.xlu0 %v326, 48
    %v1443 = vpop.permute.xlu0 %1442
    %1444 = vrot.lane.b32.xlu0 %v331, 48
    %v1445 = vpop.permute.xlu0 %1444
    %1446 = vrot.lane.b32.xlu0 %v336, 48
    %v1447 = vpop.permute.xlu0 %1446
    %1448 = vrot.lane.b32.xlu0 %v341, 48
    %v1449 = vpop.permute.xlu0 %1448
    %v1457 = vsel %vm911, %v1153, 0
    %v1460 = vsel %vm911, %v1155, 0
    %v1463 = vsel %vm911, %v1157, 0
    %v1466 = vsel %vm911, %v1159, 0
    %v1469 = vsel %vm911, %v1161, 0
    %v1472 = vsel %vm911, %v1163, 0
    %1474 = vmatprep.subr.mxu0 0.0
    %1475 = vmatpush1.msra.mxu0 %v1439
    %1476 = vmatprep.subr.mxu0 0.0
    %1477 = vmatpush1.msra.mxu0 %v1441
    %1478 = vmatprep.subr.mxu0 0.0
    %1479 = vmatpush1.msra.mxu0 %v1443
    %1480 = vmatprep.subr.mxu0 0.0
    %1481 = vmatpush1.msra.mxu0 %v1445
    %1482 = vmatprep.subr.mxu0 0.0
    %1483 = vmatpush1.msra.mxu0 %v1447
    %1484 = vmatprep.subr.mxu0 0.0
    %1485 = vmatpush1.msra.mxu0 %v1449
    %1486 = vmatprep.subr.mxu0 0.0
    %1487 = vmatpush1.msra.mxu0 0.0
    %1488 = vmatprep.subr.mxu0 0.0
    %1489 = vmatpush1.msra.mxu0 0.0
    %1490 = vmatprep.subr.mxu0 0.0
    %1491 = vmatpush1.msra.mxu0 0.0
    %1492 = vmatprep.subr.mxu0 0.0
    %1493 = vmatpush1.msra.mxu0 0.0
    %1494 = vmatprep.subr.mxu0 0.0
    %1495 = vmatpush1.msra.mxu0 0.0
    %1496 = vmatprep.subr.mxu0 0.0
    %1497 = vmatpush1.msra.mxu0 0.0
    %1498 = vmatprep.subr.mxu0 0.0
    %1499 = vmatpush1.msra.mxu0 0.0
    %1500 = vmatprep.subr.mxu0 0.0
    %1501 = vmatpush1.msra.mxu0 0.0
    %1502 = vmatprep.subr.mxu0 0.0
    %1503 = vmatpush1.msra.mxu0 0.0
    %1504 = vmatprep.subr.mxu0 0.0
    %1505 = vmatpush1.msra.mxu0 0.0
    %1506 = vmatprep.subr.mxu0 0.0
    %1507 = vmatpush1.msra.mxu0 0.0
    %1508 = vmatprep.subr.mxu0 0.0
    %1509 = vmatpush1.msra.mxu0 0.0
    %1510 = vmatprep.subr.mxu0 0.0
    %1511 = vmatpush1.msra.mxu0 0.0
    %1512 = vmatprep.subr.mxu0 0.0
    %1513 = vmatpush1.msra.mxu0 0.0
    %1514 = vmatprep.subr.mxu0 0.0
    %1515 = vmatpush1.msra.mxu0 0.0
    %1516 = vmatprep.subr.mxu0 0.0
    %1517 = vmatpush1.msra.mxu0 0.0
    %1518 = vmatprep.subr.mxu0 0.0
    %1519 = vmatpush1.msra.mxu0 0.0
    %1520 = vmatprep.subr.mxu0 0.0
    %1521 = vmatpush1.msra.mxu0 0.0
    %1522 = vmatprep.subr.mxu0 0.0
    %1523 = vmatpush1.msra.mxu0 0.0
    %1524 = vmatprep.subr.mxu0 0.0
    %1525 = vmatpush1.msra.mxu0 0.0
    %1526 = vmatprep.subr.mxu0 0.0
    %1527 = vmatpush1.msra.mxu0 0.0
    %1528 = vmatprep.subr.mxu0 0.0
    %1529 = vmatpush1.msra.mxu0 0.0
    %1530 = vmatprep.subr.mxu0 0.0
    %1531 = vmatpush1.msra.mxu0 0.0
    %1532 = vmatprep.subr.mxu0 0.0
    %1533 = vmatpush1.msra.mxu0 0.0
    %1534 = vmatprep.subr.mxu0 0.0
    %1535 = vmatpush1.msra.mxu0 0.0
    %1536 = vmatprep.subr.mxu0 0.0
    %1537 = vmatpush1.msra.mxu0 0.0
    %1538 = vmatprep.mubr.f32.mxu0 0.0
    %1539 = vmatmul.mubr.f32.gmra.mrb[0].mxu0 %v1457
    %v1540 = vpop.f32.mrb[0].mxu0
    %v1541 = vadd.f32 0.0, %v1540
    %v1542 = vpop.f32.mrb[0].mxu0
    %1543 = vmatprep.mubr.f32.mxu0 0.0
    %1544 = vmatmul.mubr.f32.gmra.mrb[0].mxu0 %v1460
    %v1545 = vpop.f32.mrb[0].mxu0
    %v1546 = vadd.f32 0.0, %v1545
    %v1547 = vpop.f32.mrb[0].mxu0
    %1548 = vmatprep.mubr.f32.mxu0 0.0
    %1549 = vmatmul.mubr.f32.gmra.mrb[0].mxu0 %v1463
    %v1550 = vpop.f32.mrb[0].mxu0
    %v1551 = vadd.f32 0.0, %v1550
    %v1552 = vpop.f32.mrb[0].mxu0
    %1553 = vmatprep.mubr.f32.mxu0 0.0
    %1554 = vmatmul.mubr.f32.gmra.mrb[0].mxu0 %v1466
    %v1555 = vpop.f32.mrb[0].mxu0
    %v1556 = vadd.f32 0.0, %v1555
    %v1557 = vpop.f32.mrb[0].mxu0
    %1558 = vmatprep.mubr.f32.mxu0 0.0
    %1559 = vmatmul.mubr.f32.gmra.mrb[0].mxu0 %v1469
    %v1560 = vpop.f32.mrb[0].mxu0
    %v1561 = vadd.f32 0.0, %v1560
    %v1562 = vpop.f32.mrb[0].mxu0
    %1563 = vmatprep.mubr.f32.mxu0 0.0
    %1564 = vmatmul.mubr.f32.gmra.mrb[0].mxu0 %v1472
    %v1565 = vpop.f32.mrb[0].mxu0
    %v1566 = vadd.f32 0.0, %v1565
    %v1567 = vpop.f32.mrb[0].mxu0
    %1568 = vdwg.mxu0
    %1569 = vrot.lane.b32.xlu0 %v316, 40
    %v1570 = vpop.permute.xlu0 %1569
    %1571 = vrot.lane.b32.xlu0 %v321, 40
    %v1572 = vpop.permute.xlu0 %1571
    %1573 = vrot.lane.b32.xlu0 %v326, 40
    %v1574 = vpop.permute.xlu0 %1573
    %1575 = vrot.lane.b32.xlu0 %v331, 40
    %v1576 = vpop.permute.xlu0 %1575
    %1577 = vrot.lane.b32.xlu0 %v336, 40
    %v1578 = vpop.permute.xlu0 %1577
    %1579 = vrot.lane.b32.xlu0 %v341, 40
    %v1580 = vpop.permute.xlu0 %1579
    %v1588 = vsel %vm911, %v1165, 0
    %v1591 = vsel %vm911, %v1167, 0
    %v1594 = vsel %vm911, %v1169, 0
    %v1597 = vsel %vm911, %v1171, 0
    %v1600 = vsel %vm911, %v1173, 0
    %v1603 = vsel %vm911, %v1175, 0
    %1605 = vmatprep.subr.mxu0 0.0
    %1606 = vmatpush1.msra.mxu0 %v1570
    %1607 = vmatprep.subr.mxu0 0.0
    %1608 = vmatpush1.msra.mxu0 %v1572
    %1609 = vmatprep.subr.mxu0 0.0
    %1610 = vmatpush1.msra.mxu0 %v1574
    %1611 = vmatprep.subr.mxu0 0.0
    %1612 = vmatpush1.msra.mxu0 %v1576
    %1613 = vmatprep.subr.mxu0 0.0
    %1614 = vmatpush1.msra.mxu0 %v1578
    %1615 = vmatprep.subr.mxu0 0.0
    %1616 = vmatpush1.msra.mxu0 %v1580
    %1617 = vmatprep.subr.mxu0 0.0
    %1618 = vmatpush1.msra.mxu0 0.0
    %1619 = vmatprep.subr.mxu0 0.0
    %1620 = vmatpush1.msra.mxu0 0.0
    %1621 = vmatprep.subr.mxu0 0.0
    %1622 = vmatpush1.msra.mxu0 0.0
    %1623 = vmatprep.subr.mxu0 0.0
    %1624 = vmatpush1.msra.mxu0 0.0
    %1625 = vmatprep.subr.mxu0 0.0
    %1626 = vmatpush1.msra.mxu0 0.0
    %1627 = vmatprep.subr.mxu0 0.0
    %1628 = vmatpush1.msra.mxu0 0.0
    %1629 = vmatprep.subr.mxu0 0.0
    %1630 = vmatpush1.msra.mxu0 0.0
    %1631 = vmatprep.subr.mxu0 0.0
    %1632 = vmatpush1.msra.mxu0 0.0
    %1633 = vmatprep.subr.mxu0 0.0
    %1634 = vmatpush1.msra.mxu0 0.0
    %1635 = vmatprep.subr.mxu0 0.0
    %1636 = vmatpush1.msra.mxu0 0.0
    %1637 = vmatprep.subr.mxu0 0.0
    %1638 = vmatpush1.msra.mxu0 0.0
    %1639 = vmatprep.subr.mxu0 0.0
    %1640 = vmatpush1.msra.mxu0 0.0
    %1641 = vmatprep.subr.mxu0 0.0
    %1642 = vmatpush1.msra.mxu0 0.0
    %1643 = vmatprep.subr.mxu0 0.0
    %1644 = vmatpush1.msra.mxu0 0.0
    %1645 = vmatprep.subr.mxu0 0.0
    %1646 = vmatpush1.msra.mxu0 0.0
    %1647 = vmatprep.subr.mxu0 0.0
    %1648 = vmatpush1.msra.mxu0 0.0
    %1649 = vmatprep.subr.mxu0 0.0
    %1650 = vmatpush1.msra.mxu0 0.0
    %1651 = vmatprep.subr.mxu0 0.0
    %1652 = vmatpush1.msra.mxu0 0.0
    %1653 = vmatprep.subr.mxu0 0.0
    %1654 = vmatpush1.msra.mxu0 0.0
    %1655 = vmatprep.subr.mxu0 0.0
    %1656 = vmatpush1.msra.mxu0 0.0
    %1657 = vmatprep.subr.mxu0 0.0
    %1658 = vmatpush1.msra.mxu0 0.0
    %1659 = vmatprep.subr.mxu0 0.0
    %1660 = vmatpush1.msra.mxu0 0.0
    %1661 = vmatprep.subr.mxu0 0.0
    %1662 = vmatpush1.msra.mxu0 0.0
    %1663 = vmatprep.subr.mxu0 0.0
    %1664 = vmatpush1.msra.mxu0 0.0
    %1665 = vmatprep.subr.mxu0 0.0
    %1666 = vmatpush1.msra.mxu0 0.0
    %1667 = vmatprep.subr.mxu0 0.0
    %1668 = vmatpush1.msra.mxu0 0.0
    %1669 = vmatprep.mubr.f32.mxu0 0.0
    %1670 = vmatmul.mubr.f32.gmra.mrb[0].mxu0 %v1588
    %v1671 = vpop.f32.mrb[0].mxu0
    %v1672 = vadd.f32 0.0, %v1671
    %v1673 = vpop.f32.mrb[0].mxu0
    %1674 = vmatprep.mubr.f32.mxu0 0.0
    %1675 = vmatmul.mubr.f32.gmra.mrb[0].mxu0 %v1591
    %v1676 = vpop.f32.mrb[0].mxu0
    %v1677 = vadd.f32 0.0, %v1676
    %v1678 = vpop.f32.mrb[0].mxu0
    %1679 = vmatprep.mubr.f32.mxu0 0.0
    %1680 = vmatmul.mubr.f32.gmra.mrb[0].mxu0 %v1594
    %v1681 = vpop.f32.mrb[0].mxu0
    %v1682 = vadd.f32 0.0, %v1681
    %v1683 = vpop.f32.mrb[0].mxu0
    %1684 = vmatprep.mubr.f32.mxu0 0.0
    %1685 = vmatmul.mubr.f32.gmra.mrb[0].mxu0 %v1597
    %v1686 = vpop.f32.mrb[0].mxu0
    %v1687 = vadd.f32 0.0, %v1686
    %v1688 = vpop.f32.mrb[0].mxu0
    %1689 = vmatprep.mubr.f32.mxu0 0.0
    %1690 = vmatmul.mubr.f32.gmra.mrb[0].mxu0 %v1600
    %v1691 = vpop.f32.mrb[0].mxu0
    %v1692 = vadd.f32 0.0, %v1691
    %v1693 = vpop.f32.mrb[0].mxu0
    %1694 = vmatprep.mubr.f32.mxu0 0.0
    %1695 = vmatmul.mubr.f32.gmra.mrb[0].mxu0 %v1603
    %v1696 = vpop.f32.mrb[0].mxu0
    %v1697 = vadd.f32 0.0, %v1696
    %v1698 = vpop.f32.mrb[0].mxu0
    %1699 = vdwg.mxu0
    %1706 = vrot.lane.b32.xlu0 %v1410, 8
    %v1707 = vpop.permute.xlu0 %1706
    %1708 = vrot.lane.b32.xlu0 %v1415, 8
    %v1709 = vpop.permute.xlu0 %1708
    %1710 = vrot.lane.b32.xlu0 %v1420, 8
    %v1711 = vpop.permute.xlu0 %1710
    %1712 = vrot.lane.b32.xlu0 %v1425, 8
    %v1713 = vpop.permute.xlu0 %1712
    %1714 = vrot.lane.b32.xlu0 %v1430, 8
    %v1715 = vpop.permute.xlu0 %1714
    %1716 = vrot.lane.b32.xlu0 %v1435, 8
    %v1717 = vpop.permute.xlu0 %1716
    %1730 = vrot.lane.b32.xlu0 %v1541, 16
    %v1731 = vpop.permute.xlu0 %1730
    %1732 = vrot.lane.b32.xlu0 %v1546, 16
    %v1733 = vpop.permute.xlu0 %1732
    %1734 = vrot.lane.b32.xlu0 %v1551, 16
    %v1735 = vpop.permute.xlu0 %1734
    %1736 = vrot.lane.b32.xlu0 %v1556, 16
    %v1737 = vpop.permute.xlu0 %1736
    %1738 = vrot.lane.b32.xlu0 %v1561, 16
    %v1739 = vpop.permute.xlu0 %1738
    %1740 = vrot.lane.b32.xlu0 %v1566, 16
    %v1741 = vpop.permute.xlu0 %1740
    %1754 = vrot.lane.b32.xlu0 %v1672, 24
    %v1755 = vpop.permute.xlu0 %1754
    %1756 = vrot.lane.b32.xlu0 %v1677, 24
    %v1757 = vpop.permute.xlu0 %1756
    %1758 = vrot.lane.b32.xlu0 %v1682, 24
    %v1759 = vpop.permute.xlu0 %1758
    %1760 = vrot.lane.b32.xlu0 %v1687, 24
    %v1761 = vpop.permute.xlu0 %1760
    %1762 = vrot.lane.b32.xlu0 %v1692, 24
    %v1763 = vpop.permute.xlu0 %1762
    %1764 = vrot.lane.b32.xlu0 %v1697, 24
    %v1765 = vpop.permute.xlu0 %1764
    %v1772 = vsel %vm362, %v1279, %v1707
    %v1773 = vsel %vm362, %v1284, %v1709
    %v1774 = vsel %vm362, %v1289, %v1711
    %v1775 = vsel %vm362, %v1294, %v1713
    %v1776 = vsel %vm362, %v1299, %v1715
    %v1777 = vsel %vm362, %v1304, %v1717
    %vm1778 = vcmask 130048
    %v1779 = vsel %vm1778, %v1772, %v1731
    %v1780 = vsel %vm1778, %v1773, %v1733
    %v1781 = vsel %vm1778, %v1774, %v1735
    %v1782 = vsel %vm1778, %v1775, %v1737
    %v1783 = vsel %vm1778, %v1776, %v1739
    %v1784 = vsel %vm1778, %v1777, %v1741
    %vm1785 = vcmask 195584
    %v1786 = vsel %vm1785, %v1779, %v1755
    %v1787 = vsel %vm1785, %v1780, %v1757
    %v1788 = vsel %vm1785, %v1781, %v1759
    %v1789 = vsel %vm1785, %v1782, %v1761
    %v1790 = vsel %vm1785, %v1783, %v1763
    %v1791 = vsel %vm1785, %v1784, %v1765
    %v1792 = vld [vmem:[%s6] sm:$0xff]
    %v1793 = vld [vmem:[%s6 + $0x8] sm:$0xff]
    %v1794 = vld [vmem:[%s6 + $0x10] sm:$0xff]
    %v1795 = vld [vmem:[%s6 + $0x18] sm:$0xff]
    %v1796 = vld [vmem:[%s7] sm:$0x1]
    %v1798 = vlaneseq
    %v1799 = vshrl.u32 %v1798, 7
    %v1800 = vsub.s32 0, %v1799
    %v1801 = vrot.slane %v1796, %v1800
    %v1804 = vsel %vm230, %v1786, 0
    %v1807 = vsel %vm230, %v1787, 0
    %v1810 = vsel %vm230, %v1788, 0
    %v1813 = vsel %vm230, %v1789, 0
    %v1816 = vsel %vm230, %v1790, 0
    %v1819 = vsel %vm230, %v1791, 0
    %1821 = vmatprep.subr.mxu0 0.0
    %1822 = vmatpush1.msra.mxu0 %v1792
    %1823 = vmatprep.subr.mxu0 0.0
    %1824 = vmatpush1.msra.mxu0 %v1793
    %1825 = vmatprep.subr.mxu0 0.0
    %1826 = vmatpush1.msra.mxu0 %v1794
    %1827 = vmatprep.subr.mxu0 0.0
    %1828 = vmatpush1.msra.mxu0 %v1795
    %1829 = vmatprep.subr.mxu0 0.0
    %1830 = vmatpush1.msra.mxu0 0.0
    %1831 = vmatprep.subr.mxu0 0.0
    %1832 = vmatpush1.msra.mxu0 0.0
    %1833 = vmatprep.subr.mxu0 0.0
    %1834 = vmatpush1.msra.mxu0 0.0
    %1835 = vmatprep.subr.mxu0 0.0
    %1836 = vmatpush1.msra.mxu0 0.0
    %1837 = vmatprep.subr.mxu0 0.0
    %1838 = vmatpush1.msra.mxu0 0.0
    %1839 = vmatprep.subr.mxu0 0.0
    %1840 = vmatpush1.msra.mxu0 0.0
    %1841 = vmatprep.subr.mxu0 0.0
    %1842 = vmatpush1.msra.mxu0 0.0
    %1843 = vmatprep.subr.mxu0 0.0
    %1844 = vmatpush1.msra.mxu0 0.0
    %1845 = vmatprep.subr.mxu0 0.0
    %1846 = vmatpush1.msra.mxu0 0.0
    %1847 = vmatprep.subr.mxu0 0.0
    %1848 = vmatpush1.msra.mxu0 0.0
    %1849 = vmatprep.subr.mxu0 0.0
    %1850 = vmatpush1.msra.mxu0 0.0
    %1851 = vmatprep.subr.mxu0 0.0
    %1852 = vmatpush1.msra.mxu0 0.0
    %1853 = vmatprep.subr.mxu0 0.0
    %1854 = vmatpush1.msra.mxu0 0.0
    %1855 = vmatprep.subr.mxu0 0.0
    %1856 = vmatpush1.msra.mxu0 0.0
    %1857 = vmatprep.subr.mxu0 0.0
    %1858 = vmatpush1.msra.mxu0 0.0
    %1859 = vmatprep.subr.mxu0 0.0
    %1860 = vmatpush1.msra.mxu0 0.0
    %1861 = vmatprep.subr.mxu0 0.0
    %1862 = vmatpush1.msra.mxu0 0.0
    %1863 = vmatprep.subr.mxu0 0.0
    %1864 = vmatpush1.msra.mxu0 0.0
    %1865 = vmatprep.subr.mxu0 0.0
    %1866 = vmatpush1.msra.mxu0 0.0
    %1867 = vmatprep.subr.mxu0 0.0
    %1868 = vmatpush1.msra.mxu0 0.0
    %1869 = vmatprep.subr.mxu0 0.0
    %1870 = vmatpush1.msra.mxu0 0.0
    %1871 = vmatprep.subr.mxu0 0.0
    %1872 = vmatpush1.msra.mxu0 0.0
    %1873 = vmatprep.subr.mxu0 0.0
    %1874 = vmatpush1.msra.mxu0 0.0
    %1875 = vmatprep.subr.mxu0 0.0
    %1876 = vmatpush1.msra.mxu0 0.0
    %1877 = vmatprep.subr.mxu0 0.0
    %1878 = vmatpush1.msra.mxu0 0.0
    %1879 = vmatprep.subr.mxu0 0.0
    %1880 = vmatpush1.msra.mxu0 0.0
    %1881 = vmatprep.subr.mxu0 0.0
    %1882 = vmatpush1.msra.mxu0 0.0
    %1883 = vmatprep.subr.mxu0 0.0
    %1884 = vmatpush1.msra.mxu0 0.0
    %1885 = vmatprep.mubr.f32.mxu0 0.0
    %1886 = vmatmul.mubr.f32.gmra.mrb[0].mxu0 %v1804
    %v1887 = vpop.f32.mrb[0].mxu0
    %v1888 = vadd.f32 %v1801, %v1887
    %v1889 = vpop.f32.mrb[0].mxu0
    %1890 = vmatprep.mubr.f32.mxu0 0.0
    %1891 = vmatmul.mubr.f32.gmra.mrb[0].mxu0 %v1807
    %v1892 = vpop.f32.mrb[0].mxu0
    %v1893 = vadd.f32 %v1801, %v1892
    %v1894 = vpop.f32.mrb[0].mxu0
    %1895 = vmatprep.mubr.f32.mxu0 0.0
    %1896 = vmatmul.mubr.f32.gmra.mrb[0].mxu0 %v1810
    %v1897 = vpop.f32.mrb[0].mxu0
    %v1898 = vadd.f32 %v1801, %v1897
    %v1899 = vpop.f32.mrb[0].mxu0
    %1900 = vmatprep.mubr.f32.mxu0 0.0
    %1901 = vmatmul.mubr.f32.gmra.mrb[0].mxu0 %v1813
    %v1902 = vpop.f32.mrb[0].mxu0
    %v1903 = vadd.f32 %v1801, %v1902
    %v1904 = vpop.f32.mrb[0].mxu0
    %1905 = vmatprep.mubr.f32.mxu0 0.0
    %1906 = vmatmul.mubr.f32.gmra.mrb[0].mxu0 %v1816
    %v1907 = vpop.f32.mrb[0].mxu0
    %v1908 = vadd.f32 %v1801, %v1907
    %v1909 = vpop.f32.mrb[0].mxu0
    %1910 = vmatprep.mubr.f32.mxu0 0.0
    %1911 = vmatmul.mubr.f32.gmra.mrb[0].mxu0 %v1819
    %v1912 = vpop.f32.mrb[0].mxu0
    %v1913 = vadd.f32 %v1801, %v1912
    %v1914 = vpop.f32.mrb[0].mxu0
    %1915 = vdwg.mxu0
    %v1916 = vadd.f32 %v207, %v1888
    %v1917 = vadd.f32 %v208, %v1893
    %v1918 = vadd.f32 %v209, %v1898
    %v1919 = vadd.f32 %v210, %v1903
    %v1920 = vadd.f32 %v211, %v1908
    %v1921 = vadd.f32 %v212, %v1913
    %v1922 = vld [vmem:[%s12] sm:$0x1]
    %v1923 = vld [vmem:[#allocation5] sm:$0x1]
    %v1924 = vsel %vm230, %v1916, 0.0
    %1925 = vadd.xlane.f32.xlu0 %v1924
    %v1926 = vpop.xlane.xlu0 %1925
    %v1927 = vsel %vm230, %v1917, 0.0
    %1928 = vadd.xlane.f32.xlu0 %v1927
    %v1929 = vpop.xlane.xlu0 %1928
    %v1930 = vsel %vm230, %v1918, 0.0
    %1931 = vadd.xlane.f32.xlu0 %v1930
    %v1932 = vpop.xlane.xlu0 %1931
    %v1933 = vsel %vm230, %v1919, 0.0
    %1934 = vadd.xlane.f32.xlu0 %v1933
    %v1935 = vpop.xlane.xlu0 %1934
    %v1936 = vsel %vm230, %v1920, 0.0
    %1937 = vadd.xlane.f32.xlu0 %v1936
    %v1938 = vpop.xlane.xlu0 %1937
    %v1939 = vsel %vm230, %v1921, 0.0
    %1940 = vadd.xlane.f32.xlu0 %v1939
    %v1941 = vpop.xlane.xlu0 %1940
    %v1942 = vrcp.pop 32.0
    %v1943 = vmul.f32 %v1926, %v1942
    %v1944 = vmul.f32 %v1929, %v1942
    %v1945 = vmul.f32 %v1932, %v1942
    %v1946 = vmul.f32 %v1935, %v1942
    %v1947 = vmul.f32 %v1938, %v1942
    %v1948 = vmul.f32 %v1941, %v1942
    %v1949 = vsub.f32 %v1916, %v1943
    %v1950 = vsub.f32 %v1917, %v1944
    %v1951 = vsub.f32 %v1918, %v1945
    %v1952 = vsub.f32 %v1919, %v1946
    %v1953 = vsub.f32 %v1920, %v1947
    %v1954 = vsub.f32 %v1921, %v1948
    %v1955 = vmul.f32 %v1949, %v1949
    %v1956 = vmul.f32 %v1950, %v1950
    %v1957 = vmul.f32 %v1951, %v1951
    %v1958 = vmul.f32 %v1952, %v1952
    %v1959 = vmul.f32 %v1953, %v1953
    %v1960 = vmul.f32 %v1954, %v1954
    %v1961 = vsel %vm230, %v1955, 0.0
    %1962 = vadd.xlane.f32.xlu0 %v1961
    %v1963 = vpop.xlane.xlu0 %1962
    %v1964 = vsel %vm230, %v1956, 0.0
    %1965 = vadd.xlane.f32.xlu0 %v1964
    %v1966 = vpop.xlane.xlu0 %1965
    %v1967 = vsel %vm230, %v1957, 0.0
    %1968 = vadd.xlane.f32.xlu0 %v1967
    %v1969 = vpop.xlane.xlu0 %1968
    %v1970 = vsel %vm230, %v1958, 0.0
    %1971 = vadd.xlane.f32.xlu0 %v1970
    %v1972 = vpop.xlane.xlu0 %1971
    %v1973 = vsel %vm230, %v1959, 0.0
    %1974 = vadd.xlane.f32.xlu0 %v1973
    %v1975 = vpop.xlane.xlu0 %1974
    %v1976 = vsel %vm230, %v1960, 0.0
    %1977 = vadd.xlane.f32.xlu0 %v1976
    %v1978 = vpop.xlane.xlu0 %1977
    %v1979 = vmul.f32 %v1963, %v1942
    %v1980 = vmul.f32 %v1966, %v1942
    %v1981 = vmul.f32 %v1969, %v1942
    %v1982 = vmul.f32 %v1972, %v1942
    %v1983 = vmul.f32 %v1975, %v1942
    %v1984 = vmul.f32 %v1978, %v1942
    %v1985 = vadd.f32 %v1979, 1e-05
    %v1986 = vadd.f32 %v1980, 1e-05
    %v1987 = vadd.f32 %v1981, 1e-05
    %v1988 = vadd.f32 %v1982, 1e-05
    %v1989 = vadd.f32 %v1983, 1e-05
    %v1990 = vadd.f32 %v1984, 1e-05
    %v1991 = vrsqrt.pop %v1985
    %v1992 = vrsqrt.pop %v1986
    %v1993 = vrsqrt.pop %v1987
    %v1994 = vrsqrt.pop %v1988
    %v1995 = vrsqrt.pop %v1989
    %v1996 = vrsqrt.pop %v1990
    %v1997 = vmul.f32 %v1949, %v1991
    %v1998 = vmul.f32 %v1950, %v1992
    %v1999 = vmul.f32 %v1951, %v1993
    %v2000 = vmul.f32 %v1952, %v1994
    %v2001 = vmul.f32 %v1953, %v1995
    %v2002 = vmul.f32 %v1954, %v1996
    %v2004 = vlaneseq
    %v2005 = vshrl.u32 %v2004, 7
    %v2006 = vsub.s32 0, %v2005
    %v2007 = vrot.slane %v1922, %v2006
    %v2009 = vmul.f32 %v1997, %v2007
    %v2010 = vmul.f32 %v1998, %v2007
    %v2011 = vmul.f32 %v1999, %v2007
    %v2012 = vmul.f32 %v2000, %v2007
    %v2013 = vmul.f32 %v2001, %v2007
    %v2014 = vmul.f32 %v2002, %v2007
    %v2016 = vlaneseq
    %v2017 = vshrl.u32 %v2016, 7
    %v2018 = vsub.s32 0, %v2017
    %v2019 = vrot.slane %v1923, %v2018
    %v2021 = vadd.f32 %v2009, %v2019
    %v2022 = vadd.f32 %v2010, %v2019
    %v2023 = vadd.f32 %v2011, %v2019
    %v2024 = vadd.f32 %v2012, %v2019
    %v2025 = vadd.f32 %v2013, %v2019
    %v2026 = vadd.f32 %v2014, %v2019
    %v2027 = vld [vmem:[%s8] sm:$0xff]
    %v2028 = vld [vmem:[%s8 + $0x8] sm:$0xff]
    %v2029 = vld [vmem:[%s8 + $0x10] sm:$0xff]
    %v2030 = vld [vmem:[%s8 + $0x18] sm:$0xff]
    %v2031 = vld [vmem:[%s9] sm:$0x1]
    %v2033 = vlaneseq
    %v2034 = vshrl.u32 %v2033, 7
    %v2035 = vsub.s32 0, %v2034
    %v2036 = vrot.slane %v2031, %v2035
    %v2039 = vsel %vm230, %v2021, 0
    %v2042 = vsel %vm230, %v2022, 0
    %v2045 = vsel %vm230, %v2023, 0
    %v2048 = vsel %vm230, %v2024, 0
    %v2051 = vsel %vm230, %v2025, 0
    %v2054 = vsel %vm230, %v2026, 0
    %2056 = vmatprep.subr.mxu0 0.0
    %2057 = vmatpush1.msra.mxu0 %v2027
    %2058 = vmatprep.subr.mxu0 0.0
    %2059 = vmatpush1.msra.mxu0 %v2028
    %2060 = vmatprep.subr.mxu0 0.0
    %2061 = vmatpush1.msra.mxu0 %v2029
    %2062 = vmatprep.subr.mxu0 0.0
    %2063 = vmatpush1.msra.mxu0 %v2030
    %2064 = vmatprep.subr.mxu0 0.0
    %2065 = vmatpush1.msra.mxu0 0.0
    %2066 = vmatprep.subr.mxu0 0.0
    %2067 = vmatpush1.msra.mxu0 0.0
    %2068 = vmatprep.subr.mxu0 0.0
    %2069 = vmatpush1.msra.mxu0 0.0
    %2070 = vmatprep.subr.mxu0 0.0
    %2071 = vmatpush1.msra.mxu0 0.0
    %2072 = vmatprep.subr.mxu0 0.0
    %2073 = vmatpush1.msra.mxu0 0.0
    %2074 = vmatprep.subr.mxu0 0.0
    %2075 = vmatpush1.msra.mxu0 0.0
    %2076 = vmatprep.subr.mxu0 0.0
    %2077 = vmatpush1.msra.mxu0 0.0
    %2078 = vmatprep.subr.mxu0 0.0
    %2079 = vmatpush1.msra.mxu0 0.0
    %2080 = vmatprep.subr.mxu0 0.0
    %2081 = vmatpush1.msra.mxu0 0.0
    %2082 = vmatprep.subr.mxu0 0.0
    %2083 = vmatpush1.msra.mxu0 0.0
    %2084 = vmatprep.subr.mxu0 0.0
    %2085 = vmatpush1.msra.mxu0 0.0
    %2086 = vmatprep.subr.mxu0 0.0
    %2087 = vmatpush1.msra.mxu0 0.0
    %2088 = vmatprep.subr.mxu0 0.0
    %2089 = vmatpush1.msra.mxu0 0.0
    %2090 = vmatprep.subr.mxu0 0.0
    %2091 = vmatpush1.msra.mxu0 0.0
    %2092 = vmatprep.subr.mxu0 0.0
    %2093 = vmatpush1.msra.mxu0 0.0
    %2094 = vmatprep.subr.mxu0 0.0
    %2095 = vmatpush1.msra.mxu0 0.0
    %2096 = vmatprep.subr.mxu0 0.0
    %2097 = vmatpush1.msra.mxu0 0.0
    %2098 = vmatprep.subr.mxu0 0.0
    %2099 = vmatpush1.msra.mxu0 0.0
    %2100 = vmatprep.subr.mxu0 0.0
    %2101 = vmatpush1.msra.mxu0 0.0
    %2102 = vmatprep.subr.mxu0 0.0
    %2103 = vmatpush1.msra.mxu0 0.0
    %2104 = vmatprep.subr.mxu0 0.0
    %2105 = vmatpush1.msra.mxu0 0.0
    %2106 = vmatprep.subr.mxu0 0.0
    %2107 = vmatpush1.msra.mxu0 0.0
    %2108 = vmatprep.subr.mxu0 0.0
    %2109 = vmatpush1.msra.mxu0 0.0
    %2110 = vmatprep.subr.mxu0 0.0
    %2111 = vmatpush1.msra.mxu0 0.0
    %2112 = vmatprep.subr.mxu0 0.0
    %2113 = vmatpush1.msra.mxu0 0.0
    %2114 = vmatprep.subr.mxu0 0.0
    %2115 = vmatpush1.msra.mxu0 0.0
    %2116 = vmatprep.subr.mxu0 0.0
    %2117 = vmatpush1.msra.mxu0 0.0
    %2118 = vmatprep.subr.mxu0 0.0
    %2119 = vmatpush1.msra.mxu0 0.0
    %2120 = vmatprep.mubr.f32.mxu0 0.0
    %2121 = vmatmul.mubr.f32.gmra.mrb[0].mxu0 %v2039
    %v2122 = vpop.f32.mrb[0].mxu0
    %v2123 = vadd.f32 %v2036, %v2122
    %v2124 = vpop.f32.mrb[0].mxu0
    %2125 = vmatprep.mubr.f32.mxu0 0.0
    %2126 = vmatmul.mubr.f32.gmra.mrb[0].mxu0 %v2042
    %v2127 = vpop.f32.mrb[0].mxu0
    %v2128 = vadd.f32 %v2036, %v2127
    %v2129 = vpop.f32.mrb[0].mxu0
    %2130 = vmatprep.mubr.f32.mxu0 0.0
    %2131 = vmatmul.mubr.f32.gmra.mrb[0].mxu0 %v2045
    %v2132 = vpop.f32.mrb[0].mxu0
    %v2133 = vadd.f32 %v2036, %v2132
    %v2134 = vpop.f32.mrb[0].mxu0
    %2135 = vmatprep.mubr.f32.mxu0 0.0
    %2136 = vmatmul.mubr.f32.gmra.mrb[0].mxu0 %v2048
    %v2137 = vpop.f32.mrb[0].mxu0
    %v2138 = vadd.f32 %v2036, %v2137
    %v2139 = vpop.f32.mrb[0].mxu0
    %2140 = vmatprep.mubr.f32.mxu0 0.0
    %2141 = vmatmul.mubr.f32.gmra.mrb[0].mxu0 %v2051
    %v2142 = vpop.f32.mrb[0].mxu0
    %v2143 = vadd.f32 %v2036, %v2142
    %v2144 = vpop.f32.mrb[0].mxu0
    %2145 = vmatprep.mubr.f32.mxu0 0.0
    %2146 = vmatmul.mubr.f32.gmra.mrb[0].mxu0 %v2054
    %v2147 = vpop.f32.mrb[0].mxu0
    %v2148 = vadd.f32 %v2036, %v2147
    %v2149 = vpop.f32.mrb[0].mxu0
    %2150 = vdwg.mxu0
    %v2151 = vmax.f32 %v2123, 0.0
    %v2152 = vmax.f32 %v2128, 0.0
    %v2153 = vmax.f32 %v2133, 0.0
    %v2154 = vmax.f32 %v2138, 0.0
    %v2155 = vmax.f32 %v2143, 0.0
    %v2156 = vmax.f32 %v2148, 0.0
    %v2157 = vld [vmem:[%s10] sm:$0xff]
    %v2158 = vld [vmem:[%s10 + $0x8] sm:$0xff]
    %v2159 = vld [vmem:[%s10 + $0x10] sm:$0xff]
    %v2160 = vld [vmem:[%s10 + $0x18] sm:$0xff]
    %v2161 = vld [vmem:[%s10 + $0x20] sm:$0xff]
    %v2162 = vld [vmem:[%s10 + $0x28] sm:$0xff]
    %v2163 = vld [vmem:[%s10 + $0x30] sm:$0xff]
    %v2164 = vld [vmem:[%s10 + $0x38] sm:$0xff]
    %v2165 = vld [vmem:[%s11] sm:$0x1]
    %v2167 = vlaneseq
    %v2168 = vshrl.u32 %v2167, 7
    %v2169 = vsub.s32 0, %v2168
    %v2170 = vrot.slane %v2165, %v2169
    %vm2172 = vcmask 523264
    %v2174 = vsel %vm2172, %v2151, 0
    %v2177 = vsel %vm2172, %v2152, 0
    %v2180 = vsel %vm2172, %v2153, 0
    %v2183 = vsel %vm2172, %v2154, 0
    %v2186 = vsel %vm2172, %v2155, 0
    %v2189 = vsel %vm2172, %v2156, 0
    %2191 = vmatprep.subr.mxu0 0.0
    %2192 = vmatpush1.msra.mxu0 %v2157
    %2193 = vmatprep.subr.mxu0 0.0
    %2194 = vmatpush1.msra.mxu0 %v2158
    %2195 = vmatprep.subr.mxu0 0.0
    %2196 = vmatpush1.msra.mxu0 %v2159
    %2197 = vmatprep.subr.mxu0 0.0
    %2198 = vmatpush1.msra.mxu0 %v2160
    %2199 = vmatprep.subr.mxu0 0.0
    %2200 = vmatpush1.msra.mxu0 %v2161
    %2201 = vmatprep.subr.mxu0 0.0
    %2202 = vmatpush1.msra.mxu0 %v2162
    %2203 = vmatprep.subr.mxu0 0.0
    %2204 = vmatpush1.msra.mxu0 %v2163
    %2205 = vmatprep.subr.mxu0 0.0
    %2206 = vmatpush1.msra.mxu0 %v2164
    %2207 = vmatprep.subr.mxu0 0.0
    %2208 = vmatpush1.msra.mxu0 0.0
    %2209 = vmatprep.subr.mxu0 0.0
    %2210 = vmatpush1.msra.mxu0 0.0
    %2211 = vmatprep.subr.mxu0 0.0
    %2212 = vmatpush1.msra.mxu0 0.0
    %2213 = vmatprep.subr.mxu0 0.0
    %2214 = vmatpush1.msra.mxu0 0.0
    %2215 = vmatprep.subr.mxu0 0.0
    %2216 = vmatpush1.msra.mxu0 0.0
    %2217 = vmatprep.subr.mxu0 0.0
    %2218 = vmatpush1.msra.mxu0 0.0
    %2219 = vmatprep.subr.mxu0 0.0
    %2220 = vmatpush1.msra.mxu0 0.0
    %2221 = vmatprep.subr.mxu0 0.0
    %2222 = vmatpush1.msra.mxu0 0.0
    %2223 = vmatprep.subr.mxu0 0.0
    %2224 = vmatpush1.msra.mxu0 0.0
    %2225 = vmatprep.subr.mxu0 0.0
    %2226 = vmatpush1.msra.mxu0 0.0
    %2227 = vmatprep.subr.mxu0 0.0
    %2228 = vmatpush1.msra.mxu0 0.0
    %2229 = vmatprep.subr.mxu0 0.0
    %2230 = vmatpush1.msra.mxu0 0.0
    %2231 = vmatprep.subr.mxu0 0.0
    %2232 = vmatpush1.msra.mxu0 0.0
    %2233 = vmatprep.subr.mxu0 0.0
    %2234 = vmatpush1.msra.mxu0 0.0
    %2235 = vmatprep.subr.mxu0 0.0
    %2236 = vmatpush1.msra.mxu0 0.0
    %2237 = vmatprep.subr.mxu0 0.0
    %2238 = vmatpush1.msra.mxu0 0.0
    %2239 = vmatprep.subr.mxu0 0.0
    %2240 = vmatpush1.msra.mxu0 0.0
    %2241 = vmatprep.subr.mxu0 0.0
    %2242 = vmatpush1.msra.mxu0 0.0
    %2243 = vmatprep.subr.mxu0 0.0
    %2244 = vmatpush1.msra.mxu0 0.0
    %2245 = vmatprep.subr.mxu0 0.0
    %2246 = vmatpush1.msra.mxu0 0.0
    %2247 = vmatprep.subr.mxu0 0.0
    %2248 = vmatpush1.msra.mxu0 0.0
    %2249 = vmatprep.subr.mxu0 0.0
    %2250 = vmatpush1.msra.mxu0 0.0
    %2251 = vmatprep.subr.mxu0 0.0
    %2252 = vmatpush1.msra.mxu0 0.0
    %2253 = vmatprep.subr.mxu0 0.0
    %2254 = vmatpush1.msra.mxu0 0.0
    %2255 = vmatprep.mubr.f32.mxu0 0.0
    %2256 = vmatmul.mubr.f32.gmra.mrb[0].mxu0 %v2174
    %v2257 = vpop.f32.mrb[0].mxu0
    %v2258 = vadd.f32 %v2170, %v2257
    %v2259 = vpop.f32.mrb[0].mxu0
    %2260 = vmatprep.mubr.f32.mxu0 0.0
    %2261 = vmatmul.mubr.f32.gmra.mrb[0].mxu0 %v2177
    %v2262 = vpop.f32.mrb[0].mxu0
    %v2263 = vadd.f32 %v2170, %v2262
    %v2264 = vpop.f32.mrb[0].mxu0
    %2265 = vmatprep.mubr.f32.mxu0 0.0
    %2266 = vmatmul.mubr.f32.gmra.mrb[0].mxu0 %v2180
    %v2267 = vpop.f32.mrb[0].mxu0
    %v2268 = vadd.f32 %v2170, %v2267
    %v2269 = vpop.f32.mrb[0].mxu0
    %2270 = vmatprep.mubr.f32.mxu0 0.0
    %2271 = vmatmul.mubr.f32.gmra.mrb[0].mxu0 %v2183
    %v2272 = vpop.f32.mrb[0].mxu0
    %v2273 = vadd.f32 %v2170, %v2272
    %v2274 = vpop.f32.mrb[0].mxu0
    %2275 = vmatprep.mubr.f32.mxu0 0.0
    %2276 = vmatmul.mubr.f32.gmra.mrb[0].mxu0 %v2186
    %v2277 = vpop.f32.mrb[0].mxu0
    %v2278 = vadd.f32 %v2170, %v2277
    %v2279 = vpop.f32.mrb[0].mxu0
    %2280 = vmatprep.mubr.f32.mxu0 0.0
    %2281 = vmatmul.mubr.f32.gmra.mrb[0].mxu0 %v2189
    %v2282 = vpop.f32.mrb[0].mxu0
    %v2283 = vadd.f32 %v2170, %v2282
    %v2284 = vpop.f32.mrb[0].mxu0
    %2285 = vdwg.mxu0
    %v2286 = vadd.f32 %v2021, %v2258
    %v2287 = vadd.f32 %v2022, %v2263
    %v2288 = vadd.f32 %v2023, %v2268
    %v2289 = vadd.f32 %v2024, %v2273
    %v2290 = vadd.f32 %v2025, %v2278
    %v2291 = vadd.f32 %v2026, %v2283
    %v2292 = vld [vmem:[#allocation7] sm:$0x1]
    %v2293 = vld [vmem:[#allocation8] sm:$0x1]
    %v2294 = vsel %vm230, %v2286, 0.0
    %2295 = vadd.xlane.f32.xlu0 %v2294
    %v2296 = vpop.xlane.xlu0 %2295
    %v2297 = vsel %vm230, %v2287, 0.0
    %2298 = vadd.xlane.f32.xlu0 %v2297
    %v2299 = vpop.xlane.xlu0 %2298
    %v2300 = vsel %vm230, %v2288, 0.0
    %2301 = vadd.xlane.f32.xlu0 %v2300
    %v2302 = vpop.xlane.xlu0 %2301
    %v2303 = vsel %vm230, %v2289, 0.0
    %2304 = vadd.xlane.f32.xlu0 %v2303
    %v2305 = vpop.xlane.xlu0 %2304
    %v2306 = vsel %vm230, %v2290, 0.0
    %2307 = vadd.xlane.f32.xlu0 %v2306
    %v2308 = vpop.xlane.xlu0 %2307
    %v2309 = vsel %vm230, %v2291, 0.0
    %2310 = vadd.xlane.f32.xlu0 %v2309
    %v2311 = vpop.xlane.xlu0 %2310
    %v2312 = vmul.f32 %v2296, %v1942
    %v2313 = vmul.f32 %v2299, %v1942
    %v2314 = vmul.f32 %v2302, %v1942
    %v2315 = vmul.f32 %v2305, %v1942
    %v2316 = vmul.f32 %v2308, %v1942
    %v2317 = vmul.f32 %v2311, %v1942
    %v2318 = vsub.f32 %v2286, %v2312
    %v2319 = vsub.f32 %v2287, %v2313
    %v2320 = vsub.f32 %v2288, %v2314
    %v2321 = vsub.f32 %v2289, %v2315
    %v2322 = vsub.f32 %v2290, %v2316
    %v2323 = vsub.f32 %v2291, %v2317
    %v2324 = vmul.f32 %v2318, %v2318
    %v2325 = vmul.f32 %v2319, %v2319
    %v2326 = vmul.f32 %v2320, %v2320
    %v2327 = vmul.f32 %v2321, %v2321
    %v2328 = vmul.f32 %v2322, %v2322
    %v2329 = vmul.f32 %v2323, %v2323
    %v2330 = vsel %vm230, %v2324, 0.0
    %2331 = vadd.xlane.f32.xlu0 %v2330
    %v2332 = vpop.xlane.xlu0 %2331
    %v2333 = vsel %vm230, %v2325, 0.0
    %2334 = vadd.xlane.f32.xlu0 %v2333
    %v2335 = vpop.xlane.xlu0 %2334
    %v2336 = vsel %vm230, %v2326, 0.0
    %2337 = vadd.xlane.f32.xlu0 %v2336
    %v2338 = vpop.xlane.xlu0 %2337
    %v2339 = vsel %vm230, %v2327, 0.0
    %2340 = vadd.xlane.f32.xlu0 %v2339
    %v2341 = vpop.xlane.xlu0 %2340
    %v2342 = vsel %vm230, %v2328, 0.0
    %2343 = vadd.xlane.f32.xlu0 %v2342
    %v2344 = vpop.xlane.xlu0 %2343
    %v2345 = vsel %vm230, %v2329, 0.0
    %2346 = vadd.xlane.f32.xlu0 %v2345
    %v2347 = vpop.xlane.xlu0 %2346
    %v2348 = vmul.f32 %v2332, %v1942
    %v2349 = vmul.f32 %v2335, %v1942
    %v2350 = vmul.f32 %v2338, %v1942
    %v2351 = vmul.f32 %v2341, %v1942
    %v2352 = vmul.f32 %v2344, %v1942
    %v2353 = vmul.f32 %v2347, %v1942
    %v2354 = vadd.f32 %v2348, 1e-05
    %v2355 = vadd.f32 %v2349, 1e-05
    %v2356 = vadd.f32 %v2350, 1e-05
    %v2357 = vadd.f32 %v2351, 1e-05
    %v2358 = vadd.f32 %v2352, 1e-05
    %v2359 = vadd.f32 %v2353, 1e-05
    %v2360 = vrsqrt.pop %v2354
    %v2361 = vrsqrt.pop %v2355
    %v2362 = vrsqrt.pop %v2356
    %v2363 = vrsqrt.pop %v2357
    %v2364 = vrsqrt.pop %v2358
    %v2365 = vrsqrt.pop %v2359
    %v2366 = vmul.f32 %v2318, %v2360
    %v2367 = vmul.f32 %v2319, %v2361
    %v2368 = vmul.f32 %v2320, %v2362
    %v2369 = vmul.f32 %v2321, %v2363
    %v2370 = vmul.f32 %v2322, %v2364
    %v2371 = vmul.f32 %v2323, %v2365
    %v2373 = vlaneseq
    %v2374 = vshrl.u32 %v2373, 7
    %v2375 = vsub.s32 0, %v2374
    %v2376 = vrot.slane %v2292, %v2375
    %v2378 = vmul.f32 %v2366, %v2376
    %v2379 = vmul.f32 %v2367, %v2376
    %v2380 = vmul.f32 %v2368, %v2376
    %v2381 = vmul.f32 %v2369, %v2376
    %v2382 = vmul.f32 %v2370, %v2376
    %v2383 = vmul.f32 %v2371, %v2376
    %v2385 = vlaneseq
    %v2386 = vshrl.u32 %v2385, 7
    %v2387 = vsub.s32 0, %v2386
    %v2388 = vrot.slane %v2293, %v2387
    %v2390 = vadd.f32 %v2378, %v2388
    %v2391 = vadd.f32 %v2379, %v2388
    %v2392 = vadd.f32 %v2380, %v2388
    %v2393 = vadd.f32 %v2381, %v2388
    %v2394 = vadd.f32 %v2382, %v2388
    %v2395 = vadd.f32 %v2383, %v2388
    %s2396 = scalar_lea.vmem %s4, 32
    %v2397 = vld [vmem:[%s2396] sm:$0xff]
    %v2398 = vld [vmem:[%s2396 + $0x8] sm:$0xff]
    %v2399 = vld [vmem:[%s2396 + $0x10] sm:$0xff]
    %v2400 = vld [vmem:[%s2396 + $0x18] sm:$0xff]
    %s2401 = scalar_lea.vmem %s5, 1
    %v2402 = vld [vmem:[%s2401] sm:$0x1]
    %v2404 = vlaneseq
    %v2405 = vshrl.u32 %v2404, 7
    %v2406 = vsub.s32 0, %v2405
    %v2407 = vrot.slane %v2402, %v2406
    %v2410 = vsel %vm230, %v2390, 0
    %v2413 = vsel %vm230, %v2391, 0
    %v2416 = vsel %vm230, %v2392, 0
    %v2419 = vsel %vm230, %v2393, 0
    %v2422 = vsel %vm230, %v2394, 0
    %v2425 = vsel %vm230, %v2395, 0
    %2427 = vmatprep.subr.mxu0 0.0
    %2428 = vmatpush1.msra.mxu0 %v2397
    %2429 = vmatprep.subr.mxu0 0.0
    %2430 = vmatpush1.msra.mxu0 %v2398
    %2431 = vmatprep.subr.mxu0 0.0
    %2432 = vmatpush1.msra.mxu0 %v2399
    %2433 = vmatprep.subr.mxu0 0.0
    %2434 = vmatpush1.msra.mxu0 %v2400
    %2435 = vmatprep.subr.mxu0 0.0
    %2436 = vmatpush1.msra.mxu0 0.0
    %2437 = vmatprep.subr.mxu0 0.0
    %2438 = vmatpush1.msra.mxu0 0.0
    %2439 = vmatprep.subr.mxu0 0.0
    %2440 = vmatpush1.msra.mxu0 0.0
    %2441 = vmatprep.subr.mxu0 0.0
    %2442 = vmatpush1.msra.mxu0 0.0
    %2443 = vmatprep.subr.mxu0 0.0
    %2444 = vmatpush1.msra.mxu0 0.0
    %2445 = vmatprep.subr.mxu0 0.0
    %2446 = vmatpush1.msra.mxu0 0.0
    %2447 = vmatprep.subr.mxu0 0.0
    %2448 = vmatpush1.msra.mxu0 0.0
    %2449 = vmatprep.subr.mxu0 0.0
    %2450 = vmatpush1.msra.mxu0 0.0
    %2451 = vmatprep.subr.mxu0 0.0
    %2452 = vmatpush1.msra.mxu0 0.0
    %2453 = vmatprep.subr.mxu0 0.0
    %2454 = vmatpush1.msra.mxu0 0.0
    %2455 = vmatprep.subr.mxu0 0.0
    %2456 = vmatpush1.msra.mxu0 0.0
    %2457 = vmatprep.subr.mxu0 0.0
    %2458 = vmatpush1.msra.mxu0 0.0
    %2459 = vmatprep.subr.mxu0 0.0
    %2460 = vmatpush1.msra.mxu0 0.0
    %2461 = vmatprep.subr.mxu0 0.0
    %2462 = vmatpush1.msra.mxu0 0.0
    %2463 = vmatprep.subr.mxu0 0.0
    %2464 = vmatpush1.msra.mxu0 0.0
    %2465 = vmatprep.subr.mxu0 0.0
    %2466 = vmatpush1.msra.mxu0 0.0
    %2467 = vmatprep.subr.mxu0 0.0
    %2468 = vmatpush1.msra.mxu0 0.0
    %2469 = vmatprep.subr.mxu0 0.0
    %2470 = vmatpush1.msra.mxu0 0.0
    %2471 = vmatprep.subr.mxu0 0.0
    %2472 = vmatpush1.msra.mxu0 0.0
    %2473 = vmatprep.subr.mxu0 0.0
    %2474 = vmatpush1.msra.mxu0 0.0
    %2475 = vmatprep.subr.mxu0 0.0
    %2476 = vmatpush1.msra.mxu0 0.0
    %2477 = vmatprep.subr.mxu0 0.0
    %2478 = vmatpush1.msra.mxu0 0.0
    %2479 = vmatprep.subr.mxu0 0.0
    %2480 = vmatpush1.msra.mxu0 0.0
    %2481 = vmatprep.subr.mxu0 0.0
    %2482 = vmatpush1.msra.mxu0 0.0
    %2483 = vmatprep.subr.mxu0 0.0
    %2484 = vmatpush1.msra.mxu0 0.0
    %2485 = vmatprep.subr.mxu0 0.0
    %2486 = vmatpush1.msra.mxu0 0.0
    %2487 = vmatprep.subr.mxu0 0.0
    %2488 = vmatpush1.msra.mxu0 0.0
    %2489 = vmatprep.subr.mxu0 0.0
    %2490 = vmatpush1.msra.mxu0 0.0
    %2491 = vmatprep.mubr.f32.mxu0 0.0
    %2492 = vmatmul.mubr.f32.gmra.mrb[0].mxu0 %v2410
    %v2493 = vpop.f32.mrb[0].mxu0
    %v2494 = vadd.f32 %v2407, %v2493
    %v2495 = vpop.f32.mrb[0].mxu0
    %2496 = vmatprep.mubr.f32.mxu0 0.0
    %2497 = vmatmul.mubr.f32.gmra.mrb[0].mxu0 %v2413
    %v2498 = vpop.f32.mrb[0].mxu0
    %v2499 = vadd.f32 %v2407, %v2498
    %v2500 = vpop.f32.mrb[0].mxu0
    %2501 = vmatprep.mubr.f32.mxu0 0.0
    %2502 = vmatmul.mubr.f32.gmra.mrb[0].mxu0 %v2416
    %v2503 = vpop.f32.mrb[0].mxu0
    %v2504 = vadd.f32 %v2407, %v2503
    %v2505 = vpop.f32.mrb[0].mxu0
    %2506 = vmatprep.mubr.f32.mxu0 0.0
    %2507 = vmatmul.mubr.f32.gmra.mrb[0].mxu0 %v2419
    %v2508 = vpop.f32.mrb[0].mxu0
    %v2509 = vadd.f32 %v2407, %v2508
    %v2510 = vpop.f32.mrb[0].mxu0
    %2511 = vmatprep.mubr.f32.mxu0 0.0
    %2512 = vmatmul.mubr.f32.gmra.mrb[0].mxu0 %v2422
    %v2513 = vpop.f32.mrb[0].mxu0
    %v2514 = vadd.f32 %v2407, %v2513
    %v2515 = vpop.f32.mrb[0].mxu0
    %2516 = vmatprep.mubr.f32.mxu0 0.0
    %2517 = vmatmul.mubr.f32.gmra.mrb[0].mxu0 %v2425
    %v2518 = vpop.f32.mrb[0].mxu0
    %v2519 = vadd.f32 %v2407, %v2518
    %v2520 = vpop.f32.mrb[0].mxu0
    %2521 = vdwg.mxu0
    %2528 = vrot.lane.b32.xlu0 %v2494, 96
    %v2529 = vpop.permute.xlu0 %2528
    %2530 = vrot.lane.b32.xlu0 %v2499, 96
    %v2531 = vpop.permute.xlu0 %2530
    %2532 = vrot.lane.b32.xlu0 %v2504, 96
    %v2533 = vpop.permute.xlu0 %2532
    %2534 = vrot.lane.b32.xlu0 %v2509, 96
    %v2535 = vpop.permute.xlu0 %2534
    %2536 = vrot.lane.b32.xlu0 %v2514, 96
    %v2537 = vpop.permute.xlu0 %2536
    %2538 = vrot.lane.b32.xlu0 %v2519, 96
    %v2539 = vpop.permute.xlu0 %2538
    %v2540 = vsel %vm362, %v2494, 0
    %v2542 = vsel %vm362, %v2499, 0
    %v2544 = vsel %vm362, %v2504, 0
    %v2546 = vsel %vm362, %v2509, 0
    %v2548 = vsel %vm362, %v2514, 0
    %v2550 = vsel %vm362, %v2519, 0
    %v2552 = vsel %vm362, %v2529, 0
    %v2554 = vsel %vm362, %v2531, 0
    %v2556 = vsel %vm362, %v2533, 0
    %v2558 = vsel %vm362, %v2535, 0
    %v2560 = vsel %vm362, %v2537, 0
    %v2562 = vsel %vm362, %v2539, 0
    %2564 = vmatprep.subr.mxu0 0.0
    %2565 = vmatpush1.xpose.msra.mxu0 %v2552
    %2566 = vmatprep.subr.mxu0 0.0
    %2567 = vmatpush1.xpose.msra.mxu0 %v2554
    %2568 = vmatprep.subr.mxu0 0.0
    %2569 = vmatpush1.xpose.msra.mxu0 %v2556
    %2570 = vmatprep.subr.mxu0 0.0
    %2571 = vmatpush1.xpose.msra.mxu0 %v2558
    %2572 = vmatprep.subr.mxu0 0.0
    %2573 = vmatpush1.xpose.msra.mxu0 %v2560
    %2574 = vmatprep.subr.mxu0 0.0
    %2575 = vmatpush1.xpose.msra.mxu0 %v2562
    %2576 = vmatprep.subr.mxu0 0.0
    %2577 = vmatpush1.xpose.msra.mxu0 0.0
    %2578 = vmatprep.subr.mxu0 0.0
    %2579 = vmatpush1.xpose.msra.mxu0 0.0
    %2580 = vmatprep.subr.mxu0 0.0
    %2581 = vmatpush1.xpose.msra.mxu0 0.0
    %2582 = vmatprep.subr.mxu0 0.0
    %2583 = vmatpush1.xpose.msra.mxu0 0.0
    %2584 = vmatprep.subr.mxu0 0.0
    %2585 = vmatpush1.xpose.msra.mxu0 0.0
    %2586 = vmatprep.subr.mxu0 0.0
    %2587 = vmatpush1.xpose.msra.mxu0 0.0
    %2588 = vmatprep.subr.mxu0 0.0
    %2589 = vmatpush1.xpose.msra.mxu0 0.0
    %2590 = vmatprep.subr.mxu0 0.0
    %2591 = vmatpush1.xpose.msra.mxu0 0.0
    %2592 = vmatprep.subr.mxu0 0.0
    %2593 = vmatpush1.xpose.msra.mxu0 0.0
    %2594 = vmatprep.subr.mxu0 0.0
    %2595 = vmatpush1.xpose.msra.mxu0 0.0
    %2596 = vmatprep.subr.mxu0 0.0
    %2597 = vmatpush1.xpose.msra.mxu0 0.0
    %2598 = vmatprep.subr.mxu0 0.0
    %2599 = vmatpush1.xpose.msra.mxu0 0.0
    %2600 = vmatprep.subr.mxu0 0.0
    %2601 = vmatpush1.xpose.msra.mxu0 0.0
    %2602 = vmatprep.subr.mxu0 0.0
    %2603 = vmatpush1.xpose.msra.mxu0 0.0
    %2604 = vmatprep.subr.mxu0 0.0
    %2605 = vmatpush1.xpose.msra.mxu0 0.0
    %2606 = vmatprep.subr.mxu0 0.0
    %2607 = vmatpush1.xpose.msra.mxu0 0.0
    %2608 = vmatprep.subr.mxu0 0.0
    %2609 = vmatpush1.xpose.msra.mxu0 0.0
    %2610 = vmatprep.subr.mxu0 0.0
    %2611 = vmatpush1.xpose.msra.mxu0 0.0
    %2612 = vmatprep.subr.mxu0 0.0
    %2613 = vmatpush1.xpose.msra.mxu0 0.0
    %2614 = vmatprep.subr.mxu0 0.0
    %2615 = vmatpush1.xpose.msra.mxu0 0.0
    %2616 = vmatprep.subr.mxu0 0.0
    %2617 = vmatpush1.xpose.msra.mxu0 0.0
    %2618 = vmatprep.subr.mxu0 0.0
    %2619 = vmatpush1.xpose.msra.mxu0 0.0
    %2620 = vmatprep.subr.mxu0 0.0
    %2621 = vmatpush1.xpose.msra.mxu0 0.0
    %2622 = vmatprep.subr.mxu0 0.0
    %2623 = vmatpush1.xpose.msra.mxu0 0.0
    %2624 = vmatprep.subr.mxu0 0.0
    %2625 = vmatpush1.xpose.msra.mxu0 0.0
    %2626 = vmatprep.subr.mxu0 0.0
    %2627 = vmatpush1.xpose.msra.mxu0 0.0
    %2628 = vmatprep.mubr.f32.mxu0 0.0
    %2629 = vmatmul.mubr.f32.gmra.mrb[0].mxu0 %v2540
    %v2630 = vpop.f32.mrb[0].mxu0
    %v2631 = vadd.f32 %v213, %v2630
    %v2632 = vpop.f32.mrb[0].mxu0
    %2633 = vmatprep.mubr.f32.mxu0 0.0
    %2634 = vmatmul.mubr.f32.gmra.mrb[0].mxu0 %v2542
    %v2635 = vpop.f32.mrb[0].mxu0
    %v2636 = vadd.f32 %v214, %v2635
    %v2637 = vpop.f32.mrb[0].mxu0
    %2638 = vmatprep.mubr.f32.mxu0 0.0
    %2639 = vmatmul.mubr.f32.gmra.mrb[0].mxu0 %v2544
    %v2640 = vpop.f32.mrb[0].mxu0
    %v2641 = vadd.f32 %v215, %v2640
    %v2642 = vpop.f32.mrb[0].mxu0
    %2643 = vmatprep.mubr.f32.mxu0 0.0
    %2644 = vmatmul.mubr.f32.gmra.mrb[0].mxu0 %v2546
    %v2645 = vpop.f32.mrb[0].mxu0
    %v2646 = vadd.f32 %v216, %v2645
    %v2647 = vpop.f32.mrb[0].mxu0
    %2648 = vmatprep.mubr.f32.mxu0 0.0
    %2649 = vmatmul.mubr.f32.gmra.mrb[0].mxu0 %v2548
    %v2650 = vpop.f32.mrb[0].mxu0
    %v2651 = vadd.f32 %v217, %v2650
    %v2652 = vpop.f32.mrb[0].mxu0
    %2653 = vmatprep.mubr.f32.mxu0 0.0
    %2654 = vmatmul.mubr.f32.gmra.mrb[0].mxu0 %v2550
    %v2655 = vpop.f32.mrb[0].mxu0
    %v2656 = vadd.f32 %v218, %v2655
    %v2657 = vpop.f32.mrb[0].mxu0
    %2658 = vdwg.mxu0
    %2659 = vrot.lane.b32.xlu0 %v2494, 120
    %v2660 = vpop.permute.xlu0 %2659
    %2661 = vrot.lane.b32.xlu0 %v2499, 120
    %v2662 = vpop.permute.xlu0 %2661
    %2663 = vrot.lane.b32.xlu0 %v2504, 120
    %v2664 = vpop.permute.xlu0 %2663
    %2665 = vrot.lane.b32.xlu0 %v2509, 120
    %v2666 = vpop.permute.xlu0 %2665
    %2667 = vrot.lane.b32.xlu0 %v2514, 120
    %v2668 = vpop.permute.xlu0 %2667
    %2669 = vrot.lane.b32.xlu0 %v2519, 120
    %v2670 = vpop.permute.xlu0 %2669
    %2671 = vrot.lane.b32.xlu0 %v2494, 88
    %v2672 = vpop.permute.xlu0 %2671
    %2673 = vrot.lane.b32.xlu0 %v2499, 88
    %v2674 = vpop.permute.xlu0 %2673
    %2675 = vrot.lane.b32.xlu0 %v2504, 88
    %v2676 = vpop.permute.xlu0 %2675
    %2677 = vrot.lane.b32.xlu0 %v2509, 88
    %v2678 = vpop.permute.xlu0 %2677
    %2679 = vrot.lane.b32.xlu0 %v2514, 88
    %v2680 = vpop.permute.xlu0 %2679
    %2681 = vrot.lane.b32.xlu0 %v2519, 88
    %v2682 = vpop.permute.xlu0 %2681
    %v2683 = vsel %vm362, %v2660, 0
    %v2685 = vsel %vm362, %v2662, 0
    %v2687 = vsel %vm362, %v2664, 0
    %v2689 = vsel %vm362, %v2666, 0
    %v2691 = vsel %vm362, %v2668, 0
    %v2693 = vsel %vm362, %v2670, 0
    %v2695 = vsel %vm362, %v2672, 0
    %v2697 = vsel %vm362, %v2674, 0
    %v2699 = vsel %vm362, %v2676, 0
    %v2701 = vsel %vm362, %v2678, 0
    %v2703 = vsel %vm362, %v2680, 0
    %v2705 = vsel %vm362, %v2682, 0
    %2707 = vmatprep.subr.mxu0 0.0
    %2708 = vmatpush1.xpose.msra.mxu0 %v2695
    %2709 = vmatprep.subr.mxu0 0.0
    %2710 = vmatpush1.xpose.msra.mxu0 %v2697
    %2711 = vmatprep.subr.mxu0 0.0
    %2712 = vmatpush1.xpose.msra.mxu0 %v2699
    %2713 = vmatprep.subr.mxu0 0.0
    %2714 = vmatpush1.xpose.msra.mxu0 %v2701
    %2715 = vmatprep.subr.mxu0 0.0
    %2716 = vmatpush1.xpose.msra.mxu0 %v2703
    %2717 = vmatprep.subr.mxu0 0.0
    %2718 = vmatpush1.xpose.msra.mxu0 %v2705
    %2719 = vmatprep.subr.mxu0 0.0
    %2720 = vmatpush1.xpose.msra.mxu0 0.0
    %2721 = vmatprep.subr.mxu0 0.0
    %2722 = vmatpush1.xpose.msra.mxu0 0.0
    %2723 = vmatprep.subr.mxu0 0.0
    %2724 = vmatpush1.xpose.msra.mxu0 0.0
    %2725 = vmatprep.subr.mxu0 0.0
    %2726 = vmatpush1.xpose.msra.mxu0 0.0
    %2727 = vmatprep.subr.mxu0 0.0
    %2728 = vmatpush1.xpose.msra.mxu0 0.0
    %2729 = vmatprep.subr.mxu0 0.0
    %2730 = vmatpush1.xpose.msra.mxu0 0.0
    %2731 = vmatprep.subr.mxu0 0.0
    %2732 = vmatpush1.xpose.msra.mxu0 0.0
    %2733 = vmatprep.subr.mxu0 0.0
    %2734 = vmatpush1.xpose.msra.mxu0 0.0
    %2735 = vmatprep.subr.mxu0 0.0
    %2736 = vmatpush1.xpose.msra.mxu0 0.0
    %2737 = vmatprep.subr.mxu0 0.0
    %2738 = vmatpush1.xpose.msra.mxu0 0.0
    %2739 = vmatprep.subr.mxu0 0.0
    %2740 = vmatpush1.xpose.msra.mxu0 0.0
    %2741 = vmatprep.subr.mxu0 0.0
    %2742 = vmatpush1.xpose.msra.mxu0 0.0
    %2743 = vmatprep.subr.mxu0 0.0
    %2744 = vmatpush1.xpose.msra.mxu0 0.0
    %2745 = vmatprep.subr.mxu0 0.0
    %2746 = vmatpush1.xpose.msra.mxu0 0.0
    %2747 = vmatprep.subr.mxu0 0.0
    %2748 = vmatpush1.xpose.msra.mxu0 0.0
    %2749 = vmatprep.subr.mxu0 0.0
    %2750 = vmatpush1.xpose.msra.mxu0 0.0
    %2751 = vmatprep.subr.mxu0 0.0
    %2752 = vmatpush1.xpose.msra.mxu0 0.0
    %2753 = vmatprep.subr.mxu0 0.0
    %2754 = vmatpush1.xpose.msra.mxu0 0.0
    %2755 = vmatprep.subr.mxu0 0.0
    %2756 = vmatpush1.xpose.msra.mxu0 0.0
    %2757 = vmatprep.subr.mxu0 0.0
    %2758 = vmatpush1.xpose.msra.mxu0 0.0
    %2759 = vmatprep.subr.mxu0 0.0
    %2760 = vmatpush1.xpose.msra.mxu0 0.0
    %2761 = vmatprep.subr.mxu0 0.0
    %2762 = vmatpush1.xpose.msra.mxu0 0.0
    %2763 = vmatprep.subr.mxu0 0.0
    %2764 = vmatpush1.xpose.msra.mxu0 0.0
    %2765 = vmatprep.subr.mxu0 0.0
    %2766 = vmatpush1.xpose.msra.mxu0 0.0
    %2767 = vmatprep.subr.mxu0 0.0
    %2768 = vmatpush1.xpose.msra.mxu0 0.0
    %2769 = vmatprep.subr.mxu0 0.0
    %2770 = vmatpush1.xpose.msra.mxu0 0.0
    %2771 = vmatprep.mubr.f32.mxu0 0.0
    %2772 = vmatmul.mubr.f32.gmra.mrb[0].mxu0 %v2683
    %v2773 = vpop.f32.mrb[0].mxu0
    %v2774 = vadd.f32 %v213, %v2773
    %v2775 = vpop.f32.mrb[0].mxu0
    %2776 = vmatprep.mubr.f32.mxu0 0.0
    %2777 = vmatmul.mubr.f32.gmra.mrb[0].mxu0 %v2685
    %v2778 = vpop.f32.mrb[0].mxu0
    %v2779 = vadd.f32 %v214, %v2778
    %v2780 = vpop.f32.mrb[0].mxu0
    %2781 = vmatprep.mubr.f32.mxu0 0.0
    %2782 = vmatmul.mubr.f32.gmra.mrb[0].mxu0 %v2687
    %v2783 = vpop.f32.mrb[0].mxu0
    %v2784 = vadd.f32 %v215, %v2783
    %v2785 = vpop.f32.mrb[0].mxu0
    %2786 = vmatprep.mubr.f32.mxu0 0.0
    %2787 = vmatmul.mubr.f32.gmra.mrb[0].mxu0 %v2689
    %v2788 = vpop.f32.mrb[0].mxu0
    %v2789 = vadd.f32 %v216, %v2788
    %v2790 = vpop.f32.mrb[0].mxu0
    %2791 = vmatprep.mubr.f32.mxu0 0.0
    %2792 = vmatmul.mubr.f32.gmra.mrb[0].mxu0 %v2691
    %v2793 = vpop.f32.mrb[0].mxu0
    %v2794 = vadd.f32 %v217, %v2793
    %v2795 = vpop.f32.mrb[0].mxu0
    %2796 = vmatprep.mubr.f32.mxu0 0.0
    %2797 = vmatmul.mubr.f32.gmra.mrb[0].mxu0 %v2693
    %v2798 = vpop.f32.mrb[0].mxu0
    %v2799 = vadd.f32 %v218, %v2798
    %v2800 = vpop.f32.mrb[0].mxu0
    %2801 = vdwg.mxu0
    %2802 = vrot.lane.b32.xlu0 %v2494, 112
    %v2803 = vpop.permute.xlu0 %2802
    %2804 = vrot.lane.b32.xlu0 %v2499, 112
    %v2805 = vpop.permute.xlu0 %2804
    %2806 = vrot.lane.b32.xlu0 %v2504, 112
    %v2807 = vpop.permute.xlu0 %2806
    %2808 = vrot.lane.b32.xlu0 %v2509, 112
    %v2809 = vpop.permute.xlu0 %2808
    %2810 = vrot.lane.b32.xlu0 %v2514, 112
    %v2811 = vpop.permute.xlu0 %2810
    %2812 = vrot.lane.b32.xlu0 %v2519, 112
    %v2813 = vpop.permute.xlu0 %2812
    %2814 = vrot.lane.b32.xlu0 %v2494, 80
    %v2815 = vpop.permute.xlu0 %2814
    %2816 = vrot.lane.b32.xlu0 %v2499, 80
    %v2817 = vpop.permute.xlu0 %2816
    %2818 = vrot.lane.b32.xlu0 %v2504, 80
    %v2819 = vpop.permute.xlu0 %2818
    %2820 = vrot.lane.b32.xlu0 %v2509, 80
    %v2821 = vpop.permute.xlu0 %2820
    %2822 = vrot.lane.b32.xlu0 %v2514, 80
    %v2823 = vpop.permute.xlu0 %2822
    %2824 = vrot.lane.b32.xlu0 %v2519, 80
    %v2825 = vpop.permute.xlu0 %2824
    %v2826 = vsel %vm362, %v2803, 0
    %v2828 = vsel %vm362, %v2805, 0
    %v2830 = vsel %vm362, %v2807, 0
    %v2832 = vsel %vm362, %v2809, 0
    %v2834 = vsel %vm362, %v2811, 0
    %v2836 = vsel %vm362, %v2813, 0
    %v2838 = vsel %vm362, %v2815, 0
    %v2840 = vsel %vm362, %v2817, 0
    %v2842 = vsel %vm362, %v2819, 0
    %v2844 = vsel %vm362, %v2821, 0
    %v2846 = vsel %vm362, %v2823, 0
    %v2848 = vsel %vm362, %v2825, 0
    %2850 = vmatprep.subr.mxu0 0.0
    %2851 = vmatpush1.xpose.msra.mxu0 %v2838
    %2852 = vmatprep.subr.mxu0 0.0
    %2853 = vmatpush1.xpose.msra.mxu0 %v2840
    %2854 = vmatprep.subr.mxu0 0.0
    %2855 = vmatpush1.xpose.msra.mxu0 %v2842
    %2856 = vmatprep.subr.mxu0 0.0
    %2857 = vmatpush1.xpose.msra.mxu0 %v2844
    %2858 = vmatprep.subr.mxu0 0.0
    %2859 = vmatpush1.xpose.msra.mxu0 %v2846
    %2860 = vmatprep.subr.mxu0 0.0
    %2861 = vmatpush1.xpose.msra.mxu0 %v2848
    %2862 = vmatprep.subr.mxu0 0.0
    %2863 = vmatpush1.xpose.msra.mxu0 0.0
    %2864 = vmatprep.subr.mxu0 0.0
    %2865 = vmatpush1.xpose.msra.mxu0 0.0
    %2866 = vmatprep.subr.mxu0 0.0
    %2867 = vmatpush1.xpose.msra.mxu0 0.0
    %2868 = vmatprep.subr.mxu0 0.0
    %2869 = vmatpush1.xpose.msra.mxu0 0.0
    %2870 = vmatprep.subr.mxu0 0.0
    %2871 = vmatpush1.xpose.msra.mxu0 0.0
    %2872 = vmatprep.subr.mxu0 0.0
    %2873 = vmatpush1.xpose.msra.mxu0 0.0
    %2874 = vmatprep.subr.mxu0 0.0
    %2875 = vmatpush1.xpose.msra.mxu0 0.0
    %2876 = vmatprep.subr.mxu0 0.0
    %2877 = vmatpush1.xpose.msra.mxu0 0.0
    %2878 = vmatprep.subr.mxu0 0.0
    %2879 = vmatpush1.xpose.msra.mxu0 0.0
    %2880 = vmatprep.subr.mxu0 0.0
    %2881 = vmatpush1.xpose.msra.mxu0 0.0
    %2882 = vmatprep.subr.mxu0 0.0
    %2883 = vmatpush1.xpose.msra.mxu0 0.0
    %2884 = vmatprep.subr.mxu0 0.0
    %2885 = vmatpush1.xpose.msra.mxu0 0.0
    %2886 = vmatprep.subr.mxu0 0.0
    %2887 = vmatpush1.xpose.msra.mxu0 0.0
    %2888 = vmatprep.subr.mxu0 0.0
    %2889 = vmatpush1.xpose.msra.mxu0 0.0
    %2890 = vmatprep.subr.mxu0 0.0
    %2891 = vmatpush1.xpose.msra.mxu0 0.0
    %2892 = vmatprep.subr.mxu0 0.0
    %2893 = vmatpush1.xpose.msra.mxu0 0.0
    %2894 = vmatprep.subr.mxu0 0.0
    %2895 = vmatpush1.xpose.msra.mxu0 0.0
    %2896 = vmatprep.subr.mxu0 0.0
    %2897 = vmatpush1.xpose.msra.mxu0 0.0
    %2898 = vmatprep.subr.mxu0 0.0
    %2899 = vmatpush1.xpose.msra.mxu0 0.0
    %2900 = vmatprep.subr.mxu0 0.0
    %2901 = vmatpush1.xpose.msra.mxu0 0.0
    %2902 = vmatprep.subr.mxu0 0.0
    %2903 = vmatpush1.xpose.msra.mxu0 0.0
    %2904 = vmatprep.subr.mxu0 0.0
    %2905 = vmatpush1.xpose.msra.mxu0 0.0
    %2906 = vmatprep.subr.mxu0 0.0
    %2907 = vmatpush1.xpose.msra.mxu0 0.0
    %2908 = vmatprep.subr.mxu0 0.0
    %2909 = vmatpush1.xpose.msra.mxu0 0.0
    %2910 = vmatprep.subr.mxu0 0.0
    %2911 = vmatpush1.xpose.msra.mxu0 0.0
    %2912 = vmatprep.subr.mxu0 0.0
    %2913 = vmatpush1.xpose.msra.mxu0 0.0
    %2914 = vmatprep.mubr.f32.mxu0 0.0
    %2915 = vmatmul.mubr.f32.gmra.mrb[0].mxu0 %v2826
    %v2916 = vpop.f32.mrb[0].mxu0
    %v2917 = vadd.f32 %v213, %v2916
    %v2918 = vpop.f32.mrb[0].mxu0
    %2919 = vmatprep.mubr.f32.mxu0 0.0
    %2920 = vmatmul.mubr.f32.gmra.mrb[0].mxu0 %v2828
    %v2921 = vpop.f32.mrb[0].mxu0
    %v2922 = vadd.f32 %v214, %v2921
    %v2923 = vpop.f32.mrb[0].mxu0
    %2924 = vmatprep.mubr.f32.mxu0 0.0
    %2925 = vmatmul.mubr.f32.gmra.mrb[0].mxu0 %v2830
    %v2926 = vpop.f32.mrb[0].mxu0
    %v2927 = vadd.f32 %v215, %v2926
    %v2928 = vpop.f32.mrb[0].mxu0
    %2929 = vmatprep.mubr.f32.mxu0 0.0
    %2930 = vmatmul.mubr.f32.gmra.mrb[0].mxu0 %v2832
    %v2931 = vpop.f32.mrb[0].mxu0
    %v2932 = vadd.f32 %v216, %v2931
    %v2933 = vpop.f32.mrb[0].mxu0
    %2934 = vmatprep.mubr.f32.mxu0 0.0
    %2935 = vmatmul.mubr.f32.gmra.mrb[0].mxu0 %v2834
    %v2936 = vpop.f32.mrb[0].mxu0
    %v2937 = vadd.f32 %v217, %v2936
    %v2938 = vpop.f32.mrb[0].mxu0
    %2939 = vmatprep.mubr.f32.mxu0 0.0
    %2940 = vmatmul.mubr.f32.gmra.mrb[0].mxu0 %v2836
    %v2941 = vpop.f32.mrb[0].mxu0
    %v2942 = vadd.f32 %v218, %v2941
    %v2943 = vpop.f32.mrb[0].mxu0
    %2944 = vdwg.mxu0
    %2945 = vrot.lane.b32.xlu0 %v2494, 104
    %v2946 = vpop.permute.xlu0 %2945
    %2947 = vrot.lane.b32.xlu0 %v2499, 104
    %v2948 = vpop.permute.xlu0 %2947
    %2949 = vrot.lane.b32.xlu0 %v2504, 104
    %v2950 = vpop.permute.xlu0 %2949
    %2951 = vrot.lane.b32.xlu0 %v2509, 104
    %v2952 = vpop.permute.xlu0 %2951
    %2953 = vrot.lane.b32.xlu0 %v2514, 104
    %v2954 = vpop.permute.xlu0 %2953
    %2955 = vrot.lane.b32.xlu0 %v2519, 104
    %v2956 = vpop.permute.xlu0 %2955
    %2957 = vrot.lane.b32.xlu0 %v2494, 72
    %v2958 = vpop.permute.xlu0 %2957
    %2959 = vrot.lane.b32.xlu0 %v2499, 72
    %v2960 = vpop.permute.xlu0 %2959
    %2961 = vrot.lane.b32.xlu0 %v2504, 72
    %v2962 = vpop.permute.xlu0 %2961
    %2963 = vrot.lane.b32.xlu0 %v2509, 72
    %v2964 = vpop.permute.xlu0 %2963
    %2965 = vrot.lane.b32.xlu0 %v2514, 72
    %v2966 = vpop.permute.xlu0 %2965
    %2967 = vrot.lane.b32.xlu0 %v2519, 72
    %v2968 = vpop.permute.xlu0 %2967
    %v2969 = vsel %vm362, %v2946, 0
    %v2971 = vsel %vm362, %v2948, 0
    %v2973 = vsel %vm362, %v2950, 0
    %v2975 = vsel %vm362, %v2952, 0
    %v2977 = vsel %vm362, %v2954, 0
    %v2979 = vsel %vm362, %v2956, 0
    %v2981 = vsel %vm362, %v2958, 0
    %v2983 = vsel %vm362, %v2960, 0
    %v2985 = vsel %vm362, %v2962, 0
    %v2987 = vsel %vm362, %v2964, 0
    %v2989 = vsel %vm362, %v2966, 0
    %v2991 = vsel %vm362, %v2968, 0
    %2993 = vmatprep.subr.mxu0 0.0
    %2994 = vmatpush1.xpose.msra.mxu0 %v2981
    %2995 = vmatprep.subr.mxu0 0.0
    %2996 = vmatpush1.xpose.msra.mxu0 %v2983
    %2997 = vmatprep.subr.mxu0 0.0
    %2998 = vmatpush1.xpose.msra.mxu0 %v2985
    %2999 = vmatprep.subr.mxu0 0.0
    %3000 = vmatpush1.xpose.msra.mxu0 %v2987
    %3001 = vmatprep.subr.mxu0 0.0
    %3002 = vmatpush1.xpose.msra.mxu0 %v2989
    %3003 = vmatprep.subr.mxu0 0.0
    %3004 = vmatpush1.xpose.msra.mxu0 %v2991
    %3005 = vmatprep.subr.mxu0 0.0
    %3006 = vmatpush1.xpose.msra.mxu0 0.0
    %3007 = vmatprep.subr.mxu0 0.0
    %3008 = vmatpush1.xpose.msra.mxu0 0.0
    %3009 = vmatprep.subr.mxu0 0.0
    %3010 = vmatpush1.xpose.msra.mxu0 0.0
    %3011 = vmatprep.subr.mxu0 0.0
    %3012 = vmatpush1.xpose.msra.mxu0 0.0
    %3013 = vmatprep.subr.mxu0 0.0
    %3014 = vmatpush1.xpose.msra.mxu0 0.0
    %3015 = vmatprep.subr.mxu0 0.0
    %3016 = vmatpush1.xpose.msra.mxu0 0.0
    %3017 = vmatprep.subr.mxu0 0.0
    %3018 = vmatpush1.xpose.msra.mxu0 0.0
    %3019 = vmatprep.subr.mxu0 0.0
    %3020 = vmatpush1.xpose.msra.mxu0 0.0
    %3021 = vmatprep.subr.mxu0 0.0
    %3022 = vmatpush1.xpose.msra.mxu0 0.0
    %3023 = vmatprep.subr.mxu0 0.0
    %3024 = vmatpush1.xpose.msra.mxu0 0.0
    %3025 = vmatprep.subr.mxu0 0.0
    %3026 = vmatpush1.xpose.msra.mxu0 0.0
    %3027 = vmatprep.subr.mxu0 0.0
    %3028 = vmatpush1.xpose.msra.mxu0 0.0
    %3029 = vmatprep.subr.mxu0 0.0
    %3030 = vmatpush1.xpose.msra.mxu0 0.0
    %3031 = vmatprep.subr.mxu0 0.0
    %3032 = vmatpush1.xpose.msra.mxu0 0.0
    %3033 = vmatprep.subr.mxu0 0.0
    %3034 = vmatpush1.xpose.msra.mxu0 0.0
    %3035 = vmatprep.subr.mxu0 0.0
    %3036 = vmatpush1.xpose.msra.mxu0 0.0
    %3037 = vmatprep.subr.mxu0 0.0
    %3038 = vmatpush1.xpose.msra.mxu0 0.0
    %3039 = vmatprep.subr.mxu0 0.0
    %3040 = vmatpush1.xpose.msra.mxu0 0.0
    %3041 = vmatprep.subr.mxu0 0.0
    %3042 = vmatpush1.xpose.msra.mxu0 0.0
    %3043 = vmatprep.subr.mxu0 0.0
    %3044 = vmatpush1.xpose.msra.mxu0 0.0
    %3045 = vmatprep.subr.mxu0 0.0
    %3046 = vmatpush1.xpose.msra.mxu0 0.0
    %3047 = vmatprep.subr.mxu0 0.0
    %3048 = vmatpush1.xpose.msra.mxu0 0.0
    %3049 = vmatprep.subr.mxu0 0.0
    %3050 = vmatpush1.xpose.msra.mxu0 0.0
    %3051 = vmatprep.subr.mxu0 0.0
    %3052 = vmatpush1.xpose.msra.mxu0 0.0
    %3053 = vmatprep.subr.mxu0 0.0
    %3054 = vmatpush1.xpose.msra.mxu0 0.0
    %3055 = vmatprep.subr.mxu0 0.0
    %3056 = vmatpush1.xpose.msra.mxu0 0.0
    %3057 = vmatprep.mubr.f32.mxu0 0.0
    %3058 = vmatmul.mubr.f32.gmra.mrb[0].mxu0 %v2969
    %v3059 = vpop.f32.mrb[0].mxu0
    %v3060 = vadd.f32 %v213, %v3059
    %v3061 = vpop.f32.mrb[0].mxu0
    %3062 = vmatprep.mubr.f32.mxu0 0.0
    %3063 = vmatmul.mubr.f32.gmra.mrb[0].mxu0 %v2971
    %v3064 = vpop.f32.mrb[0].mxu0
    %v3065 = vadd.f32 %v214, %v3064
    %v3066 = vpop.f32.mrb[0].mxu0
    %3067 = vmatprep.mubr.f32.mxu0 0.0
    %3068 = vmatmul.mubr.f32.gmra.mrb[0].mxu0 %v2973
    %v3069 = vpop.f32.mrb[0].mxu0
    %v3070 = vadd.f32 %v215, %v3069
    %v3071 = vpop.f32.mrb[0].mxu0
    %3072 = vmatprep.mubr.f32.mxu0 0.0
    %3073 = vmatmul.mubr.f32.gmra.mrb[0].mxu0 %v2975
    %v3074 = vpop.f32.mrb[0].mxu0
    %v3075 = vadd.f32 %v216, %v3074
    %v3076 = vpop.f32.mrb[0].mxu0
    %3077 = vmatprep.mubr.f32.mxu0 0.0
    %3078 = vmatmul.mubr.f32.gmra.mrb[0].mxu0 %v2977
    %v3079 = vpop.f32.mrb[0].mxu0
    %v3080 = vadd.f32 %v217, %v3079
    %v3081 = vpop.f32.mrb[0].mxu0
    %3082 = vmatprep.mubr.f32.mxu0 0.0
    %3083 = vmatmul.mubr.f32.gmra.mrb[0].mxu0 %v2979
    %v3084 = vpop.f32.mrb[0].mxu0
    %v3085 = vadd.f32 %v218, %v3084
    %v3086 = vpop.f32.mrb[0].mxu0
    %3087 = vdwg.mxu0
    %v3088 = vsel %vm911, %v2631, -inf
    %3089 = vmax.xlane.f32.xlu0 %v3088
    %v3090 = vpop.xlane.xlu0 %3089
    %v3091 = vsel %vm911, %v2636, -inf
    %3092 = vmax.xlane.f32.xlu0 %v3091
    %v3093 = vpop.xlane.xlu0 %3092
    %v3094 = vsel %vm911, %v2641, -inf
    %3095 = vmax.xlane.f32.xlu0 %v3094
    %v3096 = vpop.xlane.xlu0 %3095
    %v3097 = vsel %vm911, %v2646, -inf
    %3098 = vmax.xlane.f32.xlu0 %v3097
    %v3099 = vpop.xlane.xlu0 %3098
    %v3100 = vsel %vm911, %v2651, -inf
    %3101 = vmax.xlane.f32.xlu0 %v3100
    %v3102 = vpop.xlane.xlu0 %3101
    %v3103 = vsel %vm911, %v2656, -inf
    %3104 = vmax.xlane.f32.xlu0 %v3103
    %v3105 = vpop.xlane.xlu0 %3104
    %v3106 = vsel %vm911, %v2774, -inf
    %3107 = vmax.xlane.f32.xlu0 %v3106
    %v3108 = vpop.xlane.xlu0 %3107
    %v3109 = vsel %vm911, %v2779, -inf
    %3110 = vmax.xlane.f32.xlu0 %v3109
    %v3111 = vpop.xlane.xlu0 %3110
    %v3112 = vsel %vm911, %v2784, -inf
    %3113 = vmax.xlane.f32.xlu0 %v3112
    %v3114 = vpop.xlane.xlu0 %3113
    %v3115 = vsel %vm911, %v2789, -inf
    %3116 = vmax.xlane.f32.xlu0 %v3115
    %v3117 = vpop.xlane.xlu0 %3116
    %v3118 = vsel %vm911, %v2794, -inf
    %3119 = vmax.xlane.f32.xlu0 %v3118
    %v3120 = vpop.xlane.xlu0 %3119
    %v3121 = vsel %vm911, %v2799, -inf
    %3122 = vmax.xlane.f32.xlu0 %v3121
    %v3123 = vpop.xlane.xlu0 %3122
    %v3124 = vsel %vm911, %v2917, -inf
    %3125 = vmax.xlane.f32.xlu0 %v3124
    %v3126 = vpop.xlane.xlu0 %3125
    %v3127 = vsel %vm911, %v2922, -inf
    %3128 = vmax.xlane.f32.xlu0 %v3127
    %v3129 = vpop.xlane.xlu0 %3128
    %v3130 = vsel %vm911, %v2927, -inf
    %3131 = vmax.xlane.f32.xlu0 %v3130
    %v3132 = vpop.xlane.xlu0 %3131
    %v3133 = vsel %vm911, %v2932, -inf
    %3134 = vmax.xlane.f32.xlu0 %v3133
    %v3135 = vpop.xlane.xlu0 %3134
    %v3136 = vsel %vm911, %v2937, -inf
    %3137 = vmax.xlane.f32.xlu0 %v3136
    %v3138 = vpop.xlane.xlu0 %3137
    %v3139 = vsel %vm911, %v2942, -inf
    %3140 = vmax.xlane.f32.xlu0 %v3139
    %v3141 = vpop.xlane.xlu0 %3140
    %v3142 = vsel %vm911, %v3060, -inf
    %3143 = vmax.xlane.f32.xlu0 %v3142
    %v3144 = vpop.xlane.xlu0 %3143
    %v3145 = vsel %vm911, %v3065, -inf
    %3146 = vmax.xlane.f32.xlu0 %v3145
    %v3147 = vpop.xlane.xlu0 %3146
    %v3148 = vsel %vm911, %v3070, -inf
    %3149 = vmax.xlane.f32.xlu0 %v3148
    %v3150 = vpop.xlane.xlu0 %3149
    %v3151 = vsel %vm911, %v3075, -inf
    %3152 = vmax.xlane.f32.xlu0 %v3151
    %v3153 = vpop.xlane.xlu0 %3152
    %v3154 = vsel %vm911, %v3080, -inf
    %3155 = vmax.xlane.f32.xlu0 %v3154
    %v3156 = vpop.xlane.xlu0 %3155
    %v3157 = vsel %vm911, %v3085, -inf
    %3158 = vmax.xlane.f32.xlu0 %v3157
    %v3159 = vpop.xlane.xlu0 %3158
    %v3160 = vsub.f32 %v2631, %v3090
    %v3161 = vsub.f32 %v2636, %v3093
    %v3162 = vsub.f32 %v2641, %v3096
    %v3163 = vsub.f32 %v2646, %v3099
    %v3164 = vsub.f32 %v2651, %v3102
    %v3165 = vsub.f32 %v2656, %v3105
    %v3166 = vsub.f32 %v2774, %v3108
    %v3167 = vsub.f32 %v2779, %v3111
    %v3168 = vsub.f32 %v2784, %v3114
    %v3169 = vsub.f32 %v2789, %v3117
    %v3170 = vsub.f32 %v2794, %v3120
    %v3171 = vsub.f32 %v2799, %v3123
    %v3172 = vsub.f32 %v2917, %v3126
    %v3173 = vsub.f32 %v2922, %v3129
    %v3174 = vsub.f32 %v2927, %v3132
    %v3175 = vsub.f32 %v2932, %v3135
    %v3176 = vsub.f32 %v2937, %v3138
    %v3177 = vsub.f32 %v2942, %v3141
    %v3178 = vsub.f32 %v3060, %v3144
    %v3179 = vsub.f32 %v3065, %v3147
    %v3180 = vsub.f32 %v3070, %v3150
    %v3181 = vsub.f32 %v3075, %v3153
    %v3182 = vsub.f32 %v3080, %v3156
    %v3183 = vsub.f32 %v3085, %v3159
    %v3184 = vmul.f32 %v3160, 1.442695
    %v3185 = vpow.pop %v3184
    %v3186 = vmul.f32 %v3161, 1.442695
    %v3187 = vpow.pop %v3186
    %v3188 = vmul.f32 %v3162, 1.442695
    %v3189 = vpow.pop %v3188
    %v3190 = vmul.f32 %v3163, 1.442695
    %v3191 = vpow.pop %v3190
    %v3192 = vmul.f32 %v3164, 1.442695
    %v3193 = vpow.pop %v3192
    %v3194 = vmul.f32 %v3165, 1.442695
    %v3195 = vpow.pop %v3194
    %v3196 = vmul.f32 %v3166, 1.442695
    %v3197 = vpow.pop %v3196
    %v3198 = vmul.f32 %v3167, 1.442695
    %v3199 = vpow.pop %v3198
    %v3200 = vmul.f32 %v3168, 1.442695
    %v3201 = vpow.pop %v3200
    %v3202 = vmul.f32 %v3169, 1.442695
    %v3203 = vpow.pop %v3202
    %v3204 = vmul.f32 %v3170, 1.442695
    %v3205 = vpow.pop %v3204
    %v3206 = vmul.f32 %v3171, 1.442695
    %v3207 = vpow.pop %v3206
    %v3208 = vmul.f32 %v3172, 1.442695
    %v3209 = vpow.pop %v3208
    %v3210 = vmul.f32 %v3173, 1.442695
    %v3211 = vpow.pop %v3210
    %v3212 = vmul.f32 %v3174, 1.442695
    %v3213 = vpow.pop %v3212
    %v3214 = vmul.f32 %v3175, 1.442695
    %v3215 = vpow.pop %v3214
    %v3216 = vmul.f32 %v3176, 1.442695
    %v3217 = vpow.pop %v3216
    %v3218 = vmul.f32 %v3177, 1.442695
    %v3219 = vpow.pop %v3218
    %v3220 = vmul.f32 %v3178, 1.442695
    %v3221 = vpow.pop %v3220
    %v3222 = vmul.f32 %v3179, 1.442695
    %v3223 = vpow.pop %v3222
    %v3224 = vmul.f32 %v3180, 1.442695
    %v3225 = vpow.pop %v3224
    %v3226 = vmul.f32 %v3181, 1.442695
    %v3227 = vpow.pop %v3226
    %v3228 = vmul.f32 %v3182, 1.442695
    %v3229 = vpow.pop %v3228
    %v3230 = vmul.f32 %v3183, 1.442695
    %v3231 = vpow.pop %v3230
    %v3232 = vsel %vm911, %v3185, 0.0
    %3233 = vadd.xlane.f32.xlu0 %v3232
    %v3234 = vpop.xlane.xlu0 %3233
    %v3235 = vsel %vm911, %v3187, 0.0
    %3236 = vadd.xlane.f32.xlu0 %v3235
    %v3237 = vpop.xlane.xlu0 %3236
    %v3238 = vsel %vm911, %v3189, 0.0
    %3239 = vadd.xlane.f32.xlu0 %v3238
    %v3240 = vpop.xlane.xlu0 %3239
    %v3241 = vsel %vm911, %v3191, 0.0
    %3242 = vadd.xlane.f32.xlu0 %v3241
    %v3243 = vpop.xlane.xlu0 %3242
    %v3244 = vsel %vm911, %v3193, 0.0
    %3245 = vadd.xlane.f32.xlu0 %v3244
    %v3246 = vpop.xlane.xlu0 %3245
    %v3247 = vsel %vm911, %v3195, 0.0
    %3248 = vadd.xlane.f32.xlu0 %v3247
    %v3249 = vpop.xlane.xlu0 %3248
    %v3250 = vsel %vm911, %v3197, 0.0
    %3251 = vadd.xlane.f32.xlu0 %v3250
    %v3252 = vpop.xlane.xlu0 %3251
    %v3253 = vsel %vm911, %v3199, 0.0
    %3254 = vadd.xlane.f32.xlu0 %v3253
    %v3255 = vpop.xlane.xlu0 %3254
    %v3256 = vsel %vm911, %v3201, 0.0
    %3257 = vadd.xlane.f32.xlu0 %v3256
    %v3258 = vpop.xlane.xlu0 %3257
    %v3259 = vsel %vm911, %v3203, 0.0
    %3260 = vadd.xlane.f32.xlu0 %v3259
    %v3261 = vpop.xlane.xlu0 %3260
    %v3262 = vsel %vm911, %v3205, 0.0
    %3263 = vadd.xlane.f32.xlu0 %v3262
    %v3264 = vpop.xlane.xlu0 %3263
    %v3265 = vsel %vm911, %v3207, 0.0
    %3266 = vadd.xlane.f32.xlu0 %v3265
    %v3267 = vpop.xlane.xlu0 %3266
    %v3268 = vsel %vm911, %v3209, 0.0
    %3269 = vadd.xlane.f32.xlu0 %v3268
    %v3270 = vpop.xlane.xlu0 %3269
    %v3271 = vsel %vm911, %v3211, 0.0
    %3272 = vadd.xlane.f32.xlu0 %v3271
    %v3273 = vpop.xlane.xlu0 %3272
    %v3274 = vsel %vm911, %v3213, 0.0
    %3275 = vadd.xlane.f32.xlu0 %v3274
    %v3276 = vpop.xlane.xlu0 %3275
    %v3277 = vsel %vm911, %v3215, 0.0
    %3278 = vadd.xlane.f32.xlu0 %v3277
    %v3279 = vpop.xlane.xlu0 %3278
    %v3280 = vsel %vm911, %v3217, 0.0
    %3281 = vadd.xlane.f32.xlu0 %v3280
    %v3282 = vpop.xlane.xlu0 %3281
    %v3283 = vsel %vm911, %v3219, 0.0
    %3284 = vadd.xlane.f32.xlu0 %v3283
    %v3285 = vpop.xlane.xlu0 %3284
    %v3286 = vsel %vm911, %v3221, 0.0
    %3287 = vadd.xlane.f32.xlu0 %v3286
    %v3288 = vpop.xlane.xlu0 %3287
    %v3289 = vsel %vm911, %v3223, 0.0
    %3290 = vadd.xlane.f32.xlu0 %v3289
    %v3291 = vpop.xlane.xlu0 %3290
    %v3292 = vsel %vm911, %v3225, 0.0
    %3293 = vadd.xlane.f32.xlu0 %v3292
    %v3294 = vpop.xlane.xlu0 %3293
    %v3295 = vsel %vm911, %v3227, 0.0
    %3296 = vadd.xlane.f32.xlu0 %v3295
    %v3297 = vpop.xlane.xlu0 %3296
    %v3298 = vsel %vm911, %v3229, 0.0
    %3299 = vadd.xlane.f32.xlu0 %v3298
    %v3300 = vpop.xlane.xlu0 %3299
    %v3301 = vsel %vm911, %v3231, 0.0
    %3302 = vadd.xlane.f32.xlu0 %v3301
    %v3303 = vpop.xlane.xlu0 %3302
    %v3304 = vrcp.pop %v3234
    %v3305 = vmul.f32 %v3185, %v3304
    %v3306 = vrcp.pop %v3237
    %v3307 = vmul.f32 %v3187, %v3306
    %v3308 = vrcp.pop %v3240
    %v3309 = vmul.f32 %v3189, %v3308
    %v3310 = vrcp.pop %v3243
    %v3311 = vmul.f32 %v3191, %v3310
    %v3312 = vrcp.pop %v3246
    %v3313 = vmul.f32 %v3193, %v3312
    %v3314 = vrcp.pop %v3249
    %v3315 = vmul.f32 %v3195, %v3314
    %v3316 = vrcp.pop %v3252
    %v3317 = vmul.f32 %v3197, %v3316
    %v3318 = vrcp.pop %v3255
    %v3319 = vmul.f32 %v3199, %v3318
    %v3320 = vrcp.pop %v3258
    %v3321 = vmul.f32 %v3201, %v3320
    %v3322 = vrcp.pop %v3261
    %v3323 = vmul.f32 %v3203, %v3322
    %v3324 = vrcp.pop %v3264
    %v3325 = vmul.f32 %v3205, %v3324
    %v3326 = vrcp.pop %v3267
    %v3327 = vmul.f32 %v3207, %v3326
    %v3328 = vrcp.pop %v3270
    %v3329 = vmul.f32 %v3209, %v3328
    %v3330 = vrcp.pop %v3273
    %v3331 = vmul.f32 %v3211, %v3330
    %v3332 = vrcp.pop %v3276
    %v3333 = vmul.f32 %v3213, %v3332
    %v3334 = vrcp.pop %v3279
    %v3335 = vmul.f32 %v3215, %v3334
    %v3336 = vrcp.pop %v3282
    %v3337 = vmul.f32 %v3217, %v3336
    %v3338 = vrcp.pop %v3285
    %v3339 = vmul.f32 %v3219, %v3338
    %v3340 = vrcp.pop %v3288
    %v3341 = vmul.f32 %v3221, %v3340
    %v3342 = vrcp.pop %v3291
    %v3343 = vmul.f32 %v3223, %v3342
    %v3344 = vrcp.pop %v3294
    %v3345 = vmul.f32 %v3225, %v3344
    %v3346 = vrcp.pop %v3297
    %v3347 = vmul.f32 %v3227, %v3346
    %v3348 = vrcp.pop %v3300
    %v3349 = vmul.f32 %v3229, %v3348
    %v3350 = vrcp.pop %v3303
    %v3351 = vmul.f32 %v3231, %v3350
    %3352 = vrot.lane.b32.xlu0 %v2494, 64
    %v3353 = vpop.permute.xlu0 %3352
    %3354 = vrot.lane.b32.xlu0 %v2499, 64
    %v3355 = vpop.permute.xlu0 %3354
    %3356 = vrot.lane.b32.xlu0 %v2504, 64
    %v3357 = vpop.permute.xlu0 %3356
    %3358 = vrot.lane.b32.xlu0 %v2509, 64
    %v3359 = vpop.permute.xlu0 %3358
    %3360 = vrot.lane.b32.xlu0 %v2514, 64
    %v3361 = vpop.permute.xlu0 %3360
    %3362 = vrot.lane.b32.xlu0 %v2519, 64
    %v3363 = vpop.permute.xlu0 %3362
    %v3371 = vsel %vm911, %v3305, 0
    %v3374 = vsel %vm911, %v3307, 0
    %v3377 = vsel %vm911, %v3309, 0
    %v3380 = vsel %vm911, %v3311, 0
    %v3383 = vsel %vm911, %v3313, 0
    %v3386 = vsel %vm911, %v3315, 0
    %3388 = vmatprep.subr.mxu0 0.0
    %3389 = vmatpush1.msra.mxu0 %v3353
    %3390 = vmatprep.subr.mxu0 0.0
    %3391 = vmatpush1.msra.mxu0 %v3355
    %3392 = vmatprep.subr.mxu0 0.0
    %3393 = vmatpush1.msra.mxu0 %v3357
    %3394 = vmatprep.subr.mxu0 0.0
    %3395 = vmatpush1.msra.mxu0 %v3359
    %3396 = vmatprep.subr.mxu0 0.0
    %3397 = vmatpush1.msra.mxu0 %v3361
    %3398 = vmatprep.subr.mxu0 0.0
    %3399 = vmatpush1.msra.mxu0 %v3363
    %3400 = vmatprep.subr.mxu0 0.0
    %3401 = vmatpush1.msra.mxu0 0.0
    %3402 = vmatprep.subr.mxu0 0.0
    %3403 = vmatpush1.msra.mxu0 0.0
    %3404 = vmatprep.subr.mxu0 0.0
    %3405 = vmatpush1.msra.mxu0 0.0
    %3406 = vmatprep.subr.mxu0 0.0
    %3407 = vmatpush1.msra.mxu0 0.0
    %3408 = vmatprep.subr.mxu0 0.0
    %3409 = vmatpush1.msra.mxu0 0.0
    %3410 = vmatprep.subr.mxu0 0.0
    %3411 = vmatpush1.msra.mxu0 0.0
    %3412 = vmatprep.subr.mxu0 0.0
    %3413 = vmatpush1.msra.mxu0 0.0
    %3414 = vmatprep.subr.mxu0 0.0
    %3415 = vmatpush1.msra.mxu0 0.0
    %3416 = vmatprep.subr.mxu0 0.0
    %3417 = vmatpush1.msra.mxu0 0.0
    %3418 = vmatprep.subr.mxu0 0.0
    %3419 = vmatpush1.msra.mxu0 0.0
    %3420 = vmatprep.subr.mxu0 0.0
    %3421 = vmatpush1.msra.mxu0 0.0
    %3422 = vmatprep.subr.mxu0 0.0
    %3423 = vmatpush1.msra.mxu0 0.0
    %3424 = vmatprep.subr.mxu0 0.0
    %3425 = vmatpush1.msra.mxu0 0.0
    %3426 = vmatprep.subr.mxu0 0.0
    %3427 = vmatpush1.msra.mxu0 0.0
    %3428 = vmatprep.subr.mxu0 0.0
    %3429 = vmatpush1.msra.mxu0 0.0
    %3430 = vmatprep.subr.mxu0 0.0
    %3431 = vmatpush1.msra.mxu0 0.0
    %3432 = vmatprep.subr.mxu0 0.0
    %3433 = vmatpush1.msra.mxu0 0.0
    %3434 = vmatprep.subr.mxu0 0.0
    %3435 = vmatpush1.msra.mxu0 0.0
    %3436 = vmatprep.subr.mxu0 0.0
    %3437 = vmatpush1.msra.mxu0 0.0
    %3438 = vmatprep.subr.mxu0 0.0
    %3439 = vmatpush1.msra.mxu0 0.0
    %3440 = vmatprep.subr.mxu0 0.0
    %3441 = vmatpush1.msra.mxu0 0.0
    %3442 = vmatprep.subr.mxu0 0.0
    %3443 = vmatpush1.msra.mxu0 0.0
    %3444 = vmatprep.subr.mxu0 0.0
    %3445 = vmatpush1.msra.mxu0 0.0
    %3446 = vmatprep.subr.mxu0 0.0
    %3447 = vmatpush1.msra.mxu0 0.0
    %3448 = vmatprep.subr.mxu0 0.0
    %3449 = vmatpush1.msra.mxu0 0.0
    %3450 = vmatprep.subr.mxu0 0.0
    %3451 = vmatpush1.msra.mxu0 0.0
    %3452 = vmatprep.mubr.f32.mxu0 0.0
    %3453 = vmatmul.mubr.f32.gmra.mrb[0].mxu0 %v3371
    %v3454 = vpop.f32.mrb[0].mxu0
    %v3455 = vadd.f32 0.0, %v3454
    %v3456 = vpop.f32.mrb[0].mxu0
    %3457 = vmatprep.mubr.f32.mxu0 0.0
    %3458 = vmatmul.mubr.f32.gmra.mrb[0].mxu0 %v3374
    %v3459 = vpop.f32.mrb[0].mxu0
    %v3460 = vadd.f32 0.0, %v3459
    %v3461 = vpop.f32.mrb[0].mxu0
    %3462 = vmatprep.mubr.f32.mxu0 0.0
    %3463 = vmatmul.mubr.f32.gmra.mrb[0].mxu0 %v3377
    %v3464 = vpop.f32.mrb[0].mxu0
    %v3465 = vadd.f32 0.0, %v3464
    %v3466 = vpop.f32.mrb[0].mxu0
    %3467 = vmatprep.mubr.f32.mxu0 0.0
    %3468 = vmatmul.mubr.f32.gmra.mrb[0].mxu0 %v3380
    %v3469 = vpop.f32.mrb[0].mxu0
    %v3470 = vadd.f32 0.0, %v3469
    %v3471 = vpop.f32.mrb[0].mxu0
    %3472 = vmatprep.mubr.f32.mxu0 0.0
    %3473 = vmatmul.mubr.f32.gmra.mrb[0].mxu0 %v3383
    %v3474 = vpop.f32.mrb[0].mxu0
    %v3475 = vadd.f32 0.0, %v3474
    %v3476 = vpop.f32.mrb[0].mxu0
    %3477 = vmatprep.mubr.f32.mxu0 0.0
    %3478 = vmatmul.mubr.f32.gmra.mrb[0].mxu0 %v3386
    %v3479 = vpop.f32.mrb[0].mxu0
    %v3480 = vadd.f32 0.0, %v3479
    %v3481 = vpop.f32.mrb[0].mxu0
    %3482 = vdwg.mxu0
    %3483 = vrot.lane.b32.xlu0 %v2494, 56
    %v3484 = vpop.permute.xlu0 %3483
    %3485 = vrot.lane.b32.xlu0 %v2499, 56
    %v3486 = vpop.permute.xlu0 %3485
    %3487 = vrot.lane.b32.xlu0 %v2504, 56
    %v3488 = vpop.permute.xlu0 %3487
    %3489 = vrot.lane.b32.xlu0 %v2509, 56
    %v3490 = vpop.permute.xlu0 %3489
    %3491 = vrot.lane.b32.xlu0 %v2514, 56
    %v3492 = vpop.permute.xlu0 %3491
    %3493 = vrot.lane.b32.xlu0 %v2519, 56
    %v3494 = vpop.permute.xlu0 %3493
    %v3502 = vsel %vm911, %v3317, 0
    %v3505 = vsel %vm911, %v3319, 0
    %v3508 = vsel %vm911, %v3321, 0
    %v3511 = vsel %vm911, %v3323, 0
    %v3514 = vsel %vm911, %v3325, 0
    %v3517 = vsel %vm911, %v3327, 0
    %3519 = vmatprep.subr.mxu0 0.0
    %3520 = vmatpush1.msra.mxu0 %v3484
    %3521 = vmatprep.subr.mxu0 0.0
    %3522 = vmatpush1.msra.mxu0 %v3486
    %3523 = vmatprep.subr.mxu0 0.0
    %3524 = vmatpush1.msra.mxu0 %v3488
    %3525 = vmatprep.subr.mxu0 0.0
    %3526 = vmatpush1.msra.mxu0 %v3490
    %3527 = vmatprep.subr.mxu0 0.0
    %3528 = vmatpush1.msra.mxu0 %v3492
    %3529 = vmatprep.subr.mxu0 0.0
    %3530 = vmatpush1.msra.mxu0 %v3494
    %3531 = vmatprep.subr.mxu0 0.0
    %3532 = vmatpush1.msra.mxu0 0.0
    %3533 = vmatprep.subr.mxu0 0.0
    %3534 = vmatpush1.msra.mxu0 0.0
    %3535 = vmatprep.subr.mxu0 0.0
    %3536 = vmatpush1.msra.mxu0 0.0
    %3537 = vmatprep.subr.mxu0 0.0
    %3538 = vmatpush1.msra.mxu0 0.0
    %3539 = vmatprep.subr.mxu0 0.0
    %3540 = vmatpush1.msra.mxu0 0.0
    %3541 = vmatprep.subr.mxu0 0.0
    %3542 = vmatpush1.msra.mxu0 0.0
    %3543 = vmatprep.subr.mxu0 0.0
    %3544 = vmatpush1.msra.mxu0 0.0
    %3545 = vmatprep.subr.mxu0 0.0
    %3546 = vmatpush1.msra.mxu0 0.0
    %3547 = vmatprep.subr.mxu0 0.0
    %3548 = vmatpush1.msra.mxu0 0.0
    %3549 = vmatprep.subr.mxu0 0.0
    %3550 = vmatpush1.msra.mxu0 0.0
    %3551 = vmatprep.subr.mxu0 0.0
    %3552 = vmatpush1.msra.mxu0 0.0
    %3553 = vmatprep.subr.mxu0 0.0
    %3554 = vmatpush1.msra.mxu0 0.0
    %3555 = vmatprep.subr.mxu0 0.0
    %3556 = vmatpush1.msra.mxu0 0.0
    %3557 = vmatprep.subr.mxu0 0.0
    %3558 = vmatpush1.msra.mxu0 0.0
    %3559 = vmatprep.subr.mxu0 0.0
    %3560 = vmatpush1.msra.mxu0 0.0
    %3561 = vmatprep.subr.mxu0 0.0
    %3562 = vmatpush1.msra.mxu0 0.0
    %3563 = vmatprep.subr.mxu0 0.0
    %3564 = vmatpush1.msra.mxu0 0.0
    %3565 = vmatprep.subr.mxu0 0.0
    %3566 = vmatpush1.msra.mxu0 0.0
    %3567 = vmatprep.subr.mxu0 0.0
    %3568 = vmatpush1.msra.mxu0 0.0
    %3569 = vmatprep.subr.mxu0 0.0
    %3570 = vmatpush1.msra.mxu0 0.0
    %3571 = vmatprep.subr.mxu0 0.0
    %3572 = vmatpush1.msra.mxu0 0.0
    %3573 = vmatprep.subr.mxu0 0.0
    %3574 = vmatpush1.msra.mxu0 0.0
    %3575 = vmatprep.subr.mxu0 0.0
    %3576 = vmatpush1.msra.mxu0 0.0
    %3577 = vmatprep.subr.mxu0 0.0
    %3578 = vmatpush1.msra.mxu0 0.0
    %3579 = vmatprep.subr.mxu0 0.0
    %3580 = vmatpush1.msra.mxu0 0.0
    %3581 = vmatprep.subr.mxu0 0.0
    %3582 = vmatpush1.msra.mxu0 0.0
    %3583 = vmatprep.mubr.f32.mxu0 0.0
    %3584 = vmatmul.mubr.f32.gmra.mrb[0].mxu0 %v3502
    %v3585 = vpop.f32.mrb[0].mxu0
    %v3586 = vadd.f32 0.0, %v3585
    %v3587 = vpop.f32.mrb[0].mxu0
    %3588 = vmatprep.mubr.f32.mxu0 0.0
    %3589 = vmatmul.mubr.f32.gmra.mrb[0].mxu0 %v3505
    %v3590 = vpop.f32.mrb[0].mxu0
    %v3591 = vadd.f32 0.0, %v3590
    %v3592 = vpop.f32.mrb[0].mxu0
    %3593 = vmatprep.mubr.f32.mxu0 0.0
    %3594 = vmatmul.mubr.f32.gmra.mrb[0].mxu0 %v3508
    %v3595 = vpop.f32.mrb[0].mxu0
    %v3596 = vadd.f32 0.0, %v3595
    %v3597 = vpop.f32.mrb[0].mxu0
    %3598 = vmatprep.mubr.f32.mxu0 0.0
    %3599 = vmatmul.mubr.f32.gmra.mrb[0].mxu0 %v3511
    %v3600 = vpop.f32.mrb[0].mxu0
    %v3601 = vadd.f32 0.0, %v3600
    %v3602 = vpop.f32.mrb[0].mxu0
    %3603 = vmatprep.mubr.f32.mxu0 0.0
    %3604 = vmatmul.mubr.f32.gmra.mrb[0].mxu0 %v3514
    %v3605 = vpop.f32.mrb[0].mxu0
    %v3606 = vadd.f32 0.0, %v3605
    %v3607 = vpop.f32.mrb[0].mxu0
    %3608 = vmatprep.mubr.f32.mxu0 0.0
    %3609 = vmatmul.mubr.f32.gmra.mrb[0].mxu0 %v3517
    %v3610 = vpop.f32.mrb[0].mxu0
    %v3611 = vadd.f32 0.0, %v3610
    %v3612 = vpop.f32.mrb[0].mxu0
    %3613 = vdwg.mxu0
    %3614 = vrot.lane.b32.xlu0 %v2494, 48
    %v3615 = vpop.permute.xlu0 %3614
    %3616 = vrot.lane.b32.xlu0 %v2499, 48
    %v3617 = vpop.permute.xlu0 %3616
    %3618 = vrot.lane.b32.xlu0 %v2504, 48
    %v3619 = vpop.permute.xlu0 %3618
    %3620 = vrot.lane.b32.xlu0 %v2509, 48
    %v3621 = vpop.permute.xlu0 %3620
    %3622 = vrot.lane.b32.xlu0 %v2514, 48
    %v3623 = vpop.permute.xlu0 %3622
    %3624 = vrot.lane.b32.xlu0 %v2519, 48
    %v3625 = vpop.permute.xlu0 %3624
    %v3633 = vsel %vm911, %v3329, 0
    %v3636 = vsel %vm911, %v3331, 0
    %v3639 = vsel %vm911, %v3333, 0
    %v3642 = vsel %vm911, %v3335, 0
    %v3645 = vsel %vm911, %v3337, 0
    %v3648 = vsel %vm911, %v3339, 0
    %3650 = vmatprep.subr.mxu0 0.0
    %3651 = vmatpush1.msra.mxu0 %v3615
    %3652 = vmatprep.subr.mxu0 0.0
    %3653 = vmatpush1.msra.mxu0 %v3617
    %3654 = vmatprep.subr.mxu0 0.0
    %3655 = vmatpush1.msra.mxu0 %v3619
    %3656 = vmatprep.subr.mxu0 0.0
    %3657 = vmatpush1.msra.mxu0 %v3621
    %3658 = vmatprep.subr.mxu0 0.0
    %3659 = vmatpush1.msra.mxu0 %v3623
    %3660 = vmatprep.subr.mxu0 0.0
    %3661 = vmatpush1.msra.mxu0 %v3625
    %3662 = vmatprep.subr.mxu0 0.0
    %3663 = vmatpush1.msra.mxu0 0.0
    %3664 = vmatprep.subr.mxu0 0.0
    %3665 = vmatpush1.msra.mxu0 0.0
    %3666 = vmatprep.subr.mxu0 0.0
    %3667 = vmatpush1.msra.mxu0 0.0
    %3668 = vmatprep.subr.mxu0 0.0
    %3669 = vmatpush1.msra.mxu0 0.0
    %3670 = vmatprep.subr.mxu0 0.0
    %3671 = vmatpush1.msra.mxu0 0.0
    %3672 = vmatprep.subr.mxu0 0.0
    %3673 = vmatpush1.msra.mxu0 0.0
    %3674 = vmatprep.subr.mxu0 0.0
    %3675 = vmatpush1.msra.mxu0 0.0
    %3676 = vmatprep.subr.mxu0 0.0
    %3677 = vmatpush1.msra.mxu0 0.0
    %3678 = vmatprep.subr.mxu0 0.0
    %3679 = vmatpush1.msra.mxu0 0.0
    %3680 = vmatprep.subr.mxu0 0.0
    %3681 = vmatpush1.msra.mxu0 0.0
    %3682 = vmatprep.subr.mxu0 0.0
    %3683 = vmatpush1.msra.mxu0 0.0
    %3684 = vmatprep.subr.mxu0 0.0
    %3685 = vmatpush1.msra.mxu0 0.0
    %3686 = vmatprep.subr.mxu0 0.0
    %3687 = vmatpush1.msra.mxu0 0.0
    %3688 = vmatprep.subr.mxu0 0.0
    %3689 = vmatpush1.msra.mxu0 0.0
    %3690 = vmatprep.subr.mxu0 0.0
    %3691 = vmatpush1.msra.mxu0 0.0
    %3692 = vmatprep.subr.mxu0 0.0
    %3693 = vmatpush1.msra.mxu0 0.0
    %3694 = vmatprep.subr.mxu0 0.0
    %3695 = vmatpush1.msra.mxu0 0.0
    %3696 = vmatprep.subr.mxu0 0.0
    %3697 = vmatpush1.msra.mxu0 0.0
    %3698 = vmatprep.subr.mxu0 0.0
    %3699 = vmatpush1.msra.mxu0 0.0
    %3700 = vmatprep.subr.mxu0 0.0
    %3701 = vmatpush1.msra.mxu0 0.0
    %3702 = vmatprep.subr.mxu0 0.0
    %3703 = vmatpush1.msra.mxu0 0.0
    %3704 = vmatprep.subr.mxu0 0.0
    %3705 = vmatpush1.msra.mxu0 0.0
    %3706 = vmatprep.subr.mxu0 0.0
    %3707 = vmatpush1.msra.mxu0 0.0
    %3708 = vmatprep.subr.mxu0 0.0
    %3709 = vmatpush1.msra.mxu0 0.0
    %3710 = vmatprep.subr.mxu0 0.0
    %3711 = vmatpush1.msra.mxu0 0.0
    %3712 = vmatprep.subr.mxu0 0.0
    %3713 = vmatpush1.msra.mxu0 0.0
    %3714 = vmatprep.mubr.f32.mxu0 0.0
    %3715 = vmatmul.mubr.f32.gmra.mrb[0].mxu0 %v3633
    %v3716 = vpop.f32.mrb[0].mxu0
    %v3717 = vadd.f32 0.0, %v3716
    %v3718 = vpop.f32.mrb[0].mxu0
    %3719 = vmatprep.mubr.f32.mxu0 0.0
    %3720 = vmatmul.mubr.f32.gmra.mrb[0].mxu0 %v3636
    %v3721 = vpop.f32.mrb[0].mxu0
    %v3722 = vadd.f32 0.0, %v3721
    %v3723 = vpop.f32.mrb[0].mxu0
    %3724 = vmatprep.mubr.f32.mxu0 0.0
    %3725 = vmatmul.mubr.f32.gmra.mrb[0].mxu0 %v3639
    %v3726 = vpop.f32.mrb[0].mxu0
    %v3727 = vadd.f32 0.0, %v3726
    %v3728 = vpop.f32.mrb[0].mxu0
    %3729 = vmatprep.mubr.f32.mxu0 0.0
    %3730 = vmatmul.mubr.f32.gmra.mrb[0].mxu0 %v3642
    %v3731 = vpop.f32.mrb[0].mxu0
    %v3732 = vadd.f32 0.0, %v3731
    %v3733 = vpop.f32.mrb[0].mxu0
    %3734 = vmatprep.mubr.f32.mxu0 0.0
    %3735 = vmatmul.mubr.f32.gmra.mrb[0].mxu0 %v3645
    %v3736 = vpop.f32.mrb[0].mxu0
    %v3737 = vadd.f32 0.0, %v3736
    %v3738 = vpop.f32.mrb[0].mxu0
    %3739 = vmatprep.mubr.f32.mxu0 0.0
    %3740 = vmatmul.mubr.f32.gmra.mrb[0].mxu0 %v3648
    %v3741 = vpop.f32.mrb[0].mxu0
    %v3742 = vadd.f32 0.0, %v3741
    %v3743 = vpop.f32.mrb[0].mxu0
    %3744 = vdwg.mxu0
    %3745 = vrot.lane.b32.xlu0 %v2494, 40
    %v3746 = vpop.permute.xlu0 %3745
    %3747 = vrot.lane.b32.xlu0 %v2499, 40
    %v3748 = vpop.permute.xlu0 %3747
    %3749 = vrot.lane.b32.xlu0 %v2504, 40
    %v3750 = vpop.permute.xlu0 %3749
    %3751 = vrot.lane.b32.xlu0 %v2509, 40
    %v3752 = vpop.permute.xlu0 %3751
    %3753 = vrot.lane.b32.xlu0 %v2514, 40
    %v3754 = vpop.permute.xlu0 %3753
    %3755 = vrot.lane.b32.xlu0 %v2519, 40
    %v3756 = vpop.permute.xlu0 %3755
    %v3764 = vsel %vm911, %v3341, 0
    %v3767 = vsel %vm911, %v3343, 0
    %v3770 = vsel %vm911, %v3345, 0
    %v3773 = vsel %vm911, %v3347, 0
    %v3776 = vsel %vm911, %v3349, 0
    %v3779 = vsel %vm911, %v3351, 0
    %3781 = vmatprep.subr.mxu0 0.0
    %3782 = vmatpush1.msra.mxu0 %v3746
    %3783 = vmatprep.subr.mxu0 0.0
    %3784 = vmatpush1.msra.mxu0 %v3748
    %3785 = vmatprep.subr.mxu0 0.0
    %3786 = vmatpush1.msra.mxu0 %v3750
    %3787 = vmatprep.subr.mxu0 0.0
    %3788 = vmatpush1.msra.mxu0 %v3752
    %3789 = vmatprep.subr.mxu0 0.0
    %3790 = vmatpush1.msra.mxu0 %v3754
    %3791 = vmatprep.subr.mxu0 0.0
    %3792 = vmatpush1.msra.mxu0 %v3756
    %3793 = vmatprep.subr.mxu0 0.0
    %3794 = vmatpush1.msra.mxu0 0.0
    %3795 = vmatprep.subr.mxu0 0.0
    %3796 = vmatpush1.msra.mxu0 0.0
    %3797 = vmatprep.subr.mxu0 0.0
    %3798 = vmatpush1.msra.mxu0 0.0
    %3799 = vmatprep.subr.mxu0 0.0
    %3800 = vmatpush1.msra.mxu0 0.0
    %3801 = vmatprep.subr.mxu0 0.0
    %3802 = vmatpush1.msra.mxu0 0.0
    %3803 = vmatprep.subr.mxu0 0.0
    %3804 = vmatpush1.msra.mxu0 0.0
    %3805 = vmatprep.subr.mxu0 0.0
    %3806 = vmatpush1.msra.mxu0 0.0
    %3807 = vmatprep.subr.mxu0 0.0
    %3808 = vmatpush1.msra.mxu0 0.0
    %3809 = vmatprep.subr.mxu0 0.0
    %3810 = vmatpush1.msra.mxu0 0.0
    %3811 = vmatprep.subr.mxu0 0.0
    %3812 = vmatpush1.msra.mxu0 0.0
    %3813 = vmatprep.subr.mxu0 0.0
    %3814 = vmatpush1.msra.mxu0 0.0
    %3815 = vmatprep.subr.mxu0 0.0
    %3816 = vmatpush1.msra.mxu0 0.0
    %3817 = vmatprep.subr.mxu0 0.0
    %3818 = vmatpush1.msra.mxu0 0.0
    %3819 = vmatprep.subr.mxu0 0.0
    %3820 = vmatpush1.msra.mxu0 0.0
    %3821 = vmatprep.subr.mxu0 0.0
    %3822 = vmatpush1.msra.mxu0 0.0
    %3823 = vmatprep.subr.mxu0 0.0
    %3824 = vmatpush1.msra.mxu0 0.0
    %3825 = vmatprep.subr.mxu0 0.0
    %3826 = vmatpush1.msra.mxu0 0.0
    %3827 = vmatprep.subr.mxu0 0.0
    %3828 = vmatpush1.msra.mxu0 0.0
    %3829 = vmatprep.subr.mxu0 0.0
    %3830 = vmatpush1.msra.mxu0 0.0
    %3831 = vmatprep.subr.mxu0 0.0
    %3832 = vmatpush1.msra.mxu0 0.0
    %3833 = vmatprep.subr.mxu0 0.0
    %3834 = vmatpush1.msra.mxu0 0.0
    %3835 = vmatprep.subr.mxu0 0.0
    %3836 = vmatpush1.msra.mxu0 0.0
    %3837 = vmatprep.subr.mxu0 0.0
    %3838 = vmatpush1.msra.mxu0 0.0
    %3839 = vmatprep.subr.mxu0 0.0
    %3840 = vmatpush1.msra.mxu0 0.0
    %3841 = vmatprep.subr.mxu0 0.0
    %3842 = vmatpush1.msra.mxu0 0.0
    %3843 = vmatprep.subr.mxu0 0.0
    %3844 = vmatpush1.msra.mxu0 0.0
    %3845 = vmatprep.mubr.f32.mxu0 0.0
    %3846 = vmatmul.mubr.f32.gmra.mrb[0].mxu0 %v3764
    %v3847 = vpop.f32.mrb[0].mxu0
    %v3848 = vadd.f32 0.0, %v3847
    %v3849 = vpop.f32.mrb[0].mxu0
    %3850 = vmatprep.mubr.f32.mxu0 0.0
    %3851 = vmatmul.mubr.f32.gmra.mrb[0].mxu0 %v3767
    %v3852 = vpop.f32.mrb[0].mxu0
    %v3853 = vadd.f32 0.0, %v3852
    %v3854 = vpop.f32.mrb[0].mxu0
    %3855 = vmatprep.mubr.f32.mxu0 0.0
    %3856 = vmatmul.mubr.f32.gmra.mrb[0].mxu0 %v3770
    %v3857 = vpop.f32.mrb[0].mxu0
    %v3858 = vadd.f32 0.0, %v3857
    %v3859 = vpop.f32.mrb[0].mxu0
    %3860 = vmatprep.mubr.f32.mxu0 0.0
    %3861 = vmatmul.mubr.f32.gmra.mrb[0].mxu0 %v3773
    %v3862 = vpop.f32.mrb[0].mxu0
    %v3863 = vadd.f32 0.0, %v3862
    %v3864 = vpop.f32.mrb[0].mxu0
    %3865 = vmatprep.mubr.f32.mxu0 0.0
    %3866 = vmatmul.mubr.f32.gmra.mrb[0].mxu0 %v3776
    %v3867 = vpop.f32.mrb[0].mxu0
    %v3868 = vadd.f32 0.0, %v3867
    %v3869 = vpop.f32.mrb[0].mxu0
    %3870 = vmatprep.mubr.f32.mxu0 0.0
    %3871 = vmatmul.mubr.f32.gmra.mrb[0].mxu0 %v3779
    %v3872 = vpop.f32.mrb[0].mxu0
    %v3873 = vadd.f32 0.0, %v3872
    %v3874 = vpop.f32.mrb[0].mxu0
    %3875 = vdwg.mxu0
    %3882 = vrot.lane.b32.xlu0 %v3586, 8
    %v3883 = vpop.permute.xlu0 %3882
    %3884 = vrot.lane.b32.xlu0 %v3591, 8
    %v3885 = vpop.permute.xlu0 %3884
    %3886 = vrot.lane.b32.xlu0 %v3596, 8
    %v3887 = vpop.permute.xlu0 %3886
    %3888 = vrot.lane.b32.xlu0 %v3601, 8
    %v3889 = vpop.permute.xlu0 %3888
    %3890 = vrot.lane.b32.xlu0 %v3606, 8
    %v3891 = vpop.permute.xlu0 %3890
    %3892 = vrot.lane.b32.xlu0 %v3611, 8
    %v3893 = vpop.permute.xlu0 %3892
    %3906 = vrot.lane.b32.xlu0 %v3717, 16
    %v3907 = vpop.permute.xlu0 %3906
    %3908 = vrot.lane.b32.xlu0 %v3722, 16
    %v3909 = vpop.permute.xlu0 %3908
    %3910 = vrot.lane.b32.xlu0 %v3727, 16
    %v3911 = vpop.permute.xlu0 %3910
    %3912 = vrot.lane.b32.xlu0 %v3732, 16
    %v3913 = vpop.permute.xlu0 %3912
    %3914 = vrot.lane.b32.xlu0 %v3737, 16
    %v3915 = vpop.permute.xlu0 %3914
    %3916 = vrot.lane.b32.xlu0 %v3742, 16
    %v3917 = vpop.permute.xlu0 %3916
    %3930 = vrot.lane.b32.xlu0 %v3848, 24
    %v3931 = vpop.permute.xlu0 %3930
    %3932 = vrot.lane.b32.xlu0 %v3853, 24
    %v3933 = vpop.permute.xlu0 %3932
    %3934 = vrot.lane.b32.xlu0 %v3858, 24
    %v3935 = vpop.permute.xlu0 %3934
    %3936 = vrot.lane.b32.xlu0 %v3863, 24
    %v3937 = vpop.permute.xlu0 %3936
    %3938 = vrot.lane.b32.xlu0 %v3868, 24
    %v3939 = vpop.permute.xlu0 %3938
    %3940 = vrot.lane.b32.xlu0 %v3873, 24
    %v3941 = vpop.permute.xlu0 %3940
    %v3948 = vsel %vm362, %v3455, %v3883
    %v3949 = vsel %vm362, %v3460, %v3885
    %v3950 = vsel %vm362, %v3465, %v3887
    %v3951 = vsel %vm362, %v3470, %v3889
    %v3952 = vsel %vm362, %v3475, %v3891
    %v3953 = vsel %vm362, %v3480, %v3893
    %v3954 = vsel %vm1778, %v3948, %v3907
    %v3955 = vsel %vm1778, %v3949, %v3909
    %v3956 = vsel %vm1778, %v3950, %v3911
    %v3957 = vsel %vm1778, %v3951, %v3913
    %v3958 = vsel %vm1778, %v3952, %v3915
    %v3959 = vsel %vm1778, %v3953, %v3917
    %v3960 = vsel %vm1785, %v3954, %v3931
    %v3961 = vsel %vm1785, %v3955, %v3933
    %v3962 = vsel %vm1785, %v3956, %v3935
    %v3963 = vsel %vm1785, %v3957, %v3937
    %v3964 = vsel %vm1785, %v3958, %v3939
    %v3965 = vsel %vm1785, %v3959, %v3941
    %s3966 = scalar_lea.vmem %s6, 32
    %v3967 = vld [vmem:[%s3966] sm:$0xff]
    %v3968 = vld [vmem:[%s3966 + $0x8] sm:$0xff]
    %v3969 = vld [vmem:[%s3966 + $0x10] sm:$0xff]
    %v3970 = vld [vmem:[%s3966 + $0x18] sm:$0xff]
    %s3971 = scalar_lea.vmem %s7, 1
    %v3972 = vld [vmem:[%s3971] sm:$0x1]
    %v3974 = vlaneseq
    %v3975 = vshrl.u32 %v3974, 7
    %v3976 = vsub.s32 0, %v3975
    %v3977 = vrot.slane %v3972, %v3976
    %v3980 = vsel %vm230, %v3960, 0
    %v3983 = vsel %vm230, %v3961, 0
    %v3986 = vsel %vm230, %v3962, 0
    %v3989 = vsel %vm230, %v3963, 0
    %v3992 = vsel %vm230, %v3964, 0
    %v3995 = vsel %vm230, %v3965, 0
    %3997 = vmatprep.subr.mxu0 0.0
    %3998 = vmatpush1.msra.mxu0 %v3967
    %3999 = vmatprep.subr.mxu0 0.0
    %4000 = vmatpush1.msra.mxu0 %v3968
    %4001 = vmatprep.subr.mxu0 0.0
    %4002 = vmatpush1.msra.mxu0 %v3969
    %4003 = vmatprep.subr.mxu0 0.0
    %4004 = vmatpush1.msra.mxu0 %v3970
    %4005 = vmatprep.subr.mxu0 0.0
    %4006 = vmatpush1.msra.mxu0 0.0
    %4007 = vmatprep.subr.mxu0 0.0
    %4008 = vmatpush1.msra.mxu0 0.0
    %4009 = vmatprep.subr.mxu0 0.0
    %4010 = vmatpush1.msra.mxu0 0.0
    %4011 = vmatprep.subr.mxu0 0.0
    %4012 = vmatpush1.msra.mxu0 0.0
    %4013 = vmatprep.subr.mxu0 0.0
    %4014 = vmatpush1.msra.mxu0 0.0
    %4015 = vmatprep.subr.mxu0 0.0
    %4016 = vmatpush1.msra.mxu0 0.0
    %4017 = vmatprep.subr.mxu0 0.0
    %4018 = vmatpush1.msra.mxu0 0.0
    %4019 = vmatprep.subr.mxu0 0.0
    %4020 = vmatpush1.msra.mxu0 0.0
    %4021 = vmatprep.subr.mxu0 0.0
    %4022 = vmatpush1.msra.mxu0 0.0
    %4023 = vmatprep.subr.mxu0 0.0
    %4024 = vmatpush1.msra.mxu0 0.0
    %4025 = vmatprep.subr.mxu0 0.0
    %4026 = vmatpush1.msra.mxu0 0.0
    %4027 = vmatprep.subr.mxu0 0.0
    %4028 = vmatpush1.msra.mxu0 0.0
    %4029 = vmatprep.subr.mxu0 0.0
    %4030 = vmatpush1.msra.mxu0 0.0
    %4031 = vmatprep.subr.mxu0 0.0
    %4032 = vmatpush1.msra.mxu0 0.0
    %4033 = vmatprep.subr.mxu0 0.0
    %4034 = vmatpush1.msra.mxu0 0.0
    %4035 = vmatprep.subr.mxu0 0.0
    %4036 = vmatpush1.msra.mxu0 0.0
    %4037 = vmatprep.subr.mxu0 0.0
    %4038 = vmatpush1.msra.mxu0 0.0
    %4039 = vmatprep.subr.mxu0 0.0
    %4040 = vmatpush1.msra.mxu0 0.0
    %4041 = vmatprep.subr.mxu0 0.0
    %4042 = vmatpush1.msra.mxu0 0.0
    %4043 = vmatprep.subr.mxu0 0.0
    %4044 = vmatpush1.msra.mxu0 0.0
    %4045 = vmatprep.subr.mxu0 0.0
    %4046 = vmatpush1.msra.mxu0 0.0
    %4047 = vmatprep.subr.mxu0 0.0
    %4048 = vmatpush1.msra.mxu0 0.0
    %4049 = vmatprep.subr.mxu0 0.0
    %4050 = vmatpush1.msra.mxu0 0.0
    %4051 = vmatprep.subr.mxu0 0.0
    %4052 = vmatpush1.msra.mxu0 0.0
    %4053 = vmatprep.subr.mxu0 0.0
    %4054 = vmatpush1.msra.mxu0 0.0
    %4055 = vmatprep.subr.mxu0 0.0
    %4056 = vmatpush1.msra.mxu0 0.0
    %4057 = vmatprep.subr.mxu0 0.0
    %4058 = vmatpush1.msra.mxu0 0.0
    %4059 = vmatprep.subr.mxu0 0.0
    %4060 = vmatpush1.msra.mxu0 0.0
    %4061 = vmatprep.mubr.f32.mxu0 0.0
    %4062 = vmatmul.mubr.f32.gmra.mrb[0].mxu0 %v3980
    %v4063 = vpop.f32.mrb[0].mxu0
    %v4064 = vadd.f32 %v3977, %v4063
    %v4065 = vpop.f32.mrb[0].mxu0
    %4066 = vmatprep.mubr.f32.mxu0 0.0
    %4067 = vmatmul.mubr.f32.gmra.mrb[0].mxu0 %v3983
    %v4068 = vpop.f32.mrb[0].mxu0
    %v4069 = vadd.f32 %v3977, %v4068
    %v4070 = vpop.f32.mrb[0].mxu0
    %4071 = vmatprep.mubr.f32.mxu0 0.0
    %4072 = vmatmul.mubr.f32.gmra.mrb[0].mxu0 %v3986
    %v4073 = vpop.f32.mrb[0].mxu0
    %v4074 = vadd.f32 %v3977, %v4073
    %v4075 = vpop.f32.mrb[0].mxu0
    %4076 = vmatprep.mubr.f32.mxu0 0.0
    %4077 = vmatmul.mubr.f32.gmra.mrb[0].mxu0 %v3989
    %v4078 = vpop.f32.mrb[0].mxu0
    %v4079 = vadd.f32 %v3977, %v4078
    %v4080 = vpop.f32.mrb[0].mxu0
    %4081 = vmatprep.mubr.f32.mxu0 0.0
    %4082 = vmatmul.mubr.f32.gmra.mrb[0].mxu0 %v3992
    %v4083 = vpop.f32.mrb[0].mxu0
    %v4084 = vadd.f32 %v3977, %v4083
    %v4085 = vpop.f32.mrb[0].mxu0
    %4086 = vmatprep.mubr.f32.mxu0 0.0
    %4087 = vmatmul.mubr.f32.gmra.mrb[0].mxu0 %v3995
    %v4088 = vpop.f32.mrb[0].mxu0
    %v4089 = vadd.f32 %v3977, %v4088
    %v4090 = vpop.f32.mrb[0].mxu0
    %4091 = vdwg.mxu0
    %v4092 = vadd.f32 %v2390, %v4064
    %v4093 = vadd.f32 %v2391, %v4069
    %v4094 = vadd.f32 %v2392, %v4074
    %v4095 = vadd.f32 %v2393, %v4079
    %v4096 = vadd.f32 %v2394, %v4084
    %v4097 = vadd.f32 %v2395, %v4089
    %s4098 = scalar_lea.vmem %s12, 1
    %v4099 = vld [vmem:[%s4098] sm:$0x1]
    %s4100 = scalar_lea.vmem [#allocation5], 1
    %v4101 = vld [vmem:[%s4100] sm:$0x1]
    %v4102 = vsel %vm230, %v4092, 0.0
    %4103 = vadd.xlane.f32.xlu0 %v4102
    %v4104 = vpop.xlane.xlu0 %4103
    %v4105 = vsel %vm230, %v4093, 0.0
    %4106 = vadd.xlane.f32.xlu0 %v4105
    %v4107 = vpop.xlane.xlu0 %4106
    %v4108 = vsel %vm230, %v4094, 0.0
    %4109 = vadd.xlane.f32.xlu0 %v4108
    %v4110 = vpop.xlane.xlu0 %4109
    %v4111 = vsel %vm230, %v4095, 0.0
    %4112 = vadd.xlane.f32.xlu0 %v4111
    %v4113 = vpop.xlane.xlu0 %4112
    %v4114 = vsel %vm230, %v4096, 0.0
    %4115 = vadd.xlane.f32.xlu0 %v4114
    %v4116 = vpop.xlane.xlu0 %4115
    %v4117 = vsel %vm230, %v4097, 0.0
    %4118 = vadd.xlane.f32.xlu0 %v4117
    %v4119 = vpop.xlane.xlu0 %4118
    %v4120 = vmul.f32 %v4104, %v1942
    %v4121 = vmul.f32 %v4107, %v1942
    %v4122 = vmul.f32 %v4110, %v1942
    %v4123 = vmul.f32 %v4113, %v1942
    %v4124 = vmul.f32 %v4116, %v1942
    %v4125 = vmul.f32 %v4119, %v1942
    %v4126 = vsub.f32 %v4092, %v4120
    %v4127 = vsub.f32 %v4093, %v4121
    %v4128 = vsub.f32 %v4094, %v4122
    %v4129 = vsub.f32 %v4095, %v4123
    %v4130 = vsub.f32 %v4096, %v4124
    %v4131 = vsub.f32 %v4097, %v4125
    %v4132 = vmul.f32 %v4126, %v4126
    %v4133 = vmul.f32 %v4127, %v4127
    %v4134 = vmul.f32 %v4128, %v4128
    %v4135 = vmul.f32 %v4129, %v4129
    %v4136 = vmul.f32 %v4130, %v4130
    %v4137 = vmul.f32 %v4131, %v4131
    %v4138 = vsel %vm230, %v4132, 0.0
    %4139 = vadd.xlane.f32.xlu0 %v4138
    %v4140 = vpop.xlane.xlu0 %4139
    %v4141 = vsel %vm230, %v4133, 0.0
    %4142 = vadd.xlane.f32.xlu0 %v4141
    %v4143 = vpop.xlane.xlu0 %4142
    %v4144 = vsel %vm230, %v4134, 0.0
    %4145 = vadd.xlane.f32.xlu0 %v4144
    %v4146 = vpop.xlane.xlu0 %4145
    %v4147 = vsel %vm230, %v4135, 0.0
    %4148 = vadd.xlane.f32.xlu0 %v4147
    %v4149 = vpop.xlane.xlu0 %4148
    %v4150 = vsel %vm230, %v4136, 0.0
    %4151 = vadd.xlane.f32.xlu0 %v4150
    %v4152 = vpop.xlane.xlu0 %4151
    %v4153 = vsel %vm230, %v4137, 0.0
    %4154 = vadd.xlane.f32.xlu0 %v4153
    %v4155 = vpop.xlane.xlu0 %4154
    %v4156 = vmul.f32 %v4140, %v1942
    %v4157 = vmul.f32 %v4143, %v1942
    %v4158 = vmul.f32 %v4146, %v1942
    %v4159 = vmul.f32 %v4149, %v1942
    %v4160 = vmul.f32 %v4152, %v1942
    %v4161 = vmul.f32 %v4155, %v1942
    %v4162 = vadd.f32 %v4156, 1e-05
    %v4163 = vadd.f32 %v4157, 1e-05
    %v4164 = vadd.f32 %v4158, 1e-05
    %v4165 = vadd.f32 %v4159, 1e-05
    %v4166 = vadd.f32 %v4160, 1e-05
    %v4167 = vadd.f32 %v4161, 1e-05
    %v4168 = vrsqrt.pop %v4162
    %v4169 = vrsqrt.pop %v4163
    %v4170 = vrsqrt.pop %v4164
    %v4171 = vrsqrt.pop %v4165
    %v4172 = vrsqrt.pop %v4166
    %v4173 = vrsqrt.pop %v4167
    %v4174 = vmul.f32 %v4126, %v4168
    %v4175 = vmul.f32 %v4127, %v4169
    %v4176 = vmul.f32 %v4128, %v4170
    %v4177 = vmul.f32 %v4129, %v4171
    %v4178 = vmul.f32 %v4130, %v4172
    %v4179 = vmul.f32 %v4131, %v4173
    %v4181 = vlaneseq
    %v4182 = vshrl.u32 %v4181, 7
    %v4183 = vsub.s32 0, %v4182
    %v4184 = vrot.slane %v4099, %v4183
    %v4186 = vmul.f32 %v4174, %v4184
    %v4187 = vmul.f32 %v4175, %v4184
    %v4188 = vmul.f32 %v4176, %v4184
    %v4189 = vmul.f32 %v4177, %v4184
    %v4190 = vmul.f32 %v4178, %v4184
    %v4191 = vmul.f32 %v4179, %v4184
    %v4193 = vlaneseq
    %v4194 = vshrl.u32 %v4193, 7
    %v4195 = vsub.s32 0, %v4194
    %v4196 = vrot.slane %v4101, %v4195
    %v4198 = vadd.f32 %v4186, %v4196
    %v4199 = vadd.f32 %v4187, %v4196
    %v4200 = vadd.f32 %v4188, %v4196
    %v4201 = vadd.f32 %v4189, %v4196
    %v4202 = vadd.f32 %v4190, %v4196
    %v4203 = vadd.f32 %v4191, %v4196
    %s4204 = scalar_lea.vmem %s8, 32
    %v4205 = vld [vmem:[%s4204] sm:$0xff]
    %v4206 = vld [vmem:[%s4204 + $0x8] sm:$0xff]
    %v4207 = vld [vmem:[%s4204 + $0x10] sm:$0xff]
    %v4208 = vld [vmem:[%s4204 + $0x18] sm:$0xff]
    %s4209 = scalar_lea.vmem %s9, 1
    %v4210 = vld [vmem:[%s4209] sm:$0x1]
    %v4212 = vlaneseq
    %v4213 = vshrl.u32 %v4212, 7
    %v4214 = vsub.s32 0, %v4213
    %v4215 = vrot.slane %v4210, %v4214
    %v4218 = vsel %vm230, %v4198, 0
    %v4221 = vsel %vm230, %v4199, 0
    %v4224 = vsel %vm230, %v4200, 0
    %v4227 = vsel %vm230, %v4201, 0
    %v4230 = vsel %vm230, %v4202, 0
    %v4233 = vsel %vm230, %v4203, 0
    %4235 = vmatprep.subr.mxu0 0.0
    %4236 = vmatpush1.msra.mxu0 %v4205
    %4237 = vmatprep.subr.mxu0 0.0
    %4238 = vmatpush1.msra.mxu0 %v4206
    %4239 = vmatprep.subr.mxu0 0.0
    %4240 = vmatpush1.msra.mxu0 %v4207
    %4241 = vmatprep.subr.mxu0 0.0
    %4242 = vmatpush1.msra.mxu0 %v4208
    %4243 = vmatprep.subr.mxu0 0.0
    %4244 = vmatpush1.msra.mxu0 0.0
    %4245 = vmatprep.subr.mxu0 0.0
    %4246 = vmatpush1.msra.mxu0 0.0
    %4247 = vmatprep.subr.mxu0 0.0
    %4248 = vmatpush1.msra.mxu0 0.0
    %4249 = vmatprep.subr.mxu0 0.0
    %4250 = vmatpush1.msra.mxu0 0.0
    %4251 = vmatprep.subr.mxu0 0.0
    %4252 = vmatpush1.msra.mxu0 0.0
    %4253 = vmatprep.subr.mxu0 0.0
    %4254 = vmatpush1.msra.mxu0 0.0
    %4255 = vmatprep.subr.mxu0 0.0
    %4256 = vmatpush1.msra.mxu0 0.0
    %4257 = vmatprep.subr.mxu0 0.0
    %4258 = vmatpush1.msra.mxu0 0.0
    %4259 = vmatprep.subr.mxu0 0.0
    %4260 = vmatpush1.msra.mxu0 0.0
    %4261 = vmatprep.subr.mxu0 0.0
    %4262 = vmatpush1.msra.mxu0 0.0
    %4263 = vmatprep.subr.mxu0 0.0
    %4264 = vmatpush1.msra.mxu0 0.0
    %4265 = vmatprep.subr.mxu0 0.0
    %4266 = vmatpush1.msra.mxu0 0.0
    %4267 = vmatprep.subr.mxu0 0.0
    %4268 = vmatpush1.msra.mxu0 0.0
    %4269 = vmatprep.subr.mxu0 0.0
    %4270 = vmatpush1.msra.mxu0 0.0
    %4271 = vmatprep.subr.mxu0 0.0
    %4272 = vmatpush1.msra.mxu0 0.0
    %4273 = vmatprep.subr.mxu0 0.0
    %4274 = vmatpush1.msra.mxu0 0.0
    %4275 = vmatprep.subr.mxu0 0.0
    %4276 = vmatpush1.msra.mxu0 0.0
    %4277 = vmatprep.subr.mxu0 0.0
    %4278 = vmatpush1.msra.mxu0 0.0
    %4279 = vmatprep.subr.mxu0 0.0
    %4280 = vmatpush1.msra.mxu0 0.0
    %4281 = vmatprep.subr.mxu0 0.0
    %4282 = vmatpush1.msra.mxu0 0.0
    %4283 = vmatprep.subr.mxu0 0.0
    %4284 = vmatpush1.msra.mxu0 0.0
    %4285 = vmatprep.subr.mxu0 0.0
    %4286 = vmatpush1.msra.mxu0 0.0
    %4287 = vmatprep.subr.mxu0 0.0
    %4288 = vmatpush1.msra.mxu0 0.0
    %4289 = vmatprep.subr.mxu0 0.0
    %4290 = vmatpush1.msra.mxu0 0.0
    %4291 = vmatprep.subr.mxu0 0.0
    %4292 = vmatpush1.msra.mxu0 0.0
    %4293 = vmatprep.subr.mxu0 0.0
    %4294 = vmatpush1.msra.mxu0 0.0
    %4295 = vmatprep.subr.mxu0 0.0
    %4296 = vmatpush1.msra.mxu0 0.0
    %4297 = vmatprep.subr.mxu0 0.0
    %4298 = vmatpush1.msra.mxu0 0.0
    %4299 = vmatprep.mubr.f32.mxu0 0.0
    %4300 = vmatmul.mubr.f32.gmra.mrb[0].mxu0 %v4218
    %v4301 = vpop.f32.mrb[0].mxu0
    %v4302 = vadd.f32 %v4215, %v4301
    %v4303 = vpop.f32.mrb[0].mxu0
    %4304 = vmatprep.mubr.f32.mxu0 0.0
    %4305 = vmatmul.mubr.f32.gmra.mrb[0].mxu0 %v4221
    %v4306 = vpop.f32.mrb[0].mxu0
    %v4307 = vadd.f32 %v4215, %v4306
    %v4308 = vpop.f32.mrb[0].mxu0
    %4309 = vmatprep.mubr.f32.mxu0 0.0
    %4310 = vmatmul.mubr.f32.gmra.mrb[0].mxu0 %v4224
    %v4311 = vpop.f32.mrb[0].mxu0
    %v4312 = vadd.f32 %v4215, %v4311
    %v4313 = vpop.f32.mrb[0].mxu0
    %4314 = vmatprep.mubr.f32.mxu0 0.0
    %4315 = vmatmul.mubr.f32.gmra.mrb[0].mxu0 %v4227
    %v4316 = vpop.f32.mrb[0].mxu0
    %v4317 = vadd.f32 %v4215, %v4316
    %v4318 = vpop.f32.mrb[0].mxu0
    %4319 = vmatprep.mubr.f32.mxu0 0.0
    %4320 = vmatmul.mubr.f32.gmra.mrb[0].mxu0 %v4230
    %v4321 = vpop.f32.mrb[0].mxu0
    %v4322 = vadd.f32 %v4215, %v4321
    %v4323 = vpop.f32.mrb[0].mxu0
    %4324 = vmatprep.mubr.f32.mxu0 0.0
    %4325 = vmatmul.mubr.f32.gmra.mrb[0].mxu0 %v4233
    %v4326 = vpop.f32.mrb[0].mxu0
    %v4327 = vadd.f32 %v4215, %v4326
    %v4328 = vpop.f32.mrb[0].mxu0
    %4329 = vdwg.mxu0
    %v4330 = vmax.f32 %v4302, 0.0
    %v4331 = vmax.f32 %v4307, 0.0
    %v4332 = vmax.f32 %v4312, 0.0
    %v4333 = vmax.f32 %v4317, 0.0
    %v4334 = vmax.f32 %v4322, 0.0
    %v4335 = vmax.f32 %v4327, 0.0
    %s4336 = scalar_lea.vmem %s10, 64
    %v4337 = vld [vmem:[%s4336] sm:$0xff]
    %v4338 = vld [vmem:[%s4336 + $0x8] sm:$0xff]
    %v4339 = vld [vmem:[%s4336 + $0x10] sm:$0xff]
    %v4340 = vld [vmem:[%s4336 + $0x18] sm:$0xff]
    %v4341 = vld [vmem:[%s4336 + $0x20] sm:$0xff]
    %v4342 = vld [vmem:[%s4336 + $0x28] sm:$0xff]
    %v4343 = vld [vmem:[%s4336 + $0x30] sm:$0xff]
    %v4344 = vld [vmem:[%s4336 + $0x38] sm:$0xff]
    %s4345 = scalar_lea.vmem %s11, 1
    %v4346 = vld [vmem:[%s4345] sm:$0x1]
    %v4348 = vlaneseq
    %v4349 = vshrl.u32 %v4348, 7
    %v4350 = vsub.s32 0, %v4349
    %v4351 = vrot.slane %v4346, %v4350
    %v4354 = vsel %vm2172, %v4330, 0
    %v4357 = vsel %vm2172, %v4331, 0
    %v4360 = vsel %vm2172, %v4332, 0
    %v4363 = vsel %vm2172, %v4333, 0
    %v4366 = vsel %vm2172, %v4334, 0
    %v4369 = vsel %vm2172, %v4335, 0
    %4371 = vmatprep.subr.mxu0 0.0
    %4372 = vmatpush1.msra.mxu0 %v4337
    %4373 = vmatprep.subr.mxu0 0.0
    %4374 = vmatpush1.msra.mxu0 %v4338
    %4375 = vmatprep.subr.mxu0 0.0
    %4376 = vmatpush1.msra.mxu0 %v4339
    %4377 = vmatprep.subr.mxu0 0.0
    %4378 = vmatpush1.msra.mxu0 %v4340
    %4379 = vmatprep.subr.mxu0 0.0
    %4380 = vmatpush1.msra.mxu0 %v4341
    %4381 = vmatprep.subr.mxu0 0.0
    %4382 = vmatpush1.msra.mxu0 %v4342
    %4383 = vmatprep.subr.mxu0 0.0
    %4384 = vmatpush1.msra.mxu0 %v4343
    %4385 = vmatprep.subr.mxu0 0.0
    %4386 = vmatpush1.msra.mxu0 %v4344
    %4387 = vmatprep.subr.mxu0 0.0
    %4388 = vmatpush1.msra.mxu0 0.0
    %4389 = vmatprep.subr.mxu0 0.0
    %4390 = vmatpush1.msra.mxu0 0.0
    %4391 = vmatprep.subr.mxu0 0.0
    %4392 = vmatpush1.msra.mxu0 0.0
    %4393 = vmatprep.subr.mxu0 0.0
    %4394 = vmatpush1.msra.mxu0 0.0
    %4395 = vmatprep.subr.mxu0 0.0
    %4396 = vmatpush1.msra.mxu0 0.0
    %4397 = vmatprep.subr.mxu0 0.0
    %4398 = vmatpush1.msra.mxu0 0.0
    %4399 = vmatprep.subr.mxu0 0.0
    %4400 = vmatpush1.msra.mxu0 0.0
    %4401 = vmatprep.subr.mxu0 0.0
    %4402 = vmatpush1.msra.mxu0 0.0
    %4403 = vmatprep.subr.mxu0 0.0
    %4404 = vmatpush1.msra.mxu0 0.0
    %4405 = vmatprep.subr.mxu0 0.0
    %4406 = vmatpush1.msra.mxu0 0.0
    %4407 = vmatprep.subr.mxu0 0.0
    %4408 = vmatpush1.msra.mxu0 0.0
    %4409 = vmatprep.subr.mxu0 0.0
    %4410 = vmatpush1.msra.mxu0 0.0
    %4411 = vmatprep.subr.mxu0 0.0
    %4412 = vmatpush1.msra.mxu0 0.0
    %4413 = vmatprep.subr.mxu0 0.0
    %4414 = vmatpush1.msra.mxu0 0.0
    %4415 = vmatprep.subr.mxu0 0.0
    %4416 = vmatpush1.msra.mxu0 0.0
    %4417 = vmatprep.subr.mxu0 0.0
    %4418 = vmatpush1.msra.mxu0 0.0
    %4419 = vmatprep.subr.mxu0 0.0
    %4420 = vmatpush1.msra.mxu0 0.0
    %4421 = vmatprep.subr.mxu0 0.0
    %4422 = vmatpush1.msra.mxu0 0.0
    %4423 = vmatprep.subr.mxu0 0.0
    %4424 = vmatpush1.msra.mxu0 0.0
    %4425 = vmatprep.subr.mxu0 0.0
    %4426 = vmatpush1.msra.mxu0 0.0
    %4427 = vmatprep.subr.mxu0 0.0
    %4428 = vmatpush1.msra.mxu0 0.0
    %4429 = vmatprep.subr.mxu0 0.0
    %4430 = vmatpush1.msra.mxu0 0.0
    %4431 = vmatprep.subr.mxu0 0.0
    %4432 = vmatpush1.msra.mxu0 0.0
    %4433 = vmatprep.subr.mxu0 0.0
    %4434 = vmatpush1.msra.mxu0 0.0
    %4435 = vmatprep.mubr.f32.mxu0 0.0
    %4436 = vmatmul.mubr.f32.gmra.mrb[0].mxu0 %v4354
    %v4437 = vpop.f32.mrb[0].mxu0
    %v4438 = vadd.f32 %v4351, %v4437
    %v4439 = vpop.f32.mrb[0].mxu0
    %4440 = vmatprep.mubr.f32.mxu0 0.0
    %4441 = vmatmul.mubr.f32.gmra.mrb[0].mxu0 %v4357
    %v4442 = vpop.f32.mrb[0].mxu0
    %v4443 = vadd.f32 %v4351, %v4442
    %v4444 = vpop.f32.mrb[0].mxu0
    %4445 = vmatprep.mubr.f32.mxu0 0.0
    %4446 = vmatmul.mubr.f32.gmra.mrb[0].mxu0 %v4360
    %v4447 = vpop.f32.mrb[0].mxu0
    %v4448 = vadd.f32 %v4351, %v4447
    %v4449 = vpop.f32.mrb[0].mxu0
    %4450 = vmatprep.mubr.f32.mxu0 0.0
    %4451 = vmatmul.mubr.f32.gmra.mrb[0].mxu0 %v4363
    %v4452 = vpop.f32.mrb[0].mxu0
    %v4453 = vadd.f32 %v4351, %v4452
    %v4454 = vpop.f32.mrb[0].mxu0
    %4455 = vmatprep.mubr.f32.mxu0 0.0
    %4456 = vmatmul.mubr.f32.gmra.mrb[0].mxu0 %v4366
    %v4457 = vpop.f32.mrb[0].mxu0
    %v4458 = vadd.f32 %v4351, %v4457
    %v4459 = vpop.f32.mrb[0].mxu0
    %4460 = vmatprep.mubr.f32.mxu0 0.0
    %4461 = vmatmul.mubr.f32.gmra.mrb[0].mxu0 %v4369
    %v4462 = vpop.f32.mrb[0].mxu0
    %v4463 = vadd.f32 %v4351, %v4462
    %v4464 = vpop.f32.mrb[0].mxu0
    %4465 = vdwg.mxu0
    %v4466 = vadd.f32 %v4198, %v4438
    %v4467 = vadd.f32 %v4199, %v4443
    %v4468 = vadd.f32 %v4200, %v4448
    %v4469 = vadd.f32 %v4201, %v4453
    %v4470 = vadd.f32 %v4202, %v4458
    %v4471 = vadd.f32 %v4203, %v4463
    %s4472 = scalar_lea.vmem [#allocation7], 1
    %v4473 = vld [vmem:[%s4472] sm:$0x1]
    %s4474 = scalar_lea.vmem [#allocation8], 1
    %v4475 = vld [vmem:[%s4474] sm:$0x1]
    %v4476 = vsel %vm230, %v4466, 0.0
    %4477 = vadd.xlane.f32.xlu0 %v4476
    %v4478 = vpop.xlane.xlu0 %4477
    %v4479 = vsel %vm230, %v4467, 0.0
    %4480 = vadd.xlane.f32.xlu0 %v4479
    %v4481 = vpop.xlane.xlu0 %4480
    %v4482 = vsel %vm230, %v4468, 0.0
    %4483 = vadd.xlane.f32.xlu0 %v4482
    %v4484 = vpop.xlane.xlu0 %4483
    %v4485 = vsel %vm230, %v4469, 0.0
    %4486 = vadd.xlane.f32.xlu0 %v4485
    %v4487 = vpop.xlane.xlu0 %4486
    %v4488 = vsel %vm230, %v4470, 0.0
    %4489 = vadd.xlane.f32.xlu0 %v4488
    %v4490 = vpop.xlane.xlu0 %4489
    %v4491 = vsel %vm230, %v4471, 0.0
    %4492 = vadd.xlane.f32.xlu0 %v4491
    %v4493 = vpop.xlane.xlu0 %4492
    %v4494 = vmul.f32 %v4478, %v1942
    %v4495 = vmul.f32 %v4481, %v1942
    %v4496 = vmul.f32 %v4484, %v1942
    %v4497 = vmul.f32 %v4487, %v1942
    %v4498 = vmul.f32 %v4490, %v1942
    %v4499 = vmul.f32 %v4493, %v1942
    %v4500 = vsub.f32 %v4466, %v4494
    %v4501 = vsub.f32 %v4467, %v4495
    %v4502 = vsub.f32 %v4468, %v4496
    %v4503 = vsub.f32 %v4469, %v4497
    %v4504 = vsub.f32 %v4470, %v4498
    %v4505 = vsub.f32 %v4471, %v4499
    %v4506 = vmul.f32 %v4500, %v4500
    %v4507 = vmul.f32 %v4501, %v4501
    %v4508 = vmul.f32 %v4502, %v4502
    %v4509 = vmul.f32 %v4503, %v4503
    %v4510 = vmul.f32 %v4504, %v4504
    %v4511 = vmul.f32 %v4505, %v4505
    %v4512 = vsel %vm230, %v4506, 0.0
    %4513 = vadd.xlane.f32.xlu0 %v4512
    %v4514 = vpop.xlane.xlu0 %4513
    %v4515 = vsel %vm230, %v4507, 0.0
    %4516 = vadd.xlane.f32.xlu0 %v4515
    %v4517 = vpop.xlane.xlu0 %4516
    %v4518 = vsel %vm230, %v4508, 0.0
    %4519 = vadd.xlane.f32.xlu0 %v4518
    %v4520 = vpop.xlane.xlu0 %4519
    %v4521 = vsel %vm230, %v4509, 0.0
    %4522 = vadd.xlane.f32.xlu0 %v4521
    %v4523 = vpop.xlane.xlu0 %4522
    %v4524 = vsel %vm230, %v4510, 0.0
    %4525 = vadd.xlane.f32.xlu0 %v4524
    %v4526 = vpop.xlane.xlu0 %4525
    %v4527 = vsel %vm230, %v4511, 0.0
    %4528 = vadd.xlane.f32.xlu0 %v4527
    %v4529 = vpop.xlane.xlu0 %4528
    %v4530 = vmul.f32 %v4514, %v1942
    %v4531 = vmul.f32 %v4517, %v1942
    %v4532 = vmul.f32 %v4520, %v1942
    %v4533 = vmul.f32 %v4523, %v1942
    %v4534 = vmul.f32 %v4526, %v1942
    %v4535 = vmul.f32 %v4529, %v1942
    %v4536 = vadd.f32 %v4530, 1e-05
    %v4537 = vadd.f32 %v4531, 1e-05
    %v4538 = vadd.f32 %v4532, 1e-05
    %v4539 = vadd.f32 %v4533, 1e-05
    %v4540 = vadd.f32 %v4534, 1e-05
    %v4541 = vadd.f32 %v4535, 1e-05
    %v4542 = vrsqrt.pop %v4536
    %v4543 = vrsqrt.pop %v4537
    %v4544 = vrsqrt.pop %v4538
    %v4545 = vrsqrt.pop %v4539
    %v4546 = vrsqrt.pop %v4540
    %v4547 = vrsqrt.pop %v4541
    %v4548 = vmul.f32 %v4500, %v4542
    %v4549 = vmul.f32 %v4501, %v4543
    %v4550 = vmul.f32 %v4502, %v4544
    %v4551 = vmul.f32 %v4503, %v4545
    %v4552 = vmul.f32 %v4504, %v4546
    %v4553 = vmul.f32 %v4505, %v4547
    %v4555 = vlaneseq
    %v4556 = vshrl.u32 %v4555, 7
    %v4557 = vsub.s32 0, %v4556
    %v4558 = vrot.slane %v4473, %v4557
    %v4560 = vmul.f32 %v4548, %v4558
    %v4561 = vmul.f32 %v4549, %v4558
    %v4562 = vmul.f32 %v4550, %v4558
    %v4563 = vmul.f32 %v4551, %v4558
    %v4564 = vmul.f32 %v4552, %v4558
    %v4565 = vmul.f32 %v4553, %v4558
    %v4567 = vlaneseq
    %v4568 = vshrl.u32 %v4567, 7
    %v4569 = vsub.s32 0, %v4568
    %v4570 = vrot.slane %v4475, %v4569
    %v4572 = vadd.f32 %v4560, %v4570
    %v4573 = vadd.f32 %v4561, %v4570
    %v4574 = vadd.f32 %v4562, %v4570
    %v4575 = vadd.f32 %v4563, %v4570
    %v4576 = vadd.f32 %v4564, %v4570
    %v4577 = vadd.f32 %v4565, %v4570
    %v4578 = vld [vmem:[#allocation10] sm:$0x1]
    %v4579 = vld [vmem:[#allocation11] sm:$0x1]
    %v4580 = vsel %vm230, %v4572, 0.0
    %4581 = vadd.xlane.f32.xlu0 %v4580
    %v4582 = vpop.xlane.xlu0 %4581
    %v4583 = vsel %vm230, %v4573, 0.0
    %4584 = vadd.xlane.f32.xlu0 %v4583
    %v4585 = vpop.xlane.xlu0 %4584
    %v4586 = vsel %vm230, %v4574, 0.0
    %4587 = vadd.xlane.f32.xlu0 %v4586
    %v4588 = vpop.xlane.xlu0 %4587
    %v4589 = vsel %vm230, %v4575, 0.0
    %4590 = vadd.xlane.f32.xlu0 %v4589
    %v4591 = vpop.xlane.xlu0 %4590
    %v4592 = vsel %vm230, %v4576, 0.0
    %4593 = vadd.xlane.f32.xlu0 %v4592
    %v4594 = vpop.xlane.xlu0 %4593
    %v4595 = vsel %vm230, %v4577, 0.0
    %4596 = vadd.xlane.f32.xlu0 %v4595
    %v4597 = vpop.xlane.xlu0 %4596
    %v4598 = vmul.f32 %v4582, %v1942
    %v4599 = vmul.f32 %v4585, %v1942
    %v4600 = vmul.f32 %v4588, %v1942
    %v4601 = vmul.f32 %v4591, %v1942
    %v4602 = vmul.f32 %v4594, %v1942
    %v4603 = vmul.f32 %v4597, %v1942
    %v4604 = vsub.f32 %v4572, %v4598
    %v4605 = vsub.f32 %v4573, %v4599
    %v4606 = vsub.f32 %v4574, %v4600
    %v4607 = vsub.f32 %v4575, %v4601
    %v4608 = vsub.f32 %v4576, %v4602
    %v4609 = vsub.f32 %v4577, %v4603
    %v4610 = vmul.f32 %v4604, %v4604
    %v4611 = vmul.f32 %v4605, %v4605
    %v4612 = vmul.f32 %v4606, %v4606
    %v4613 = vmul.f32 %v4607, %v4607
    %v4614 = vmul.f32 %v4608, %v4608
    %v4615 = vmul.f32 %v4609, %v4609
    %v4616 = vsel %vm230, %v4610, 0.0
    %4617 = vadd.xlane.f32.xlu0 %v4616
    %v4618 = vpop.xlane.xlu0 %4617
    %v4619 = vsel %vm230, %v4611, 0.0
    %4620 = vadd.xlane.f32.xlu0 %v4619
    %v4621 = vpop.xlane.xlu0 %4620
    %v4622 = vsel %vm230, %v4612, 0.0
    %4623 = vadd.xlane.f32.xlu0 %v4622
    %v4624 = vpop.xlane.xlu0 %4623
    %v4625 = vsel %vm230, %v4613, 0.0
    %4626 = vadd.xlane.f32.xlu0 %v4625
    %v4627 = vpop.xlane.xlu0 %4626
    %v4628 = vsel %vm230, %v4614, 0.0
    %4629 = vadd.xlane.f32.xlu0 %v4628
    %v4630 = vpop.xlane.xlu0 %4629
    %v4631 = vsel %vm230, %v4615, 0.0
    %4632 = vadd.xlane.f32.xlu0 %v4631
    %v4633 = vpop.xlane.xlu0 %4632
    %v4634 = vmul.f32 %v4618, %v1942
    %v4635 = vmul.f32 %v4621, %v1942
    %v4636 = vmul.f32 %v4624, %v1942
    %v4637 = vmul.f32 %v4627, %v1942
    %v4638 = vmul.f32 %v4630, %v1942
    %v4639 = vmul.f32 %v4633, %v1942
    %v4640 = vadd.f32 %v4634, 1e-05
    %v4641 = vadd.f32 %v4635, 1e-05
    %v4642 = vadd.f32 %v4636, 1e-05
    %v4643 = vadd.f32 %v4637, 1e-05
    %v4644 = vadd.f32 %v4638, 1e-05
    %v4645 = vadd.f32 %v4639, 1e-05
    %v4646 = vrsqrt.pop %v4640
    %v4647 = vrsqrt.pop %v4641
    %v4648 = vrsqrt.pop %v4642
    %v4649 = vrsqrt.pop %v4643
    %v4650 = vrsqrt.pop %v4644
    %v4651 = vrsqrt.pop %v4645
    %v4652 = vmul.f32 %v4604, %v4646
    %v4653 = vmul.f32 %v4605, %v4647
    %v4654 = vmul.f32 %v4606, %v4648
    %v4655 = vmul.f32 %v4607, %v4649
    %v4656 = vmul.f32 %v4608, %v4650
    %v4657 = vmul.f32 %v4609, %v4651
    %v4659 = vlaneseq
    %v4660 = vshrl.u32 %v4659, 7
    %v4661 = vsub.s32 0, %v4660
    %v4662 = vrot.slane %v4578, %v4661
    %v4664 = vmul.f32 %v4652, %v4662
    %v4665 = vmul.f32 %v4653, %v4662
    %v4666 = vmul.f32 %v4654, %v4662
    %v4667 = vmul.f32 %v4655, %v4662
    %v4668 = vmul.f32 %v4656, %v4662
    %v4669 = vmul.f32 %v4657, %v4662
    %v4671 = vlaneseq
    %v4672 = vshrl.u32 %v4671, 7
    %v4673 = vsub.s32 0, %v4672
    %v4674 = vrot.slane %v4579, %v4673
    %v4676 = vadd.f32 %v4664, %v4674
    %v4677 = vadd.f32 %v4665, %v4674
    %v4678 = vadd.f32 %v4666, %v4674
    %v4679 = vadd.f32 %v4667, %v4674
    %v4680 = vadd.f32 %v4668, %v4674
    %v4681 = vadd.f32 %v4669, %v4674
    %4682 = vst.msk [vmem:[%s18] sm:$0xff] %vm230, %v4676
    %4683 = vst.msk [vmem:[%s18 + $0x8] sm:$0xff] %vm230, %v4677
    %4684 = vst.msk [vmem:[%s18 + $0x10] sm:$0xff] %vm230, %v4678
    %4685 = vst.msk [vmem:[%s18 + $0x18] sm:$0xff] %vm230, %v4679
    %4686 = vst.msk [vmem:[%s18 + $0x20] sm:$0xff] %vm230, %v4680
    %4687 = vst.msk [vmem:[%s18 + $0x28] sm:$0xff] %vm230, %v4681
    // Predicated region
    $region98: #{entity_encoder_forward.1} parent=1 // pred_check
      _
    $region99: #{entity_encoder_forward.1} parent=1 // pred_check_branch
      %4689 = sbr.rel (0) target = $region101
    $region100: #{entity_encoder_forward.1} parent=1 // pred_region
      _
    $region101: #{entity_encoder_forward.1} parent=1 // pred_fallthru
      _
    // Predicated region
    $region102: #{entity_encoder_forward.1} parent=1 // pred_check
      _
    $region103: #{entity_encoder_forward.1} parent=1 // pred_check_branch
      %4691 = sbr.rel (0) target = $region105
    $region104: #{entity_encoder_forward.1} parent=1 // pred_region
      _
    $region105: #{entity_encoder_forward.1} parent=1 // pred_fallthru
      _
    %4692 = vsyncpa [#allocation4], 1
    %4693 = vsyncpa [#allocation6], 1
    %4694 = vsyncpa [#allocation9], 1
    %4695 = vsyncpa [#allocation12], 1

</llo_original>
